<compile_context>
chip_gen: v6e
topology: v6e:2x2x1
jax: 0.10.0
libtpu: 0.0.40
codegen_flags: <defaults>
</compile_context>

<pallas_src>
import jax
import jax.numpy as jnp
from jax.experimental import pallas as pl
from jax.experimental.pallas import tpu as pltpu


# ----------------------------- Pallas kernel ---------------------------------
def char_cnn_highway_kernel(x_ref, wbig_ref, bconv_ref,
                            wp_ref, bp_ref, wg_ref, bg_ref, out_ref):
    """One tile of TM words.

    x_ref     : (TM, L*C)           lane-dense bf16 char embeddings (word-major)
    wbig_ref  : (L*C, T_OUT*F)      block-banded Conv1d weight (bf16)
    bconv_ref : (1, F)              conv bias (f32)
    wp_ref    : (F, F), bp_ref (1,F)   highway projection (f32, (in, out))
    wg_ref    : (F, F), bg_ref (1,F)   highway gate       (f32, (in, out))
    out_ref   : (TM, F)             f32 word embeddings
    """
    F = out_ref.shape[1]
    t_out = wbig_ref.shape[1] // F

    # ---- Conv1d as a single banded matmul (deep 1050 contraction, f32 acc) ---
    conv = jnp.dot(x_ref[...], wbig_ref[...],
                   preferred_element_type=jnp.float32)        # (TM, T_OUT*F)

    # ---- Max-pool over time: static lane-slices of the conv output ----------
    cmax = conv[:, 0:F]
    for t in range(1, t_out):                                 # static unroll (16 maxes)
        cmax = jnp.maximum(cmax, conv[:, t * F:(t + 1) * F])

    # Bias + ReLU commute with the time-max (both monotone), so apply them once
    # on the pooled (TM, F) tensor instead of on (TM, T_OUT*F).
    cmax = jnp.maximum(cmax + bconv_ref[...], 0.0)

    # ---- Highway -------------------------------------------------------------
    h_proj = jnp.maximum(
        jnp.dot(cmax, wp_ref[...], preferred_element_type=jnp.float32)
        + bp_ref[...], 0.0)
    gate = jax.nn.sigmoid(
        jnp.dot(cmax, wg_ref[...], preferred_element_type=jnp.float32)
        + bg_ref[...])
    out = gate * h_proj + (1.0 - gate) * cmax
    # TODO(synk): Highway dropout(p=0.3) is a training-time op; eval forward is identity.

    out_ref[...] = out.astype(out_ref.dtype)


# -------------------- Parameter packing (one-time prep) -----------------------
def build_banded_conv_weight(w_conv, max_word_len):
    """(K, C, F) Conv1d weight -> block-banded (L*C, T_OUT*F) matmul weight.

    W_big[l*C + c, t*F + f] = w_conv[l - t, c, f] if 0 <= l - t < K else 0.
    """
    K, C, F = w_conv.shape
    L = max_word_len
    t_out = L - K + 1
    wk = w_conv.reshape(K * C, F)
    cols = []
    for t in range(t_out):
        top = jnp.zeros((t * C, F), w_conv.dtype)
        bot = jnp.zeros(((L - K - t) * C, F), w_conv.dtype)
        cols.append(jnp.concatenate([top, wk, bot], axis=0))   # (L*C, F)
    return jnp.concatenate(cols, axis=1)                       # (L*C, T_OUT*F)


# ------------------------------ Wrapper ---------------------------------------
def model_embeddings_forward(token_ids, params, *, tile_m_max=256):
    """token_ids: (sent_len, batch, max_word_len) int32 -> (sent_len, batch, embed_size)."""
    S, B, L = token_ids.shape
    emb = params["emb_table"]                     # (V, C) bf16
    C = emb.shape[1]
    F = params["b_conv"].shape[1]
    w_big = params["w_big"]                       # (L*C, T_OUT*F) bf16
    assert w_big.shape[0] == L * C

    # Embedding lookup (glue): produce the lane-dense bf16 view (N, L*C) directly.
    N = S * B
    x = jnp.take(emb, token_ids, axis=0).reshape(N, L * C)     # (N, 1050) bf16

    # Tile choice: as large as allowed (multiple of 16 for bf16 sublane packing),
    # but keep >= 2 grid steps when N permits so both v7x TensorCores get work.
    tm = max(16, min(tile_m_max, (N // 2) // 16 * 16))
    n_pad = pl.cdiv(N, tm) * tm
    if n_pad != N:
        # Zero-pad extra words; their (garbage) outputs are sliced off below.
        x = jnp.pad(x, ((0, n_pad - N), (0, 0)))

    out = pl.pallas_call(
        char_cnn_highway_kernel,
        out_shape=jax.ShapeDtypeStruct((n_pad, F), jnp.float32),
        grid_spec=pltpu.PrefetchScalarGridSpec(
            num_scalar_prefetch=0,
            grid=(n_pad // tm,),
            in_specs=[
                pl.BlockSpec((tm, L * C), lambda i: (i, 0)),       # x tile (bf16)
                pl.BlockSpec(w_big.shape, lambda i: (0, 0)),       # banded conv weight
                pl.BlockSpec((1, F), lambda i: (0, 0)),            # conv bias
                pl.BlockSpec((F, F), lambda i: (0, 0)),            # proj weight
                pl.BlockSpec((1, F), lambda i: (0, 0)),            # proj bias
                pl.BlockSpec((F, F), lambda i: (0, 0)),            # gate weight
                pl.BlockSpec((1, F), lambda i: (0, 0)),            # gate bias
            ],
            out_specs=pl.BlockSpec((tm, F), lambda i: (i, 0)),
        ),
        compiler_params=pltpu.CompilerParams(
            dimension_semantics=("parallel",),
            vmem_limit_bytes=32 * 1024 * 1024),
    )(x, w_big, params["b_conv"],
      params["w_proj"], params["b_proj"],
      params["w_gate"], params["b_gate"])

    return out[:N].reshape(S, B, F)


# -------------------------- Pure-JAX reference --------------------------------
def reference_forward(token_ids, params):
    S, B, L = token_ids.shape
    emb = params["emb_table"].astype(jnp.float32)
    K, C, F = params["w_conv"].shape
    T_OUT = L - K + 1
    x = jnp.take(emb, token_ids, axis=0).reshape(S * B, L, C)
    conv = jnp.zeros((S * B, T_OUT, F), jnp.float32)
    for k in range(K):
        conv += jnp.einsum("ntc,cf->ntf", x[:, k:k + T_OUT, :], params["w_conv"][k])
    conv = jax.nn.relu(conv + params["b_conv"][None])
    cm = conv.max(axis=1)
    hp = jax.nn.relu(cm @ params["w_proj"] + params["b_proj"])
    g = jax.nn.sigmoid(cm @ params["w_gate"] + params["b_gate"])
    out = g * hp + (1.0 - g) * cm
    return out.reshape(S, B, F)


# ------------------------------ Main -------------------------------------------
if __name__ == "__main__":
    # Small shapes consistent with the module's forward (max_word_len=21 fixed by the CNN).
    SENT_LEN, BATCH, MAX_WORD_LEN = 8, 5, 21
    VOCAB_CHARS, E_CHAR, KSIZE, EMBED_SIZE = 30, 50, 5, 64
    PAD_IDX = 0

    key = jax.random.PRNGKey(0)
    k_tok, k_emb, k_wc, k_bc, k_wp, k_bp, k_wg, k_bg = jax.random.split(key, 8)

    token_ids = jax.random.randint(k_tok, (SENT_LEN, BATCH, MAX_WORD_LEN),
                                   0, VOCAB_CHARS, dtype=jnp.int32)

    emb_table = 0.1 * jax.random.normal(k_emb, (VOCAB_CHARS, E_CHAR), jnp.float32)
    emb_table = emb_table.at[PAD_IDX].set(0.0)   # padding_idx row is zero

    params = {
        # bf16 char-embedding table (halves HBM traffic for the dominant operand)
        "emb_table": emb_table.astype(jnp.bfloat16),
        # conv weight stored as (K, C_in, F) == PyTorch (F, C_in, K).transpose(2, 1, 0)
        "w_conv": 0.1 * jax.random.normal(k_wc, (KSIZE, E_CHAR, EMBED_SIZE), jnp.float32),
        "b_conv": 0.1 * jax.random.normal(k_bc, (1, EMBED_SIZE), jnp.float32),
        # highway Linear weights stored as (in, out) == PyTorch W.T
        "w_proj": 0.1 * jax.random.normal(k_wp, (EMBED_SIZE, EMBED_SIZE), jnp.float32),
        "b_proj": 0.1 * jax.random.normal(k_bp, (1, EMBED_SIZE), jnp.float32),
        "w_gate": 0.1 * jax.random.normal(k_wg, (EMBED_SIZE, EMBED_SIZE), jnp.float32),
        "b_gate": 0.1 * jax.random.normal(k_bg, (1, EMBED_SIZE), jnp.float32),
    }
    # One-time packing of the Conv1d weight into the block-banded matmul form (bf16).
    params["w_big"] = build_banded_conv_weight(
        params["w_conv"], MAX_WORD_LEN).astype(jnp.bfloat16)

    out = model_embeddings_forward(token_ids, params, tile_m_max=256)
    out = jax.block_until_ready(out)
    assert out.shape == (SENT_LEN, BATCH, EMBED_SIZE), out.shape

    ref = jax.block_until_ready(reference_forward(token_ids, params))
    max_err = float(jnp.max(jnp.abs(out - ref)))
    assert jnp.allclose(out, ref, atol=2e-2, rtol=2e-2), max_err  # bf16 weights -> relaxed tol

    print("KERNEL_OK")
</pallas_src>

<mosaic_0001>
module attributes {stable_mosaic.version = 11 : i64} {
  func.func @char_cnn_highway_kernel(%arg0: i32, %arg1: memref<16x1050xbf16, #tpu.memory_space<vmem>>, %arg2: memref<1050x1088xbf16, #tpu.memory_space<vmem>>, %arg3: memref<1x64xf32, #tpu.memory_space<vmem>>, %arg4: memref<64x64xf32, #tpu.memory_space<vmem>>, %arg5: memref<1x64xf32, #tpu.memory_space<vmem>>, %arg6: memref<64x64xf32, #tpu.memory_space<vmem>>, %arg7: memref<1x64xf32, #tpu.memory_space<vmem>>, %arg8: memref<16x64xf32, #tpu.memory_space<vmem>>) attributes {dimension_semantics = [#tpu.dimension_semantics<parallel>], iteration_bounds = array<i64: 3>, scalar_prefetch = 0 : i64, scratch_operands = 0 : i64, tpu.core_type = #tpu.core_type<tc>, window_params = [{transform_indices = @transform_0, window_bounds = array<i64: 16, 1050>}, {pipeline_mode = #tpu.pipeline_mode<synchronous>, transform_indices = @transform_1, window_bounds = array<i64: 1050, 1088>}, {pipeline_mode = #tpu.pipeline_mode<synchronous>, transform_indices = @transform_2, window_bounds = array<i64: 1, 64>}, {pipeline_mode = #tpu.pipeline_mode<synchronous>, transform_indices = @transform_3, window_bounds = array<i64: 64, 64>}, {pipeline_mode = #tpu.pipeline_mode<synchronous>, transform_indices = @transform_4, window_bounds = array<i64: 1, 64>}, {pipeline_mode = #tpu.pipeline_mode<synchronous>, transform_indices = @transform_5, window_bounds = array<i64: 64, 64>}, {pipeline_mode = #tpu.pipeline_mode<synchronous>, transform_indices = @transform_6, window_bounds = array<i64: 1, 64>}, {transform_indices = @transform_7, window_bounds = array<i64: 16, 64>}]} {
    %c0 = arith.constant 0 : index
    %c0_0 = arith.constant 0 : index
    %0 = vector.load %arg1[%c0, %c0_0] : memref<16x1050xbf16, #tpu.memory_space<vmem>>, vector<16x1050xbf16>
    %c0_1 = arith.constant 0 : index
    %c0_2 = arith.constant 0 : index
    %1 = vector.load %arg2[%c0_1, %c0_2] : memref<1050x1088xbf16, #tpu.memory_space<vmem>>, vector<1050x1088xbf16>
    %cst = arith.constant dense<0.000000e+00> : vector<16x1088xf32>
    %2 = tpu.matmul %0, %1, %cst {dimension_numbers = #tpu.dot_dimension_numbers<[1], [0], [0], [1], [0, 0, 1, 1], [], []>} : vector<16x1050xbf16>, vector<1050x1088xbf16>, vector<16x1088xf32> -> vector<16x1088xf32>
    %3 = vector.extract_strided_slice %2 {offsets = [0, 0], sizes = [16, 64], strides = [1, 1]} : vector<16x1088xf32> to vector<16x64xf32>
    %4 = vector.extract_strided_slice %2 {offsets = [0, 64], sizes = [16, 64], strides = [1, 1]} : vector<16x1088xf32> to vector<16x64xf32>
    %5 = arith.maximumf %3, %4 : vector<16x64xf32>
    %6 = vector.extract_strided_slice %2 {offsets = [0, 128], sizes = [16, 64], strides = [1, 1]} : vector<16x1088xf32> to vector<16x64xf32>
    %7 = arith.maximumf %5, %6 : vector<16x64xf32>
    %8 = vector.extract_strided_slice %2 {offsets = [0, 192], sizes = [16, 64], strides = [1, 1]} : vector<16x1088xf32> to vector<16x64xf32>
    %9 = arith.maximumf %7, %8 : vector<16x64xf32>
    %10 = vector.extract_strided_slice %2 {offsets = [0, 256], sizes = [16, 64], strides = [1, 1]} : vector<16x1088xf32> to vector<16x64xf32>
    %11 = arith.maximumf %9, %10 : vector<16x64xf32>
    %12 = vector.extract_strided_slice %2 {offsets = [0, 320], sizes = [16, 64], strides = [1, 1]} : vector<16x1088xf32> to vector<16x64xf32>
    %13 = arith.maximumf %11, %12 : vector<16x64xf32>
    %14 = vector.extract_strided_slice %2 {offsets = [0, 384], sizes = [16, 64], strides = [1, 1]} : vector<16x1088xf32> to vector<16x64xf32>
    %15 = arith.maximumf %13, %14 : vector<16x64xf32>
    %16 = vector.extract_strided_slice %2 {offsets = [0, 448], sizes = [16, 64], strides = [1, 1]} : vector<16x1088xf32> to vector<16x64xf32>
    %17 = arith.maximumf %15, %16 : vector<16x64xf32>
    %18 = vector.extract_strided_slice %2 {offsets = [0, 512], sizes = [16, 64], strides = [1, 1]} : vector<16x1088xf32> to vector<16x64xf32>
    %19 = arith.maximumf %17, %18 : vector<16x64xf32>
    %20 = vector.extract_strided_slice %2 {offsets = [0, 576], sizes = [16, 64], strides = [1, 1]} : vector<16x1088xf32> to vector<16x64xf32>
    %21 = arith.maximumf %19, %20 : vector<16x64xf32>
    %22 = vector.extract_strided_slice %2 {offsets = [0, 640], sizes = [16, 64], strides = [1, 1]} : vector<16x1088xf32> to vector<16x64xf32>
    %23 = arith.maximumf %21, %22 : vector<16x64xf32>
    %24 = vector.extract_strided_slice %2 {offsets = [0, 704], sizes = [16, 64], strides = [1, 1]} : vector<16x1088xf32> to vector<16x64xf32>
    %25 = arith.maximumf %23, %24 : vector<16x64xf32>
    %26 = vector.extract_strided_slice %2 {offsets = [0, 768], sizes = [16, 64], strides = [1, 1]} : vector<16x1088xf32> to vector<16x64xf32>
    %27 = arith.maximumf %25, %26 : vector<16x64xf32>
    %28 = vector.extract_strided_slice %2 {offsets = [0, 832], sizes = [16, 64], strides = [1, 1]} : vector<16x1088xf32> to vector<16x64xf32>
    %29 = arith.maximumf %27, %28 : vector<16x64xf32>
    %30 = vector.extract_strided_slice %2 {offsets = [0, 896], sizes = [16, 64], strides = [1, 1]} : vector<16x1088xf32> to vector<16x64xf32>
    %31 = arith.maximumf %29, %30 : vector<16x64xf32>
    %32 = vector.extract_strided_slice %2 {offsets = [0, 960], sizes = [16, 64], strides = [1, 1]} : vector<16x1088xf32> to vector<16x64xf32>
    %33 = arith.maximumf %31, %32 : vector<16x64xf32>
    %34 = vector.extract_strided_slice %2 {offsets = [0, 1024], sizes = [16, 64], strides = [1, 1]} : vector<16x1088xf32> to vector<16x64xf32>
    %35 = arith.maximumf %33, %34 : vector<16x64xf32>
    %c0_3 = arith.constant 0 : index
    %c0_4 = arith.constant 0 : index
    %36 = vector.load %arg3[%c0_3, %c0_4] : memref<1x64xf32, #tpu.memory_space<vmem>>, vector<1x64xf32>
    %37 = vector.broadcast %36 : vector<1x64xf32> to vector<16x64xf32>
    %38 = arith.addf %35, %37 : vector<16x64xf32>
    %cst_5 = arith.constant 0.000000e+00 : f32
    %39 = vector.broadcast %cst_5 : f32 to vector<16x64xf32>
    %40 = arith.maximumf %38, %39 : vector<16x64xf32>
    %c0_6 = arith.constant 0 : index
    %c0_7 = arith.constant 0 : index
    %41 = vector.load %arg4[%c0_6, %c0_7] : memref<64x64xf32, #tpu.memory_space<vmem>>, vector<64x64xf32>
    %cst_8 = arith.constant dense<0.000000e+00> : vector<16x64xf32>
    %42 = tpu.matmul %40, %41, %cst_8 {dimension_numbers = #tpu.dot_dimension_numbers<[1], [0], [0], [1], [0, 0, 1, 1], [], []>} : vector<16x64xf32>, vector<64x64xf32>, vector<16x64xf32> -> vector<16x64xf32>
    %c0_9 = arith.constant 0 : index
    %c0_10 = arith.constant 0 : index
    %43 = vector.load %arg5[%c0_9, %c0_10] : memref<1x64xf32, #tpu.memory_space<vmem>>, vector<1x64xf32>
    %44 = vector.broadcast %43 : vector<1x64xf32> to vector<16x64xf32>
    %45 = arith.addf %42, %44 : vector<16x64xf32>
    %cst_11 = arith.constant 0.000000e+00 : f32
    %46 = vector.broadcast %cst_11 : f32 to vector<16x64xf32>
    %47 = arith.maximumf %45, %46 : vector<16x64xf32>
    %c0_12 = arith.constant 0 : index
    %c0_13 = arith.constant 0 : index
    %48 = vector.load %arg6[%c0_12, %c0_13] : memref<64x64xf32, #tpu.memory_space<vmem>>, vector<64x64xf32>
    %cst_14 = arith.constant dense<0.000000e+00> : vector<16x64xf32>
    %49 = tpu.matmul %40, %48, %cst_14 {dimension_numbers = #tpu.dot_dimension_numbers<[1], [0], [0], [1], [0, 0, 1, 1], [], []>} : vector<16x64xf32>, vector<64x64xf32>, vector<16x64xf32> -> vector<16x64xf32>
    %c0_15 = arith.constant 0 : index
    %c0_16 = arith.constant 0 : index
    %50 = vector.load %arg7[%c0_15, %c0_16] : memref<1x64xf32, #tpu.memory_space<vmem>>, vector<1x64xf32>
    %51 = vector.broadcast %50 : vector<1x64xf32> to vector<16x64xf32>
    %52 = arith.addf %49, %51 : vector<16x64xf32>
    %53 = arith.negf %52 : vector<16x64xf32>
    %54 = math.exp %53 : vector<16x64xf32>
    %cst_17 = arith.constant 1.000000e+00 : f32
    %55 = vector.broadcast %cst_17 : f32 to vector<16x64xf32>
    %56 = arith.addf %55, %54 : vector<16x64xf32>
    %57 = arith.divf %55, %56 : vector<16x64xf32>
    %58 = arith.mulf %57, %47 : vector<16x64xf32>
    %cst_18 = arith.constant 1.000000e+00 : f32
    %59 = vector.broadcast %cst_18 : f32 to vector<16x64xf32>
    %60 = arith.subf %59, %57 : vector<16x64xf32>
    %61 = arith.mulf %60, %40 : vector<16x64xf32>
    %62 = arith.addf %58, %61 : vector<16x64xf32>
    %c0_19 = arith.constant 0 : index
    %c0_20 = arith.constant 0 : index
    %63 = vector.load %arg8[%c0_19, %c0_20] : memref<16x64xf32, #tpu.memory_space<vmem>>, vector<16x64xf32>
    tpu.vector_store %arg8[%c0_19, %c0_20], %62 {strides = array<i32>} : memref<16x64xf32, #tpu.memory_space<vmem>>, vector<16x64xf32>,
    return
  }
  func.func @transform_0(%arg0: i32) -> (i32, i32) {
    %c0_i32 = arith.constant 0 : i32
    %c0_i32_0 = arith.constant 0 : i32
    return %arg0, %c0_i32 : i32, i32
  }
  func.func @transform_1(%arg0: i32) -> (i32, i32) {
    %c0_i32 = arith.constant 0 : i32
    %c0_i32_0 = arith.constant 0 : i32
    %c0_i32_1 = arith.constant 0 : i32
    return %c0_i32, %c0_i32_0 : i32, i32
  }
  func.func @transform_2(%arg0: i32) -> (i32, i32) {
    %c0_i32 = arith.constant 0 : i32
    %c0_i32_0 = arith.constant 0 : i32
    %c0_i32_1 = arith.constant 0 : i32
    return %c0_i32, %c0_i32_0 : i32, i32
  }
  func.func @transform_3(%arg0: i32) -> (i32, i32) {
    %c0_i32 = arith.constant 0 : i32
    %c0_i32_0 = arith.constant 0 : i32
    %c0_i32_1 = arith.constant 0 : i32
    return %c0_i32, %c0_i32_0 : i32, i32
  }
  func.func @transform_4(%arg0: i32) -> (i32, i32) {
    %c0_i32 = arith.constant 0 : i32
    %c0_i32_0 = arith.constant 0 : i32
    %c0_i32_1 = arith.constant 0 : i32
    return %c0_i32, %c0_i32_0 : i32, i32
  }
  func.func @transform_5(%arg0: i32) -> (i32, i32) {
    %c0_i32 = arith.constant 0 : i32
    %c0_i32_0 = arith.constant 0 : i32
    %c0_i32_1 = arith.constant 0 : i32
    return %c0_i32, %c0_i32_0 : i32, i32
  }
  func.func @transform_6(%arg0: i32) -> (i32, i32) {
    %c0_i32 = arith.constant 0 : i32
    %c0_i32_0 = arith.constant 0 : i32
    %c0_i32_1 = arith.constant 0 : i32
    return %c0_i32, %c0_i32_0 : i32, i32
  }
  func.func @transform_7(%arg0: i32) -> (i32, i32) {
    %c0_i32 = arith.constant 0 : i32
    %c0_i32_0 = arith.constant 0 : i32
    return %arg0, %c0_i32 : i32, i32
  }
}

</mosaic_0001>

<llo_original>
// kernel: tpu_custom_call.1
$region0: #{tpu_custom_call.1}
  #allocation0 [shape = 'u32[]', space=smem, size = 0x4, offset = 0x4, fixed_abs, tag = 'smem constant byte address 0x4 - core index']
  #allocation1 [shape = 'u32[144,128]{1,0:T(1,128)}', space=vmem, size = 0x12000, scoped, tag = 'internal scratch']
  %s0 = inlined_call_operand.hbm [shape: bf16[48,1050], index: 0, kind: input, shape index: {}]
  %s1 = inlined_call_operand.hbm [shape: bf16[1050,1088], index: 1, kind: input, shape index: {}]
  %s2 = inlined_call_operand.hbm [shape: f32[1,64], index: 2, kind: input, shape index: {}]
  %s3 = inlined_call_operand.hbm [shape: f32[64,64], index: 3, kind: input, shape index: {}]
  %s4 = inlined_call_operand.hbm [shape: f32[1,64], index: 4, kind: input, shape index: {}]
  %s5 = inlined_call_operand.hbm [shape: f32[64,64], index: 5, kind: input, shape index: {}]
  %s6 = inlined_call_operand.hbm [shape: f32[1,64], index: 6, kind: input, shape index: {}]
  %s7 = inlined_call_operand.hbm [shape: f32[48,64], index: 7, kind: output, shape index: {}]
  %s8 = sld [smem:[#allocation0]]
  $region89: #{tpu_custom_call.1} parent=0
    _
  %s10 = ssub.s32 1, %s8
  %s11 = scalar_select 0, %s10, %s8
  $region1: #{tpu_custom_call.1} parent=0
    #allocation2 [shape = 'u8[73728]{0}', space=vmem, size = 0x12000, scoped, tag = 'input window, operand 0']
    #allocation3 [shape = 's32[2]{0}', space=sflag, size = 0x8, scoped, tag = 'scoped memory for tpu_custom_call.1']
    #allocation4 [shape = 's32[2]{0}', space=sflag, size = 0x8, scoped, tag = 'scoped memory for tpu_custom_call.1']
    #allocation5 [shape = 'u8[2433024]{0}', space=vmem, size = 0x252000, scoped, tag = 'input window, operand 1, single buffered']
    #allocation6 [shape = 's32[1]{0}', space=sflag, size = 0x4, scoped, tag = 'scoped memory for tpu_custom_call.1']
    #allocation7 [shape = 'u8[512]{0}', space=vmem, size = 0x400, scoped, tag = 'input window, operand 2, single buffered']
    #allocation8 [shape = 'u8[32768]{0}', space=vmem, size = 0x8000, scoped, tag = 'input window, operand 3, single buffered']
    #allocation9 [shape = 's32[1]{0}', space=sflag, size = 0x4, scoped, tag = 'scoped memory for tpu_custom_call.1']
    #allocation10 [shape = 'u8[512]{0}', space=vmem, size = 0x400, scoped, tag = 'input window, operand 4, single buffered']
    #allocation11 [shape = 'u8[32768]{0}', space=vmem, size = 0x8000, scoped, tag = 'input window, operand 5, single buffered']
    #allocation12 [shape = 's32[1]{0}', space=sflag, size = 0x4, scoped, tag = 'scoped memory for tpu_custom_call.1']
    #allocation13 [shape = 'u8[512]{0}', space=vmem, size = 0x400, scoped, tag = 'input window, operand 6, single buffered']
    #allocation14 [shape = 'u8[16384]{0}', space=vmem, size = 0x4000, scoped, tag = 'output window, operand 0']
    %12 = vsyncpa [#allocation3], 0
    %s13 = scalar_lea.sflag [#allocation3], 1
    %14 = vsyncpa %s13, 0
    %15 = vsyncpa [#allocation6], 0
    %16 = vsyncpa [#allocation9], 0
    %17 = vsyncpa [#allocation12], 0
    %18 = vsyncpa [#allocation4], 0
    %s19 = scalar_lea.sflag [#allocation4], 1
    %20 = vsyncpa %s19, 0
    loop: start=0, step=1, limit=5
    $region2: #{tpu_custom_call.1} parent=1 // loop_pre_header
      _
    $region3: #{tpu_custom_call.1} parent=1 // loop_header
      %s22 = sphi 0, %s26
      %p23 = scmp.ge.s32.totalorder %s22, 5
      %s32 = sphi 0, %s34
      %s35 = sphi 0, %s32
      %s36 = sphi 0, %s35
      %s52 = sphi 0, %s36
      %s56 = sphi 0, %s56
      %s58 = sphi 0, %s56
      %s59 = sphi 0, %s58
      %s73 = sphi 0, %s59
      %s77 = sphi 0, %s77
      %s79 = sphi 0, %s77
      %s80 = sphi 0, %s79
      %s94 = sphi 0, %s80
      %s98 = sphi 0, %s98
      %s100 = sphi 0, %s98
      %s101 = sphi 0, %s100
      %s115 = sphi 0, %s101
      %s119 = sphi 0, %s119
      %s121 = sphi 0, %s119
      %s122 = sphi 0, %s121
      %s136 = sphi 0, %s122
      %s140 = sphi 0, %s140
      %s142 = sphi 0, %s140
      %s143 = sphi 0, %s142
      %s157 = sphi 0, %s143
      %s161 = sphi 0, %s161
      %s163 = sphi 0, %s161
      %s164 = sphi 0, %s163
      %s178 = sphi 0, %s164
      %s184 = sphi 0, %s186
      %s187 = sphi 0, %s184
      %s188 = sphi 0, %s187
      %s204 = sphi 0, %s188
    $region4: #{tpu_custom_call.1} parent=1 // loop_header_branch
      %25 = sbr.rel (%p23) target = $region8
    $region5: #{tpu_custom_call.1} parent=1 // loop_body
      %s27 = ssub.s32 %s22, 1
      %s28 = ssub.s32 %s22, 2
      %s29 = sadd.s32 %s22, 1
      %s30 = ssub.s32 %s22, %s29
      %p31 = scmp.eq.s32.totalorder %s30, 0
      %s33 = sadd.s32 %s32, 1
      %s34 = scalar_select %p31, %s32, %s33
      %p37 = pneg %p31
      %p38 = scmp.eq.s32.totalorder %s22, 2
      %p39 = por %p37, %p38
      %p40 = scmp.ne.s32.totalorder %s32, %s35
      %p41 = scmp.eq.s32.totalorder %s22, 0
      %p42 = por %p40, %p41
      %p43 = scmp.ne.s32.totalorder %s32, %s35
      %p44 = scmp.eq.s32.totalorder %s27, 2
      %p45 = por %p43, %p44
      %p46 = scmp.ne.s32.totalorder %s35, %s36
      %p47 = scmp.eq.s32.totalorder %s27, 0
      %p48 = por %p46, %p47
      %p49 = scmp.ne.s32.totalorder %s35, %s36
      %p50 = scmp.eq.s32.totalorder %s28, 2
      %p51 = por %p49, %p50
      %p53 = scmp.ne.s32.totalorder %s36, %s52
      %p54 = scmp.eq.s32.totalorder %s28, 0
      %p55 = por %p53, %p54
      %s57 = sadd.s32 %s56, 1
      %p60 = scmp.eq.s32.totalorder %s22, 2
      %p61 = scmp.ne.s32.totalorder %s56, %s58
      %p62 = scmp.eq.s32.totalorder %s22, 0
      %p63 = por %p61, %p62
      %p64 = scmp.ne.s32.totalorder %s56, %s58
      %p65 = scmp.eq.s32.totalorder %s27, 2
      %p66 = por %p64, %p65
      %p67 = scmp.ne.s32.totalorder %s58, %s59
      %p68 = scmp.eq.s32.totalorder %s27, 0
      %p69 = por %p67, %p68
      %p70 = scmp.ne.s32.totalorder %s58, %s59
      %p71 = scmp.eq.s32.totalorder %s28, 2
      %p72 = por %p70, %p71
      %p74 = scmp.ne.s32.totalorder %s59, %s73
      %p75 = scmp.eq.s32.totalorder %s28, 0
      %p76 = por %p74, %p75
      %s78 = sadd.s32 %s77, 1
      %p81 = scmp.eq.s32.totalorder %s22, 2
      %p82 = scmp.ne.s32.totalorder %s77, %s79
      %p83 = scmp.eq.s32.totalorder %s22, 0
      %p84 = por %p82, %p83
      %p85 = scmp.ne.s32.totalorder %s77, %s79
      %p86 = scmp.eq.s32.totalorder %s27, 2
      %p87 = por %p85, %p86
      %p88 = scmp.ne.s32.totalorder %s79, %s80
      %p89 = scmp.eq.s32.totalorder %s27, 0
      %p90 = por %p88, %p89
      %p91 = scmp.ne.s32.totalorder %s79, %s80
      %p92 = scmp.eq.s32.totalorder %s28, 2
      %p93 = por %p91, %p92
      %p95 = scmp.ne.s32.totalorder %s80, %s94
      %p96 = scmp.eq.s32.totalorder %s28, 0
      %p97 = por %p95, %p96
      %s99 = sadd.s32 %s98, 1
      %p102 = scmp.eq.s32.totalorder %s22, 2
      %p103 = scmp.ne.s32.totalorder %s98, %s100
      %p104 = scmp.eq.s32.totalorder %s22, 0
      %p105 = por %p103, %p104
      %p106 = scmp.ne.s32.totalorder %s98, %s100
      %p107 = scmp.eq.s32.totalorder %s27, 2
      %p108 = por %p106, %p107
      %p109 = scmp.ne.s32.totalorder %s100, %s101
      %p110 = scmp.eq.s32.totalorder %s27, 0
      %p111 = por %p109, %p110
      %p112 = scmp.ne.s32.totalorder %s100, %s101
      %p113 = scmp.eq.s32.totalorder %s28, 2
      %p114 = por %p112, %p113
      %p116 = scmp.ne.s32.totalorder %s101, %s115
      %p117 = scmp.eq.s32.totalorder %s28, 0
      %p118 = por %p116, %p117
      %s120 = sadd.s32 %s119, 1
      %p123 = scmp.eq.s32.totalorder %s22, 2
      %p124 = scmp.ne.s32.totalorder %s119, %s121
      %p125 = scmp.eq.s32.totalorder %s22, 0
      %p126 = por %p124, %p125
      %p127 = scmp.ne.s32.totalorder %s119, %s121
      %p128 = scmp.eq.s32.totalorder %s27, 2
      %p129 = por %p127, %p128
      %p130 = scmp.ne.s32.totalorder %s121, %s122
      %p131 = scmp.eq.s32.totalorder %s27, 0
      %p132 = por %p130, %p131
      %p133 = scmp.ne.s32.totalorder %s121, %s122
      %p134 = scmp.eq.s32.totalorder %s28, 2
      %p135 = por %p133, %p134
      %p137 = scmp.ne.s32.totalorder %s122, %s136
      %p138 = scmp.eq.s32.totalorder %s28, 0
      %p139 = por %p137, %p138
      %s141 = sadd.s32 %s140, 1
      %p144 = scmp.eq.s32.totalorder %s22, 2
      %p145 = scmp.ne.s32.totalorder %s140, %s142
      %p146 = scmp.eq.s32.totalorder %s22, 0
      %p147 = por %p145, %p146
      %p148 = scmp.ne.s32.totalorder %s140, %s142
      %p149 = scmp.eq.s32.totalorder %s27, 2
      %p150 = por %p148, %p149
      %p151 = scmp.ne.s32.totalorder %s142, %s143
      %p152 = scmp.eq.s32.totalorder %s27, 0
      %p153 = por %p151, %p152
      %p154 = scmp.ne.s32.totalorder %s142, %s143
      %p155 = scmp.eq.s32.totalorder %s28, 2
      %p156 = por %p154, %p155
      %p158 = scmp.ne.s32.totalorder %s143, %s157
      %p159 = scmp.eq.s32.totalorder %s28, 0
      %p160 = por %p158, %p159
      %s162 = sadd.s32 %s161, 1
      %p165 = scmp.eq.s32.totalorder %s22, 2
      %p166 = scmp.ne.s32.totalorder %s161, %s163
      %p167 = scmp.eq.s32.totalorder %s22, 0
      %p168 = por %p166, %p167
      %p169 = scmp.ne.s32.totalorder %s161, %s163
      %p170 = scmp.eq.s32.totalorder %s27, 2
      %p171 = por %p169, %p170
      %p172 = scmp.ne.s32.totalorder %s163, %s164
      %p173 = scmp.eq.s32.totalorder %s27, 0
      %p174 = por %p172, %p173
      %p175 = scmp.ne.s32.totalorder %s163, %s164
      %p176 = scmp.eq.s32.totalorder %s28, 2
      %p177 = por %p175, %p176
      %p179 = scmp.ne.s32.totalorder %s164, %s178
      %p180 = scmp.eq.s32.totalorder %s28, 0
      %p181 = por %p179, %p180
      %s182 = ssub.s32 %s22, %s29
      %p183 = scmp.eq.s32.totalorder %s182, 0
      %s185 = sadd.s32 %s184, 1
      %s186 = scalar_select %p183, %s184, %s185
      %p189 = pneg %p183
      %p190 = scmp.eq.s32.totalorder %s22, 2
      %p191 = por %p189, %p190
      %p192 = scmp.ne.s32.totalorder %s184, %s187
      %p193 = scmp.eq.s32.totalorder %s22, 0
      %p194 = por %p192, %p193
      %p195 = scmp.ne.s32.totalorder %s184, %s187
      %p196 = scmp.eq.s32.totalorder %s27, 2
      %p197 = por %p195, %p196
      %p198 = scmp.ne.s32.totalorder %s187, %s188
      %p199 = scmp.eq.s32.totalorder %s27, 0
      %p200 = por %p198, %p199
      %p201 = scmp.ne.s32.totalorder %s187, %s188
      %p202 = scmp.eq.s32.totalorder %s28, 2
      %p203 = por %p201, %p202
      %p205 = scmp.ne.s32.totalorder %s188, %s204
      %p206 = scmp.eq.s32.totalorder %s28, 0
      %p207 = por %p205, %p206
      %p208 = scmp.le.s32.totalorder 1, %s22
      %p209 = scmp.lt.s32.totalorder %s22, 4
      %p210 = pnand %p208, %p209
      %p211 = pneg %p210
      // Predicated region
      $region9: #{tpu_custom_call.1} parent=5 // pred_check
        _
      $region10: #{tpu_custom_call.1} parent=5 // pred_check_branch
        %213 = sbr.rel (%p210) target = $region12
      $region11: #{tpu_custom_call.1} parent=5 // pred_region
        %s214 = ssub.s32 %s22, 1
        // Predicated region
        $region13: #{tpu_custom_call.1} parent=11 // pred_check
          %p215 = pneg %p69
        $region14: #{tpu_custom_call.1} parent=11 // pred_check_branch
          %217 = sbr.rel (%p215) target = $region16
        $region15: #{tpu_custom_call.1} parent=11 // pred_region
          %s219 = ssub.s32 76032, 76032
          %220 = vsyncadd [#allocation6], %s219
          %s221 = sshll.u32 [#allocation5], 4
          %s222 = int_to_ptr.vmem [resolvable:$true] %s221
          %227 = dma.hbm_to_vmem [thread:$0]  %s1, 76032, %s222, [#allocation6], 576, 576, 36
        $region16: #{tpu_custom_call.1} parent=11 // pred_fallthru
          _
        // Predicated region
        $region17: #{tpu_custom_call.1} parent=11 // pred_check
          %p228 = pneg %p90
        $region18: #{tpu_custom_call.1} parent=11 // pred_check_branch
          %230 = sbr.rel (%p228) target = $region20
        $region19: #{tpu_custom_call.1} parent=11 // pred_region
          %s232 = ssub.s32 16, 16
          %233 = vsyncadd [#allocation6], %s232
          %s235 = sshll.u32 [#allocation7], 4
          %s236 = int_to_ptr.vmem [resolvable:$true] %s235
          %238 = dma.hbm_to_vmem [thread:$0]  %s2, 16, %s236, [#allocation6]
        $region20: #{tpu_custom_call.1} parent=11 // pred_fallthru
          _
        // Predicated region
        $region21: #{tpu_custom_call.1} parent=11 // pred_check
          %p239 = pneg %p111
        $region22: #{tpu_custom_call.1} parent=11 // pred_check_branch
          %241 = sbr.rel (%p239) target = $region24
        $region23: #{tpu_custom_call.1} parent=11 // pred_region
          %s243 = ssub.s32 1024, 1024
          %244 = vsyncadd [#allocation9], %s243
          %s245 = sshll.u32 [#allocation8], 4
          %s246 = int_to_ptr.vmem [resolvable:$true] %s245
          %251 = dma.hbm_to_vmem [thread:$0]  %s3, 1024, %s246, [#allocation9], 128, 128, 8
        $region24: #{tpu_custom_call.1} parent=11 // pred_fallthru
          _
        // Predicated region
        $region25: #{tpu_custom_call.1} parent=11 // pred_check
          %p252 = pneg %p132
        $region26: #{tpu_custom_call.1} parent=11 // pred_check_branch
          %254 = sbr.rel (%p252) target = $region28
        $region27: #{tpu_custom_call.1} parent=11 // pred_region
          %s256 = ssub.s32 16, 16
          %257 = vsyncadd [#allocation9], %s256
          %s259 = sshll.u32 [#allocation10], 4
          %s260 = int_to_ptr.vmem [resolvable:$true] %s259
          %262 = dma.hbm_to_vmem [thread:$0]  %s4, 16, %s260, [#allocation9]
        $region28: #{tpu_custom_call.1} parent=11 // pred_fallthru
          _
        // Predicated region
        $region29: #{tpu_custom_call.1} parent=11 // pred_check
          %p263 = pneg %p153
        $region30: #{tpu_custom_call.1} parent=11 // pred_check_branch
          %265 = sbr.rel (%p263) target = $region32
        $region31: #{tpu_custom_call.1} parent=11 // pred_region
          %s267 = ssub.s32 1024, 1024
          %268 = vsyncadd [#allocation12], %s267
          %s269 = sshll.u32 [#allocation11], 4
          %s270 = int_to_ptr.vmem [resolvable:$true] %s269
          %275 = dma.hbm_to_vmem [thread:$0]  %s5, 1024, %s270, [#allocation12], 128, 128, 8
        $region32: #{tpu_custom_call.1} parent=11 // pred_fallthru
          _
        // Predicated region
        $region33: #{tpu_custom_call.1} parent=11 // pred_check
          %p276 = pneg %p174
        $region34: #{tpu_custom_call.1} parent=11 // pred_check_branch
          %278 = sbr.rel (%p276) target = $region36
        $region35: #{tpu_custom_call.1} parent=11 // pred_region
          %s280 = ssub.s32 16, 16
          %281 = vsyncadd [#allocation12], %s280
          %s283 = sshll.u32 [#allocation13], 4
          %s284 = int_to_ptr.vmem [resolvable:$true] %s283
          %286 = dma.hbm_to_vmem [thread:$0]  %s6, 16, %s284, [#allocation12]
        $region36: #{tpu_custom_call.1} parent=11 // pred_fallthru
          _
      $region12: #{tpu_custom_call.1} parent=5 // pred_fallthru
        _
      %p287 = scmp.lt.s32.totalorder %s22, 3
      // Predicated region
      $region37: #{tpu_custom_call.1} parent=5 // pred_check
        %p288 = pneg %p287
      $region38: #{tpu_custom_call.1} parent=5 // pred_check_branch
        %290 = sbr.rel (%p288) target = $region40
      $region39: #{tpu_custom_call.1} parent=5 // pred_region
        // Predicated region
        $region41: #{tpu_custom_call.1} parent=39 // pred_check
          %p291 = pneg %p42
        $region42: #{tpu_custom_call.1} parent=39 // pred_check_branch
          %293 = sbr.rel (%p291) target = $region44
        $region43: #{tpu_custom_call.1} parent=39 // pred_region
          %s294 = sand.u32 %s32, 1
          %s295 = scalar_lea.sflag [#allocation3], %s294
          %s296 = sand.u32 %s32, 1
          %s297 = smul.addr %s296, 72
          %s298 = scalar_lea.vmem [#allocation2], %s297
          %s299 = smul.u32 2, %s22
          %s301 = ssub.s32 1152, 1152
          %302 = vsyncadd %s295, %s301
          %s303 = smul.addr %s299, 9
          %s304 = smul.addr %s303, 64
          %s305 = scalar_lea.hbm %s0, %s304
          %s306 = sshll.u32 %s298, 4
          %s307 = int_to_ptr.vmem [resolvable:$true] %s306
          %312 = dma.hbm_to_vmem [thread:$0]  %s305, 1152, %s307, %s295, 576, 576, 36
        $region44: #{tpu_custom_call.1} parent=39 // pred_fallthru
          _
      $region40: #{tpu_custom_call.1} parent=5 // pred_fallthru
        _
      %p313 = scmp.le.s32.totalorder 1, %s22
      %p314 = scmp.lt.s32.totalorder %s22, 4
      %p315 = pnand %p313, %p314
      %p316 = pneg %p315
      // Predicated region
      $region45: #{tpu_custom_call.1} parent=5 // pred_check
        _
      $region46: #{tpu_custom_call.1} parent=5 // pred_check_branch
        %318 = sbr.rel (%p315) target = $region48
      $region47: #{tpu_custom_call.1} parent=5 // pred_region
        %s319 = ssub.s32 %s22, 1
        %s320 = sand.u32 %s35, 1
        %s321 = scalar_lea.sflag [#allocation3], %s320
        %s322 = sand.u32 %s35, 1
        %s323 = smul.addr %s322, 72
        %s324 = scalar_lea.vmem [#allocation2], %s323
        // Predicated region
        $region49: #{tpu_custom_call.1} parent=47 // pred_check
          %p325 = pneg %p48
        $region50: #{tpu_custom_call.1} parent=47 // pred_check_branch
          %327 = sbr.rel (%p325) target = $region52
        $region51: #{tpu_custom_call.1} parent=47 // pred_region
          %328 = dma.done %s321, 1152
        $region52: #{tpu_custom_call.1} parent=47 // pred_fallthru
          _
        // Predicated region
        $region53: #{tpu_custom_call.1} parent=47 // pred_check
          %p329 = pneg %p69
        $region54: #{tpu_custom_call.1} parent=47 // pred_check_branch
          %331 = sbr.rel (%p329) target = $region56
        $region55: #{tpu_custom_call.1} parent=47 // pred_region
          %332 = dma.done [#allocation6], 76032
        $region56: #{tpu_custom_call.1} parent=47 // pred_fallthru
          _
        // Predicated region
        $region57: #{tpu_custom_call.1} parent=47 // pred_check
          %p333 = pneg %p90
        $region58: #{tpu_custom_call.1} parent=47 // pred_check_branch
          %335 = sbr.rel (%p333) target = $region60
        $region59: #{tpu_custom_call.1} parent=47 // pred_region
          %336 = dma.done [#allocation6], 16
        $region60: #{tpu_custom_call.1} parent=47 // pred_fallthru
          _
        // Predicated region
        $region61: #{tpu_custom_call.1} parent=47 // pred_check
          %p337 = pneg %p111
        $region62: #{tpu_custom_call.1} parent=47 // pred_check_branch
          %339 = sbr.rel (%p337) target = $region64
        $region63: #{tpu_custom_call.1} parent=47 // pred_region
          %340 = dma.done [#allocation9], 1024
        $region64: #{tpu_custom_call.1} parent=47 // pred_fallthru
          _
        // Predicated region
        $region65: #{tpu_custom_call.1} parent=47 // pred_check
          %p341 = pneg %p132
        $region66: #{tpu_custom_call.1} parent=47 // pred_check_branch
          %343 = sbr.rel (%p341) target = $region68
        $region67: #{tpu_custom_call.1} parent=47 // pred_region
          %344 = dma.done [#allocation9], 16
        $region68: #{tpu_custom_call.1} parent=47 // pred_fallthru
          _
        // Predicated region
        $region69: #{tpu_custom_call.1} parent=47 // pred_check
          %p345 = pneg %p153
        $region70: #{tpu_custom_call.1} parent=47 // pred_check_branch
          %347 = sbr.rel (%p345) target = $region72
        $region71: #{tpu_custom_call.1} parent=47 // pred_region
          %348 = dma.done [#allocation12], 1024
        $region72: #{tpu_custom_call.1} parent=47 // pred_fallthru
          _
        // Predicated region
        $region73: #{tpu_custom_call.1} parent=47 // pred_check
          %p349 = pneg %p174
        $region74: #{tpu_custom_call.1} parent=47 // pred_check_branch
          %351 = sbr.rel (%p349) target = $region76
        $region75: #{tpu_custom_call.1} parent=47 // pred_region
          %352 = dma.done [#allocation12], 16
        $region76: #{tpu_custom_call.1} parent=47 // pred_fallthru
          _
        %s353 = sand.u32 %s35, 1
        %s354 = scalar_lea.sflag [#allocation3], %s353
        %s355 = sand.u32 %s35, 1
        %s356 = smul.addr %s355, 72
        %s357 = scalar_lea.vmem [#allocation2], %s356
        %p358 = pneg %p48
        %p359 = pneg %p45
        %p360 = pneg %p69
        %p361 = pneg %p66
        %p362 = pneg %p90
        %p363 = pneg %p87
        %p364 = pneg %p111
        %p365 = pneg %p108
        %p366 = pneg %p132
        %p367 = pneg %p129
        %p368 = pneg %p153
        %p369 = pneg %p150
        %p370 = pneg %p174
        %p371 = pneg %p171
        %p372 = pneg %p200
        %p373 = pneg %p197
        %s374 = sand.u32 %s187, 1
        %s375 = scalar_lea.sflag [#allocation4], %s374
        %s376 = sand.u32 %s187, 1
        %s377 = smul.addr %s376, 16
        %s378 = scalar_lea.vmem [#allocation14], %s377
        %s379 = smul.u32 2, %s27
        %s380 = smul.u32 2, %s27
        %v382 = vld [vmem:[%s324] sm:$0xff]
        %v383 = vld [vmem:[%s324 + $0x8] sm:$0xff]
        %v384 = vld [vmem:[%s324 + $0x10] sm:$0xff]
        %v385 = vld [vmem:[%s324 + $0x18] sm:$0xff]
        %v386 = vld [vmem:[%s324 + $0x20] sm:$0xf]
        %v387 = vld [vmem:[%s324 + $0x24] sm:$0xff]
        %v388 = vld [vmem:[%s324 + $0x2c] sm:$0xff]
        %v389 = vld [vmem:[%s324 + $0x34] sm:$0xff]
        %v390 = vld [vmem:[%s324 + $0x3c] sm:$0xff]
        %v391 = vld [vmem:[%s324 + $0x44] sm:$0xf]
        %v392 = vld [vmem:[#allocation5] sm:$0xff]
        %v393 = vld [vmem:[#allocation5 + $0x8] sm:$0xff]
        %v394 = vld [vmem:[#allocation5 + $0x10] sm:$0xff]
        %v395 = vld [vmem:[#allocation5 + $0x18] sm:$0xff]
        %v396 = vld [vmem:[#allocation5 + $0x20] sm:$0xf]
        %v397 = vld [vmem:[#allocation5 + $0x24] sm:$0xff]
        %v398 = vld [vmem:[#allocation5 + $0x2c] sm:$0xff]
        %v399 = vld [vmem:[#allocation5 + $0x34] sm:$0xff]
        %v400 = vld [vmem:[#allocation5 + $0x3c] sm:$0xff]
        %v401 = vld [vmem:[#allocation5 + $0x44] sm:$0xf]
        %v402 = vld [vmem:[#allocation5 + $0x48] sm:$0xff]
        %v403 = vld [vmem:[#allocation5 + $0x50] sm:$0xff]
        %v404 = vld [vmem:[#allocation5 + $0x58] sm:$0xff]
        %v405 = vld [vmem:[#allocation5 + $0x60] sm:$0xff]
        %v406 = vld [vmem:[#allocation5 + $0x68] sm:$0xf]
        %v407 = vld [vmem:[#allocation5 + $0x6c] sm:$0xff]
        %v408 = vld [vmem:[#allocation5 + $0x74] sm:$0xff]
        %v409 = vld [vmem:[#allocation5 + $0x7c] sm:$0xff]
        %v410 = vld [vmem:[#allocation5 + $0x84] sm:$0xff]
        %v411 = vld [vmem:[#allocation5 + $0x8c] sm:$0xf]
        %v412 = vld [vmem:[#allocation5 + $0x90] sm:$0xff]
        %v413 = vld [vmem:[#allocation5 + $0x98] sm:$0xff]
        %v414 = vld [vmem:[#allocation5 + $0xa0] sm:$0xff]
        %v415 = vld [vmem:[#allocation5 + $0xa8] sm:$0xff]
        %v416 = vld [vmem:[#allocation5 + $0xb0] sm:$0xf]
        %v417 = vld [vmem:[#allocation5 + $0xb4] sm:$0xff]
        %v418 = vld [vmem:[#allocation5 + $0xbc] sm:$0xff]
        %v419 = vld [vmem:[#allocation5 + $0xc4] sm:$0xff]
        %v420 = vld [vmem:[#allocation5 + $0xcc] sm:$0xff]
        %v421 = vld [vmem:[#allocation5 + $0xd4] sm:$0xf]
        %v422 = vld [vmem:[#allocation5 + $0xd8] sm:$0xff]
        %v423 = vld [vmem:[#allocation5 + $0xe0] sm:$0xff]
        %v424 = vld [vmem:[#allocation5 + $0xe8] sm:$0xff]
        %v425 = vld [vmem:[#allocation5 + $0xf0] sm:$0xff]
        %v426 = vld [vmem:[#allocation5 + $0xf8] sm:$0xf]
        %v427 = vld [vmem:[#allocation5 + $0xfc] sm:$0xff]
        %v428 = vld [vmem:[#allocation5 + $0x104] sm:$0xff]
        %v429 = vld [vmem:[#allocation5 + $0x10c] sm:$0xff]
        %v430 = vld [vmem:[#allocation5 + $0x114] sm:$0xff]
        %v431 = vld [vmem:[#allocation5 + $0x11c] sm:$0xf]
        %v432 = vld [vmem:[#allocation5 + $0x120] sm:$0xff]
        %v433 = vld [vmem:[#allocation5 + $0x128] sm:$0xff]
        %v434 = vld [vmem:[#allocation5 + $0x130] sm:$0xff]
        %v435 = vld [vmem:[#allocation5 + $0x138] sm:$0xff]
        %v436 = vld [vmem:[#allocation5 + $0x140] sm:$0xf]
        %v437 = vld [vmem:[#allocation5 + $0x144] sm:$0xff]
        %v438 = vld [vmem:[#allocation5 + $0x14c] sm:$0xff]
        %v439 = vld [vmem:[#allocation5 + $0x154] sm:$0xff]
        %v440 = vld [vmem:[#allocation5 + $0x15c] sm:$0xff]
        %v441 = vld [vmem:[#allocation5 + $0x164] sm:$0xf]
        %v442 = vld [vmem:[#allocation5 + $0x168] sm:$0xff]
        %v443 = vld [vmem:[#allocation5 + $0x170] sm:$0xff]
        %v444 = vld [vmem:[#allocation5 + $0x178] sm:$0xff]
        %v445 = vld [vmem:[#allocation5 + $0x180] sm:$0xff]
        %v446 = vld [vmem:[#allocation5 + $0x188] sm:$0xf]
        %v447 = vld [vmem:[#allocation5 + $0x18c] sm:$0xff]
        %v448 = vld [vmem:[#allocation5 + $0x194] sm:$0xff]
        %v449 = vld [vmem:[#allocation5 + $0x19c] sm:$0xff]
        %v450 = vld [vmem:[#allocation5 + $0x1a4] sm:$0xff]
        %v451 = vld [vmem:[#allocation5 + $0x1ac] sm:$0xf]
        %v452 = vld [vmem:[#allocation5 + $0x1b0] sm:$0xff]
        %v453 = vld [vmem:[#allocation5 + $0x1b8] sm:$0xff]
        %v454 = vld [vmem:[#allocation5 + $0x1c0] sm:$0xff]
        %v455 = vld [vmem:[#allocation5 + $0x1c8] sm:$0xff]
        %v456 = vld [vmem:[#allocation5 + $0x1d0] sm:$0xf]
        %v457 = vld [vmem:[#allocation5 + $0x1d4] sm:$0xff]
        %v458 = vld [vmem:[#allocation5 + $0x1dc] sm:$0xff]
        %v459 = vld [vmem:[#allocation5 + $0x1e4] sm:$0xff]
        %v460 = vld [vmem:[#allocation5 + $0x1ec] sm:$0xff]
        %v461 = vld [vmem:[#allocation5 + $0x1f4] sm:$0xf]
        %v462 = vld [vmem:[#allocation5 + $0x1f8] sm:$0xff]
        %v463 = vld [vmem:[#allocation5 + $0x200] sm:$0xff]
        %v464 = vld [vmem:[#allocation5 + $0x208] sm:$0xff]
        %v465 = vld [vmem:[#allocation5 + $0x210] sm:$0xff]
        %v466 = vld [vmem:[#allocation5 + $0x218] sm:$0xf]
        %v467 = vld [vmem:[#allocation5 + $0x21c] sm:$0xff]
        %v468 = vld [vmem:[#allocation5 + $0x224] sm:$0xff]
        %v469 = vld [vmem:[#allocation5 + $0x22c] sm:$0xff]
        %v470 = vld [vmem:[#allocation5 + $0x234] sm:$0xff]
        %v471 = vld [vmem:[#allocation5 + $0x23c] sm:$0xf]
        %v472 = vld [vmem:[#allocation5 + $0x240] sm:$0xff]
        %v473 = vld [vmem:[#allocation5 + $0x248] sm:$0xff]
        %v474 = vld [vmem:[#allocation5 + $0x250] sm:$0xff]
        %v475 = vld [vmem:[#allocation5 + $0x258] sm:$0xff]
        %v476 = vld [vmem:[#allocation5 + $0x260] sm:$0xf]
        %v477 = vld [vmem:[#allocation5 + $0x264] sm:$0xff]
        %v478 = vld [vmem:[#allocation5 + $0x26c] sm:$0xff]
        %v479 = vld [vmem:[#allocation5 + $0x274] sm:$0xff]
        %v480 = vld [vmem:[#allocation5 + $0x27c] sm:$0xff]
        %v481 = vld [vmem:[#allocation5 + $0x284] sm:$0xf]
        %v482 = vld [vmem:[#allocation5 + $0x288] sm:$0xff]
        %v483 = vld [vmem:[#allocation5 + $0x290] sm:$0xff]
        %v484 = vld [vmem:[#allocation5 + $0x298] sm:$0xff]
        %v485 = vld [vmem:[#allocation5 + $0x2a0] sm:$0xff]
        %v486 = vld [vmem:[#allocation5 + $0x2a8] sm:$0xf]
        %v487 = vld [vmem:[#allocation5 + $0x2ac] sm:$0xff]
        %v488 = vld [vmem:[#allocation5 + $0x2b4] sm:$0xff]
        %v489 = vld [vmem:[#allocation5 + $0x2bc] sm:$0xff]
        %v490 = vld [vmem:[#allocation5 + $0x2c4] sm:$0xff]
        %v491 = vld [vmem:[#allocation5 + $0x2cc] sm:$0xf]
        %v492 = vld [vmem:[#allocation5 + $0x2d0] sm:$0xff]
        %v493 = vld [vmem:[#allocation5 + $0x2d8] sm:$0xff]
        %v494 = vld [vmem:[#allocation5 + $0x2e0] sm:$0xff]
        %v495 = vld [vmem:[#allocation5 + $0x2e8] sm:$0xff]
        %v496 = vld [vmem:[#allocation5 + $0x2f0] sm:$0xf]
        %v497 = vld [vmem:[#allocation5 + $0x2f4] sm:$0xff]
        %v498 = vld [vmem:[#allocation5 + $0x2fc] sm:$0xff]
        %v499 = vld [vmem:[#allocation5 + $0x304] sm:$0xff]
        %v500 = vld [vmem:[#allocation5 + $0x30c] sm:$0xff]
        %v501 = vld [vmem:[#allocation5 + $0x314] sm:$0xf]
        %v502 = vld [vmem:[#allocation5 + $0x318] sm:$0xff]
        %v503 = vld [vmem:[#allocation5 + $0x320] sm:$0xff]
        %v504 = vld [vmem:[#allocation5 + $0x328] sm:$0xff]
        %v505 = vld [vmem:[#allocation5 + $0x330] sm:$0xff]
        %v506 = vld [vmem:[#allocation5 + $0x338] sm:$0xf]
        %v507 = vld [vmem:[#allocation5 + $0x33c] sm:$0xff]
        %v508 = vld [vmem:[#allocation5 + $0x344] sm:$0xff]
        %v509 = vld [vmem:[#allocation5 + $0x34c] sm:$0xff]
        %v510 = vld [vmem:[#allocation5 + $0x354] sm:$0xff]
        %v511 = vld [vmem:[#allocation5 + $0x35c] sm:$0xf]
        %v512 = vld [vmem:[#allocation5 + $0x360] sm:$0xff]
        %v513 = vld [vmem:[#allocation5 + $0x368] sm:$0xff]
        %v514 = vld [vmem:[#allocation5 + $0x370] sm:$0xff]
        %v515 = vld [vmem:[#allocation5 + $0x378] sm:$0xff]
        %v516 = vld [vmem:[#allocation5 + $0x380] sm:$0xf]
        %v517 = vld [vmem:[#allocation5 + $0x384] sm:$0xff]
        %v518 = vld [vmem:[#allocation5 + $0x38c] sm:$0xff]
        %v519 = vld [vmem:[#allocation5 + $0x394] sm:$0xff]
        %v520 = vld [vmem:[#allocation5 + $0x39c] sm:$0xff]
        %v521 = vld [vmem:[#allocation5 + $0x3a4] sm:$0xf]
        %v522 = vld [vmem:[#allocation5 + $0x3a8] sm:$0xff]
        %v523 = vld [vmem:[#allocation5 + $0x3b0] sm:$0xff]
        %v524 = vld [vmem:[#allocation5 + $0x3b8] sm:$0xff]
        %v525 = vld [vmem:[#allocation5 + $0x3c0] sm:$0xff]
        %v526 = vld [vmem:[#allocation5 + $0x3c8] sm:$0xf]
        %v527 = vld [vmem:[#allocation5 + $0x3cc] sm:$0xff]
        %v528 = vld [vmem:[#allocation5 + $0x3d4] sm:$0xff]
        %v529 = vld [vmem:[#allocation5 + $0x3dc] sm:$0xff]
        %v530 = vld [vmem:[#allocation5 + $0x3e4] sm:$0xff]
        %v531 = vld [vmem:[#allocation5 + $0x3ec] sm:$0xf]
        %v532 = vld [vmem:[#allocation5 + $0x3f0] sm:$0xff]
        %v533 = vld [vmem:[#allocation5 + $0x3f8] sm:$0xff]
        %v534 = vld [vmem:[#allocation5 + $0x400] sm:$0xff]
        %v535 = vld [vmem:[#allocation5 + $0x408] sm:$0xff]
        %v536 = vld [vmem:[#allocation5 + $0x410] sm:$0xf]
        %v537 = vld [vmem:[#allocation5 + $0x414] sm:$0xff]
        %v538 = vld [vmem:[#allocation5 + $0x41c] sm:$0xff]
        %v539 = vld [vmem:[#allocation5 + $0x424] sm:$0xff]
        %v540 = vld [vmem:[#allocation5 + $0x42c] sm:$0xff]
        %v541 = vld [vmem:[#allocation5 + $0x434] sm:$0xf]
        %v542 = vld [vmem:[#allocation5 + $0x438] sm:$0xff]
        %v543 = vld [vmem:[#allocation5 + $0x440] sm:$0xff]
        %v544 = vld [vmem:[#allocation5 + $0x448] sm:$0xff]
        %v545 = vld [vmem:[#allocation5 + $0x450] sm:$0xff]
        %v546 = vld [vmem:[#allocation5 + $0x458] sm:$0xf]
        %v547 = vld [vmem:[#allocation5 + $0x45c] sm:$0xff]
        %v548 = vld [vmem:[#allocation5 + $0x464] sm:$0xff]
        %v549 = vld [vmem:[#allocation5 + $0x46c] sm:$0xff]
        %v550 = vld [vmem:[#allocation5 + $0x474] sm:$0xff]
        %v551 = vld [vmem:[#allocation5 + $0x47c] sm:$0xf]
        %v552 = vld [vmem:[#allocation5 + $0x480] sm:$0xff]
        %v553 = vld [vmem:[#allocation5 + $0x488] sm:$0xff]
        %v554 = vld [vmem:[#allocation5 + $0x490] sm:$0xff]
        %v555 = vld [vmem:[#allocation5 + $0x498] sm:$0xff]
        %v556 = vld [vmem:[#allocation5 + $0x4a0] sm:$0xf]
        %v557 = vld [vmem:[#allocation5 + $0x4a4] sm:$0xff]
        %v558 = vld [vmem:[#allocation5 + $0x4ac] sm:$0xff]
        %v559 = vld [vmem:[#allocation5 + $0x4b4] sm:$0xff]
        %v560 = vld [vmem:[#allocation5 + $0x4bc] sm:$0xff]
        %v561 = vld [vmem:[#allocation5 + $0x4c4] sm:$0xf]
        %v562 = vld [vmem:[#allocation5 + $0x4c8] sm:$0xff]
        %v563 = vld [vmem:[#allocation5 + $0x4d0] sm:$0xff]
        %v564 = vld [vmem:[#allocation5 + $0x4d8] sm:$0xff]
        %v565 = vld [vmem:[#allocation5 + $0x4e0] sm:$0xff]
        %v566 = vld [vmem:[#allocation5 + $0x4e8] sm:$0xf]
        %v567 = vld [vmem:[#allocation5 + $0x4ec] sm:$0xff]
        %v568 = vld [vmem:[#allocation5 + $0x4f4] sm:$0xff]
        %v569 = vld [vmem:[#allocation5 + $0x4fc] sm:$0xff]
        %v570 = vld [vmem:[#allocation5 + $0x504] sm:$0xff]
        %v571 = vld [vmem:[#allocation5 + $0x50c] sm:$0xf]
        %v572 = vld [vmem:[#allocation5 + $0x510] sm:$0xff]
        %v573 = vld [vmem:[#allocation5 + $0x518] sm:$0xff]
        %v574 = vld [vmem:[#allocation5 + $0x520] sm:$0xff]
        %v575 = vld [vmem:[#allocation5 + $0x528] sm:$0xff]
        %v576 = vld [vmem:[#allocation5 + $0x530] sm:$0xf]
        %v577 = vld [vmem:[#allocation5 + $0x534] sm:$0xff]
        %v578 = vld [vmem:[#allocation5 + $0x53c] sm:$0xff]
        %v579 = vld [vmem:[#allocation5 + $0x544] sm:$0xff]
        %v580 = vld [vmem:[#allocation5 + $0x54c] sm:$0xff]
        %v581 = vld [vmem:[#allocation5 + $0x554] sm:$0xf]
        %v582 = vld [vmem:[#allocation5 + $0x558] sm:$0xff]
        %v583 = vld [vmem:[#allocation5 + $0x560] sm:$0xff]
        %v584 = vld [vmem:[#allocation5 + $0x568] sm:$0xff]
        %v585 = vld [vmem:[#allocation5 + $0x570] sm:$0xff]
        %v586 = vld [vmem:[#allocation5 + $0x578] sm:$0xf]
        %v587 = vld [vmem:[#allocation5 + $0x57c] sm:$0xff]
        %v588 = vld [vmem:[#allocation5 + $0x584] sm:$0xff]
        %v589 = vld [vmem:[#allocation5 + $0x58c] sm:$0xff]
        %v590 = vld [vmem:[#allocation5 + $0x594] sm:$0xff]
        %v591 = vld [vmem:[#allocation5 + $0x59c] sm:$0xf]
        %v592 = vld [vmem:[#allocation5 + $0x5a0] sm:$0xff]
        %v593 = vld [vmem:[#allocation5 + $0x5a8] sm:$0xff]
        %v594 = vld [vmem:[#allocation5 + $0x5b0] sm:$0xff]
        %v595 = vld [vmem:[#allocation5 + $0x5b8] sm:$0xff]
        %v596 = vld [vmem:[#allocation5 + $0x5c0] sm:$0xf]
        %v597 = vld [vmem:[#allocation5 + $0x5c4] sm:$0xff]
        %v598 = vld [vmem:[#allocation5 + $0x5cc] sm:$0xff]
        %v599 = vld [vmem:[#allocation5 + $0x5d4] sm:$0xff]
        %v600 = vld [vmem:[#allocation5 + $0x5dc] sm:$0xff]
        %v601 = vld [vmem:[#allocation5 + $0x5e4] sm:$0xf]
        %v602 = vld [vmem:[#allocation5 + $0x5e8] sm:$0xff]
        %v603 = vld [vmem:[#allocation5 + $0x5f0] sm:$0xff]
        %v604 = vld [vmem:[#allocation5 + $0x5f8] sm:$0xff]
        %v605 = vld [vmem:[#allocation5 + $0x600] sm:$0xff]
        %v606 = vld [vmem:[#allocation5 + $0x608] sm:$0xf]
        %v607 = vld [vmem:[#allocation5 + $0x60c] sm:$0xff]
        %v608 = vld [vmem:[#allocation5 + $0x614] sm:$0xff]
        %v609 = vld [vmem:[#allocation5 + $0x61c] sm:$0xff]
        %v610 = vld [vmem:[#allocation5 + $0x624] sm:$0xff]
        %v611 = vld [vmem:[#allocation5 + $0x62c] sm:$0xf]
        %v612 = vld [vmem:[#allocation5 + $0x630] sm:$0xff]
        %v613 = vld [vmem:[#allocation5 + $0x638] sm:$0xff]
        %v614 = vld [vmem:[#allocation5 + $0x640] sm:$0xff]
        %v615 = vld [vmem:[#allocation5 + $0x648] sm:$0xff]
        %v616 = vld [vmem:[#allocation5 + $0x650] sm:$0xf]
        %v617 = vld [vmem:[#allocation5 + $0x654] sm:$0xff]
        %v618 = vld [vmem:[#allocation5 + $0x65c] sm:$0xff]
        %v619 = vld [vmem:[#allocation5 + $0x664] sm:$0xff]
        %v620 = vld [vmem:[#allocation5 + $0x66c] sm:$0xff]
        %v621 = vld [vmem:[#allocation5 + $0x674] sm:$0xf]
        %v622 = vld [vmem:[#allocation5 + $0x678] sm:$0xff]
        %v623 = vld [vmem:[#allocation5 + $0x680] sm:$0xff]
        %v624 = vld [vmem:[#allocation5 + $0x688] sm:$0xff]
        %v625 = vld [vmem:[#allocation5 + $0x690] sm:$0xff]
        %v626 = vld [vmem:[#allocation5 + $0x698] sm:$0xf]
        %v627 = vld [vmem:[#allocation5 + $0x69c] sm:$0xff]
        %v628 = vld [vmem:[#allocation5 + $0x6a4] sm:$0xff]
        %v629 = vld [vmem:[#allocation5 + $0x6ac] sm:$0xff]
        %v630 = vld [vmem:[#allocation5 + $0x6b4] sm:$0xff]
        %v631 = vld [vmem:[#allocation5 + $0x6bc] sm:$0xf]
        %v632 = vld [vmem:[#allocation5 + $0x6c0] sm:$0xff]
        %v633 = vld [vmem:[#allocation5 + $0x6c8] sm:$0xff]
        %v634 = vld [vmem:[#allocation5 + $0x6d0] sm:$0xff]
        %v635 = vld [vmem:[#allocation5 + $0x6d8] sm:$0xff]
        %v636 = vld [vmem:[#allocation5 + $0x6e0] sm:$0xf]
        %v637 = vld [vmem:[#allocation5 + $0x6e4] sm:$0xff]
        %v638 = vld [vmem:[#allocation5 + $0x6ec] sm:$0xff]
        %v639 = vld [vmem:[#allocation5 + $0x6f4] sm:$0xff]
        %v640 = vld [vmem:[#allocation5 + $0x6fc] sm:$0xff]
        %v641 = vld [vmem:[#allocation5 + $0x704] sm:$0xf]
        %v642 = vld [vmem:[#allocation5 + $0x708] sm:$0xff]
        %v643 = vld [vmem:[#allocation5 + $0x710] sm:$0xff]
        %v644 = vld [vmem:[#allocation5 + $0x718] sm:$0xff]
        %v645 = vld [vmem:[#allocation5 + $0x720] sm:$0xff]
        %v646 = vld [vmem:[#allocation5 + $0x728] sm:$0xf]
        %v647 = vld [vmem:[#allocation5 + $0x72c] sm:$0xff]
        %v648 = vld [vmem:[#allocation5 + $0x734] sm:$0xff]
        %v649 = vld [vmem:[#allocation5 + $0x73c] sm:$0xff]
        %v650 = vld [vmem:[#allocation5 + $0x744] sm:$0xff]
        %v651 = vld [vmem:[#allocation5 + $0x74c] sm:$0xf]
        %v652 = vld [vmem:[#allocation5 + $0x750] sm:$0xff]
        %v653 = vld [vmem:[#allocation5 + $0x758] sm:$0xff]
        %v654 = vld [vmem:[#allocation5 + $0x760] sm:$0xff]
        %v655 = vld [vmem:[#allocation5 + $0x768] sm:$0xff]
        %v656 = vld [vmem:[#allocation5 + $0x770] sm:$0xf]
        %v657 = vld [vmem:[#allocation5 + $0x774] sm:$0xff]
        %v658 = vld [vmem:[#allocation5 + $0x77c] sm:$0xff]
        %v659 = vld [vmem:[#allocation5 + $0x784] sm:$0xff]
        %v660 = vld [vmem:[#allocation5 + $0x78c] sm:$0xff]
        %v661 = vld [vmem:[#allocation5 + $0x794] sm:$0xf]
        %v662 = vld [vmem:[#allocation5 + $0x798] sm:$0xff]
        %v663 = vld [vmem:[#allocation5 + $0x7a0] sm:$0xff]
        %v664 = vld [vmem:[#allocation5 + $0x7a8] sm:$0xff]
        %v665 = vld [vmem:[#allocation5 + $0x7b0] sm:$0xff]
        %v666 = vld [vmem:[#allocation5 + $0x7b8] sm:$0xf]
        %v667 = vld [vmem:[#allocation5 + $0x7bc] sm:$0xff]
        %v668 = vld [vmem:[#allocation5 + $0x7c4] sm:$0xff]
        %v669 = vld [vmem:[#allocation5 + $0x7cc] sm:$0xff]
        %v670 = vld [vmem:[#allocation5 + $0x7d4] sm:$0xff]
        %v671 = vld [vmem:[#allocation5 + $0x7dc] sm:$0xf]
        %v672 = vld [vmem:[#allocation5 + $0x7e0] sm:$0xff]
        %v673 = vld [vmem:[#allocation5 + $0x7e8] sm:$0xff]
        %v674 = vld [vmem:[#allocation5 + $0x7f0] sm:$0xff]
        %v675 = vld [vmem:[#allocation5 + $0x7f8] sm:$0xff]
        %v676 = vld [vmem:[#allocation5 + $0x800] sm:$0xf]
        %v677 = vld [vmem:[#allocation5 + $0x804] sm:$0xff]
        %v678 = vld [vmem:[#allocation5 + $0x80c] sm:$0xff]
        %v679 = vld [vmem:[#allocation5 + $0x814] sm:$0xff]
        %v680 = vld [vmem:[#allocation5 + $0x81c] sm:$0xff]
        %v681 = vld [vmem:[#allocation5 + $0x824] sm:$0xf]
        %v682 = vld [vmem:[#allocation5 + $0x828] sm:$0xff]
        %v683 = vld [vmem:[#allocation5 + $0x830] sm:$0xff]
        %v684 = vld [vmem:[#allocation5 + $0x838] sm:$0xff]
        %v685 = vld [vmem:[#allocation5 + $0x840] sm:$0xff]
        %v686 = vld [vmem:[#allocation5 + $0x848] sm:$0xf]
        %v687 = vld [vmem:[#allocation5 + $0x84c] sm:$0xff]
        %v688 = vld [vmem:[#allocation5 + $0x854] sm:$0xff]
        %v689 = vld [vmem:[#allocation5 + $0x85c] sm:$0xff]
        %v690 = vld [vmem:[#allocation5 + $0x864] sm:$0xff]
        %v691 = vld [vmem:[#allocation5 + $0x86c] sm:$0xf]
        %v692 = vld [vmem:[#allocation5 + $0x870] sm:$0xff]
        %v693 = vld [vmem:[#allocation5 + $0x878] sm:$0xff]
        %v694 = vld [vmem:[#allocation5 + $0x880] sm:$0xff]
        %v695 = vld [vmem:[#allocation5 + $0x888] sm:$0xff]
        %v696 = vld [vmem:[#allocation5 + $0x890] sm:$0xf]
        %v697 = vld [vmem:[#allocation5 + $0x894] sm:$0xff]
        %v698 = vld [vmem:[#allocation5 + $0x89c] sm:$0xff]
        %v699 = vld [vmem:[#allocation5 + $0x8a4] sm:$0xff]
        %v700 = vld [vmem:[#allocation5 + $0x8ac] sm:$0xff]
        %v701 = vld [vmem:[#allocation5 + $0x8b4] sm:$0xf]
        %v702 = vld [vmem:[#allocation5 + $0x8b8] sm:$0xff]
        %v703 = vld [vmem:[#allocation5 + $0x8c0] sm:$0xff]
        %v704 = vld [vmem:[#allocation5 + $0x8c8] sm:$0xff]
        %v705 = vld [vmem:[#allocation5 + $0x8d0] sm:$0xff]
        %v706 = vld [vmem:[#allocation5 + $0x8d8] sm:$0xf]
        %v707 = vld [vmem:[#allocation5 + $0x8dc] sm:$0xff]
        %v708 = vld [vmem:[#allocation5 + $0x8e4] sm:$0xff]
        %v709 = vld [vmem:[#allocation5 + $0x8ec] sm:$0xff]
        %v710 = vld [vmem:[#allocation5 + $0x8f4] sm:$0xff]
        %v711 = vld [vmem:[#allocation5 + $0x8fc] sm:$0xf]
        %v712 = vld [vmem:[#allocation5 + $0x900] sm:$0xff]
        %v713 = vld [vmem:[#allocation5 + $0x908] sm:$0xff]
        %v714 = vld [vmem:[#allocation5 + $0x910] sm:$0xff]
        %v715 = vld [vmem:[#allocation5 + $0x918] sm:$0xff]
        %v716 = vld [vmem:[#allocation5 + $0x920] sm:$0xf]
        %v717 = vld [vmem:[#allocation5 + $0x924] sm:$0xff]
        %v718 = vld [vmem:[#allocation5 + $0x92c] sm:$0xff]
        %v719 = vld [vmem:[#allocation5 + $0x934] sm:$0xff]
        %v720 = vld [vmem:[#allocation5 + $0x93c] sm:$0xff]
        %v721 = vld [vmem:[#allocation5 + $0x944] sm:$0xf]
        %v722 = vld [vmem:[#allocation5 + $0x948] sm:$0xff]
        %v723 = vld [vmem:[#allocation5 + $0x950] sm:$0xff]
        %v724 = vld [vmem:[#allocation5 + $0x958] sm:$0xff]
        %v725 = vld [vmem:[#allocation5 + $0x960] sm:$0xff]
        %v726 = vld [vmem:[#allocation5 + $0x968] sm:$0xf]
        %v727 = vld [vmem:[#allocation5 + $0x96c] sm:$0xff]
        %v728 = vld [vmem:[#allocation5 + $0x974] sm:$0xff]
        %v729 = vld [vmem:[#allocation5 + $0x97c] sm:$0xff]
        %v730 = vld [vmem:[#allocation5 + $0x984] sm:$0xff]
        %v731 = vld [vmem:[#allocation5 + $0x98c] sm:$0xf]
        %v732 = vld [vmem:[#allocation5 + $0x990] sm:$0xff]
        %v733 = vld [vmem:[#allocation5 + $0x998] sm:$0xff]
        %v734 = vld [vmem:[#allocation5 + $0x9a0] sm:$0xff]
        %v735 = vld [vmem:[#allocation5 + $0x9a8] sm:$0xff]
        %v736 = vld [vmem:[#allocation5 + $0x9b0] sm:$0xf]
        %v737 = vld [vmem:[#allocation5 + $0x9b4] sm:$0xff]
        %v738 = vld [vmem:[#allocation5 + $0x9bc] sm:$0xff]
        %v739 = vld [vmem:[#allocation5 + $0x9c4] sm:$0xff]
        %v740 = vld [vmem:[#allocation5 + $0x9cc] sm:$0xff]
        %v741 = vld [vmem:[#allocation5 + $0x9d4] sm:$0xf]
        %v742 = vld [vmem:[#allocation5 + $0x9d8] sm:$0xff]
        %v743 = vld [vmem:[#allocation5 + $0x9e0] sm:$0xff]
        %v744 = vld [vmem:[#allocation5 + $0x9e8] sm:$0xff]
        %v745 = vld [vmem:[#allocation5 + $0x9f0] sm:$0xff]
        %v746 = vld [vmem:[#allocation5 + $0x9f8] sm:$0xf]
        %v747 = vld [vmem:[#allocation5 + $0x9fc] sm:$0xff]
        %v748 = vld [vmem:[#allocation5 + $0xa04] sm:$0xff]
        %v749 = vld [vmem:[#allocation5 + $0xa0c] sm:$0xff]
        %v750 = vld [vmem:[#allocation5 + $0xa14] sm:$0xff]
        %v751 = vld [vmem:[#allocation5 + $0xa1c] sm:$0xf]
        %v752 = vld [vmem:[#allocation5 + $0xa20] sm:$0xff]
        %v753 = vld [vmem:[#allocation5 + $0xa28] sm:$0xff]
        %v754 = vld [vmem:[#allocation5 + $0xa30] sm:$0xff]
        %v755 = vld [vmem:[#allocation5 + $0xa38] sm:$0xff]
        %v756 = vld [vmem:[#allocation5 + $0xa40] sm:$0xf]
        %v757 = vld [vmem:[#allocation5 + $0xa44] sm:$0xff]
        %v758 = vld [vmem:[#allocation5 + $0xa4c] sm:$0xff]
        %v759 = vld [vmem:[#allocation5 + $0xa54] sm:$0xff]
        %v760 = vld [vmem:[#allocation5 + $0xa5c] sm:$0xff]
        %v761 = vld [vmem:[#allocation5 + $0xa64] sm:$0xf]
        %v762 = vld [vmem:[#allocation5 + $0xa68] sm:$0xff]
        %v763 = vld [vmem:[#allocation5 + $0xa70] sm:$0xff]
        %v764 = vld [vmem:[#allocation5 + $0xa78] sm:$0xff]
        %v765 = vld [vmem:[#allocation5 + $0xa80] sm:$0xff]
        %v766 = vld [vmem:[#allocation5 + $0xa88] sm:$0xf]
        %v767 = vld [vmem:[#allocation5 + $0xa8c] sm:$0xff]
        %v768 = vld [vmem:[#allocation5 + $0xa94] sm:$0xff]
        %v769 = vld [vmem:[#allocation5 + $0xa9c] sm:$0xff]
        %v770 = vld [vmem:[#allocation5 + $0xaa4] sm:$0xff]
        %v771 = vld [vmem:[#allocation5 + $0xaac] sm:$0xf]
        %v772 = vld [vmem:[#allocation5 + $0xab0] sm:$0xff]
        %v773 = vld [vmem:[#allocation5 + $0xab8] sm:$0xff]
        %v774 = vld [vmem:[#allocation5 + $0xac0] sm:$0xff]
        %v775 = vld [vmem:[#allocation5 + $0xac8] sm:$0xff]
        %v776 = vld [vmem:[#allocation5 + $0xad0] sm:$0xf]
        %v777 = vld [vmem:[#allocation5 + $0xad4] sm:$0xff]
        %v778 = vld [vmem:[#allocation5 + $0xadc] sm:$0xff]
        %v779 = vld [vmem:[#allocation5 + $0xae4] sm:$0xff]
        %v780 = vld [vmem:[#allocation5 + $0xaec] sm:$0xff]
        %v781 = vld [vmem:[#allocation5 + $0xaf4] sm:$0xf]
        %v782 = vld [vmem:[#allocation5 + $0xaf8] sm:$0xff]
        %v783 = vld [vmem:[#allocation5 + $0xb00] sm:$0xff]
        %v784 = vld [vmem:[#allocation5 + $0xb08] sm:$0xff]
        %v785 = vld [vmem:[#allocation5 + $0xb10] sm:$0xff]
        %v786 = vld [vmem:[#allocation5 + $0xb18] sm:$0xf]
        %v787 = vld [vmem:[#allocation5 + $0xb1c] sm:$0xff]
        %v788 = vld [vmem:[#allocation5 + $0xb24] sm:$0xff]
        %v789 = vld [vmem:[#allocation5 + $0xb2c] sm:$0xff]
        %v790 = vld [vmem:[#allocation5 + $0xb34] sm:$0xff]
        %v791 = vld [vmem:[#allocation5 + $0xb3c] sm:$0xf]
        %v792 = vld [vmem:[#allocation5 + $0xb40] sm:$0xff]
        %v793 = vld [vmem:[#allocation5 + $0xb48] sm:$0xff]
        %v794 = vld [vmem:[#allocation5 + $0xb50] sm:$0xff]
        %v795 = vld [vmem:[#allocation5 + $0xb58] sm:$0xff]
        %v796 = vld [vmem:[#allocation5 + $0xb60] sm:$0xf]
        %v797 = vld [vmem:[#allocation5 + $0xb64] sm:$0xff]
        %v798 = vld [vmem:[#allocation5 + $0xb6c] sm:$0xff]
        %v799 = vld [vmem:[#allocation5 + $0xb74] sm:$0xff]
        %v800 = vld [vmem:[#allocation5 + $0xb7c] sm:$0xff]
        %v801 = vld [vmem:[#allocation5 + $0xb84] sm:$0xf]
        %v802 = vld [vmem:[#allocation5 + $0xb88] sm:$0xff]
        %v803 = vld [vmem:[#allocation5 + $0xb90] sm:$0xff]
        %v804 = vld [vmem:[#allocation5 + $0xb98] sm:$0xff]
        %v805 = vld [vmem:[#allocation5 + $0xba0] sm:$0xff]
        %v806 = vld [vmem:[#allocation5 + $0xba8] sm:$0xf]
        %v807 = vld [vmem:[#allocation5 + $0xbac] sm:$0xff]
        %v808 = vld [vmem:[#allocation5 + $0xbb4] sm:$0xff]
        %v809 = vld [vmem:[#allocation5 + $0xbbc] sm:$0xff]
        %v810 = vld [vmem:[#allocation5 + $0xbc4] sm:$0xff]
        %v811 = vld [vmem:[#allocation5 + $0xbcc] sm:$0xf]
        %v812 = vld [vmem:[#allocation5 + $0xbd0] sm:$0xff]
        %v813 = vld [vmem:[#allocation5 + $0xbd8] sm:$0xff]
        %v814 = vld [vmem:[#allocation5 + $0xbe0] sm:$0xff]
        %v815 = vld [vmem:[#allocation5 + $0xbe8] sm:$0xff]
        %v816 = vld [vmem:[#allocation5 + $0xbf0] sm:$0xf]
        %v817 = vld [vmem:[#allocation5 + $0xbf4] sm:$0xff]
        %v818 = vld [vmem:[#allocation5 + $0xbfc] sm:$0xff]
        %v819 = vld [vmem:[#allocation5 + $0xc04] sm:$0xff]
        %v820 = vld [vmem:[#allocation5 + $0xc0c] sm:$0xff]
        %v821 = vld [vmem:[#allocation5 + $0xc14] sm:$0xf]
        %v822 = vld [vmem:[#allocation5 + $0xc18] sm:$0xff]
        %v823 = vld [vmem:[#allocation5 + $0xc20] sm:$0xff]
        %v824 = vld [vmem:[#allocation5 + $0xc28] sm:$0xff]
        %v825 = vld [vmem:[#allocation5 + $0xc30] sm:$0xff]
        %v826 = vld [vmem:[#allocation5 + $0xc38] sm:$0xf]
        %v827 = vld [vmem:[#allocation5 + $0xc3c] sm:$0xff]
        %v828 = vld [vmem:[#allocation5 + $0xc44] sm:$0xff]
        %v829 = vld [vmem:[#allocation5 + $0xc4c] sm:$0xff]
        %v830 = vld [vmem:[#allocation5 + $0xc54] sm:$0xff]
        %v831 = vld [vmem:[#allocation5 + $0xc5c] sm:$0xf]
        %v832 = vld [vmem:[#allocation5 + $0xc60] sm:$0xff]
        %v833 = vld [vmem:[#allocation5 + $0xc68] sm:$0xff]
        %v834 = vld [vmem:[#allocation5 + $0xc70] sm:$0xff]
        %v835 = vld [vmem:[#allocation5 + $0xc78] sm:$0xff]
        %v836 = vld [vmem:[#allocation5 + $0xc80] sm:$0xf]
        %v837 = vld [vmem:[#allocation5 + $0xc84] sm:$0xff]
        %v838 = vld [vmem:[#allocation5 + $0xc8c] sm:$0xff]
        %v839 = vld [vmem:[#allocation5 + $0xc94] sm:$0xff]
        %v840 = vld [vmem:[#allocation5 + $0xc9c] sm:$0xff]
        %v841 = vld [vmem:[#allocation5 + $0xca4] sm:$0xf]
        %v842 = vld [vmem:[#allocation5 + $0xca8] sm:$0xff]
        %v843 = vld [vmem:[#allocation5 + $0xcb0] sm:$0xff]
        %v844 = vld [vmem:[#allocation5 + $0xcb8] sm:$0xff]
        %v845 = vld [vmem:[#allocation5 + $0xcc0] sm:$0xff]
        %v846 = vld [vmem:[#allocation5 + $0xcc8] sm:$0xf]
        %v847 = vld [vmem:[#allocation5 + $0xccc] sm:$0xff]
        %v848 = vld [vmem:[#allocation5 + $0xcd4] sm:$0xff]
        %v849 = vld [vmem:[#allocation5 + $0xcdc] sm:$0xff]
        %v850 = vld [vmem:[#allocation5 + $0xce4] sm:$0xff]
        %v851 = vld [vmem:[#allocation5 + $0xcec] sm:$0xf]
        %v852 = vld [vmem:[#allocation5 + $0xcf0] sm:$0xff]
        %v853 = vld [vmem:[#allocation5 + $0xcf8] sm:$0xff]
        %v854 = vld [vmem:[#allocation5 + $0xd00] sm:$0xff]
        %v855 = vld [vmem:[#allocation5 + $0xd08] sm:$0xff]
        %v856 = vld [vmem:[#allocation5 + $0xd10] sm:$0xf]
        %v857 = vld [vmem:[#allocation5 + $0xd14] sm:$0xff]
        %v858 = vld [vmem:[#allocation5 + $0xd1c] sm:$0xff]
        %v859 = vld [vmem:[#allocation5 + $0xd24] sm:$0xff]
        %v860 = vld [vmem:[#allocation5 + $0xd2c] sm:$0xff]
        %v861 = vld [vmem:[#allocation5 + $0xd34] sm:$0xf]
        %v862 = vld [vmem:[#allocation5 + $0xd38] sm:$0xff]
        %v863 = vld [vmem:[#allocation5 + $0xd40] sm:$0xff]
        %v864 = vld [vmem:[#allocation5 + $0xd48] sm:$0xff]
        %v865 = vld [vmem:[#allocation5 + $0xd50] sm:$0xff]
        %v866 = vld [vmem:[#allocation5 + $0xd58] sm:$0xf]
        %v867 = vld [vmem:[#allocation5 + $0xd5c] sm:$0xff]
        %v868 = vld [vmem:[#allocation5 + $0xd64] sm:$0xff]
        %v869 = vld [vmem:[#allocation5 + $0xd6c] sm:$0xff]
        %v870 = vld [vmem:[#allocation5 + $0xd74] sm:$0xff]
        %v871 = vld [vmem:[#allocation5 + $0xd7c] sm:$0xf]
        %v872 = vld [vmem:[#allocation5 + $0xd80] sm:$0xff]
        %v873 = vld [vmem:[#allocation5 + $0xd88] sm:$0xff]
        %v874 = vld [vmem:[#allocation5 + $0xd90] sm:$0xff]
        %v875 = vld [vmem:[#allocation5 + $0xd98] sm:$0xff]
        %v876 = vld [vmem:[#allocation5 + $0xda0] sm:$0xf]
        %v877 = vld [vmem:[#allocation5 + $0xda4] sm:$0xff]
        %v878 = vld [vmem:[#allocation5 + $0xdac] sm:$0xff]
        %v879 = vld [vmem:[#allocation5 + $0xdb4] sm:$0xff]
        %v880 = vld [vmem:[#allocation5 + $0xdbc] sm:$0xff]
        %v881 = vld [vmem:[#allocation5 + $0xdc4] sm:$0xf]
        %v882 = vld [vmem:[#allocation5 + $0xdc8] sm:$0xff]
        %v883 = vld [vmem:[#allocation5 + $0xdd0] sm:$0xff]
        %v884 = vld [vmem:[#allocation5 + $0xdd8] sm:$0xff]
        %v885 = vld [vmem:[#allocation5 + $0xde0] sm:$0xff]
        %v886 = vld [vmem:[#allocation5 + $0xde8] sm:$0xf]
        %v887 = vld [vmem:[#allocation5 + $0xdec] sm:$0xff]
        %v888 = vld [vmem:[#allocation5 + $0xdf4] sm:$0xff]
        %v889 = vld [vmem:[#allocation5 + $0xdfc] sm:$0xff]
        %v890 = vld [vmem:[#allocation5 + $0xe04] sm:$0xff]
        %v891 = vld [vmem:[#allocation5 + $0xe0c] sm:$0xf]
        %v892 = vld [vmem:[#allocation5 + $0xe10] sm:$0xff]
        %v893 = vld [vmem:[#allocation5 + $0xe18] sm:$0xff]
        %v894 = vld [vmem:[#allocation5 + $0xe20] sm:$0xff]
        %v895 = vld [vmem:[#allocation5 + $0xe28] sm:$0xff]
        %v896 = vld [vmem:[#allocation5 + $0xe30] sm:$0xf]
        %v897 = vld [vmem:[#allocation5 + $0xe34] sm:$0xff]
        %v898 = vld [vmem:[#allocation5 + $0xe3c] sm:$0xff]
        %v899 = vld [vmem:[#allocation5 + $0xe44] sm:$0xff]
        %v900 = vld [vmem:[#allocation5 + $0xe4c] sm:$0xff]
        %v901 = vld [vmem:[#allocation5 + $0xe54] sm:$0xf]
        %v902 = vld [vmem:[#allocation5 + $0xe58] sm:$0xff]
        %v903 = vld [vmem:[#allocation5 + $0xe60] sm:$0xff]
        %v904 = vld [vmem:[#allocation5 + $0xe68] sm:$0xff]
        %v905 = vld [vmem:[#allocation5 + $0xe70] sm:$0xff]
        %v906 = vld [vmem:[#allocation5 + $0xe78] sm:$0xf]
        %v907 = vld [vmem:[#allocation5 + $0xe7c] sm:$0xff]
        %v908 = vld [vmem:[#allocation5 + $0xe84] sm:$0xff]
        %v909 = vld [vmem:[#allocation5 + $0xe8c] sm:$0xff]
        %v910 = vld [vmem:[#allocation5 + $0xe94] sm:$0xff]
        %v911 = vld [vmem:[#allocation5 + $0xe9c] sm:$0xf]
        %v912 = vld [vmem:[#allocation5 + $0xea0] sm:$0xff]
        %v913 = vld [vmem:[#allocation5 + $0xea8] sm:$0xff]
        %v914 = vld [vmem:[#allocation5 + $0xeb0] sm:$0xff]
        %v915 = vld [vmem:[#allocation5 + $0xeb8] sm:$0xff]
        %v916 = vld [vmem:[#allocation5 + $0xec0] sm:$0xf]
        %v917 = vld [vmem:[#allocation5 + $0xec4] sm:$0xff]
        %v918 = vld [vmem:[#allocation5 + $0xecc] sm:$0xff]
        %v919 = vld [vmem:[#allocation5 + $0xed4] sm:$0xff]
        %v920 = vld [vmem:[#allocation5 + $0xedc] sm:$0xff]
        %v921 = vld [vmem:[#allocation5 + $0xee4] sm:$0xf]
        %v922 = vld [vmem:[#allocation5 + $0xee8] sm:$0xff]
        %v923 = vld [vmem:[#allocation5 + $0xef0] sm:$0xff]
        %v924 = vld [vmem:[#allocation5 + $0xef8] sm:$0xff]
        %v925 = vld [vmem:[#allocation5 + $0xf00] sm:$0xff]
        %v926 = vld [vmem:[#allocation5 + $0xf08] sm:$0xf]
        %v927 = vld [vmem:[#allocation5 + $0xf0c] sm:$0xff]
        %v928 = vld [vmem:[#allocation5 + $0xf14] sm:$0xff]
        %v929 = vld [vmem:[#allocation5 + $0xf1c] sm:$0xff]
        %v930 = vld [vmem:[#allocation5 + $0xf24] sm:$0xff]
        %v931 = vld [vmem:[#allocation5 + $0xf2c] sm:$0xf]
        %v932 = vld [vmem:[#allocation5 + $0xf30] sm:$0xff]
        %v933 = vld [vmem:[#allocation5 + $0xf38] sm:$0xff]
        %v934 = vld [vmem:[#allocation5 + $0xf40] sm:$0xff]
        %v935 = vld [vmem:[#allocation5 + $0xf48] sm:$0xff]
        %v936 = vld [vmem:[#allocation5 + $0xf50] sm:$0xf]
        %v937 = vld [vmem:[#allocation5 + $0xf54] sm:$0xff]
        %v938 = vld [vmem:[#allocation5 + $0xf5c] sm:$0xff]
        %v939 = vld [vmem:[#allocation5 + $0xf64] sm:$0xff]
        %v940 = vld [vmem:[#allocation5 + $0xf6c] sm:$0xff]
        %v941 = vld [vmem:[#allocation5 + $0xf74] sm:$0xf]
        %v942 = vld [vmem:[#allocation5 + $0xf78] sm:$0xff]
        %v943 = vld [vmem:[#allocation5 + $0xf80] sm:$0xff]
        %v944 = vld [vmem:[#allocation5 + $0xf88] sm:$0xff]
        %v945 = vld [vmem:[#allocation5 + $0xf90] sm:$0xff]
        %v946 = vld [vmem:[#allocation5 + $0xf98] sm:$0xf]
        %v947 = vld [vmem:[#allocation5 + $0xf9c] sm:$0xff]
        %v948 = vld [vmem:[#allocation5 + $0xfa4] sm:$0xff]
        %v949 = vld [vmem:[#allocation5 + $0xfac] sm:$0xff]
        %v950 = vld [vmem:[#allocation5 + $0xfb4] sm:$0xff]
        %v951 = vld [vmem:[#allocation5 + $0xfbc] sm:$0xf]
        %v952 = vld [vmem:[#allocation5 + $0xfc0] sm:$0xff]
        %v953 = vld [vmem:[#allocation5 + $0xfc8] sm:$0xff]
        %v954 = vld [vmem:[#allocation5 + $0xfd0] sm:$0xff]
        %v955 = vld [vmem:[#allocation5 + $0xfd8] sm:$0xff]
        %v956 = vld [vmem:[#allocation5 + $0xfe0] sm:$0xf]
        %v957 = vld [vmem:[#allocation5 + $0xfe4] sm:$0xff]
        %v958 = vld [vmem:[#allocation5 + $0xfec] sm:$0xff]
        %v959 = vld [vmem:[#allocation5 + $0xff4] sm:$0xff]
        %v960 = vld [vmem:[#allocation5 + $0xffc] sm:$0xff]
        %v961 = vld [vmem:[#allocation5 + $0x1004] sm:$0xf]
        %v962 = vld [vmem:[#allocation5 + $0x1008] sm:$0xff]
        %v963 = vld [vmem:[#allocation5 + $0x1010] sm:$0xff]
        %v964 = vld [vmem:[#allocation5 + $0x1018] sm:$0xff]
        %v965 = vld [vmem:[#allocation5 + $0x1020] sm:$0xff]
        %v966 = vld [vmem:[#allocation5 + $0x1028] sm:$0xf]
        %v967 = vld [vmem:[#allocation5 + $0x102c] sm:$0xff]
        %v968 = vld [vmem:[#allocation5 + $0x1034] sm:$0xff]
        %v969 = vld [vmem:[#allocation5 + $0x103c] sm:$0xff]
        %v970 = vld [vmem:[#allocation5 + $0x1044] sm:$0xff]
        %v971 = vld [vmem:[#allocation5 + $0x104c] sm:$0xf]
        %v972 = vld [vmem:[#allocation5 + $0x1050] sm:$0xff]
        %v973 = vld [vmem:[#allocation5 + $0x1058] sm:$0xff]
        %v974 = vld [vmem:[#allocation5 + $0x1060] sm:$0xff]
        %v975 = vld [vmem:[#allocation5 + $0x1068] sm:$0xff]
        %v976 = vld [vmem:[#allocation5 + $0x1070] sm:$0xf]
        %v977 = vld [vmem:[#allocation5 + $0x1074] sm:$0xff]
        %v978 = vld [vmem:[#allocation5 + $0x107c] sm:$0xff]
        %v979 = vld [vmem:[#allocation5 + $0x1084] sm:$0xff]
        %v980 = vld [vmem:[#allocation5 + $0x108c] sm:$0xff]
        %v981 = vld [vmem:[#allocation5 + $0x1094] sm:$0xf]
        %v982 = vld [vmem:[#allocation5 + $0x1098] sm:$0xff]
        %v983 = vld [vmem:[#allocation5 + $0x10a0] sm:$0xff]
        %v984 = vld [vmem:[#allocation5 + $0x10a8] sm:$0xff]
        %v985 = vld [vmem:[#allocation5 + $0x10b0] sm:$0xff]
        %v986 = vld [vmem:[#allocation5 + $0x10b8] sm:$0xf]
        %v987 = vld [vmem:[#allocation5 + $0x10bc] sm:$0xff]
        %v988 = vld [vmem:[#allocation5 + $0x10c4] sm:$0xff]
        %v989 = vld [vmem:[#allocation5 + $0x10cc] sm:$0xff]
        %v990 = vld [vmem:[#allocation5 + $0x10d4] sm:$0xff]
        %v991 = vld [vmem:[#allocation5 + $0x10dc] sm:$0xf]
        %v992 = vld [vmem:[#allocation5 + $0x10e0] sm:$0xff]
        %v993 = vld [vmem:[#allocation5 + $0x10e8] sm:$0xff]
        %v994 = vld [vmem:[#allocation5 + $0x10f0] sm:$0xff]
        %v995 = vld [vmem:[#allocation5 + $0x10f8] sm:$0xff]
        %v996 = vld [vmem:[#allocation5 + $0x1100] sm:$0xf]
        %v997 = vld [vmem:[#allocation5 + $0x1104] sm:$0xff]
        %v998 = vld [vmem:[#allocation5 + $0x110c] sm:$0xff]
        %v999 = vld [vmem:[#allocation5 + $0x1114] sm:$0xff]
        %v1000 = vld [vmem:[#allocation5 + $0x111c] sm:$0xff]
        %v1001 = vld [vmem:[#allocation5 + $0x1124] sm:$0xf]
        %v1002 = vld [vmem:[#allocation5 + $0x1128] sm:$0xff]
        %v1003 = vld [vmem:[#allocation5 + $0x1130] sm:$0xff]
        %v1004 = vld [vmem:[#allocation5 + $0x1138] sm:$0xff]
        %v1005 = vld [vmem:[#allocation5 + $0x1140] sm:$0xff]
        %v1006 = vld [vmem:[#allocation5 + $0x1148] sm:$0xf]
        %v1007 = vld [vmem:[#allocation5 + $0x114c] sm:$0xff]
        %v1008 = vld [vmem:[#allocation5 + $0x1154] sm:$0xff]
        %v1009 = vld [vmem:[#allocation5 + $0x115c] sm:$0xff]
        %v1010 = vld [vmem:[#allocation5 + $0x1164] sm:$0xff]
        %v1011 = vld [vmem:[#allocation5 + $0x116c] sm:$0xf]
        %v1012 = vld [vmem:[#allocation5 + $0x1170] sm:$0xff]
        %v1013 = vld [vmem:[#allocation5 + $0x1178] sm:$0xff]
        %v1014 = vld [vmem:[#allocation5 + $0x1180] sm:$0xff]
        %v1015 = vld [vmem:[#allocation5 + $0x1188] sm:$0xff]
        %v1016 = vld [vmem:[#allocation5 + $0x1190] sm:$0xf]
        %v1017 = vld [vmem:[#allocation5 + $0x1194] sm:$0xff]
        %v1018 = vld [vmem:[#allocation5 + $0x119c] sm:$0xff]
        %v1019 = vld [vmem:[#allocation5 + $0x11a4] sm:$0xff]
        %v1020 = vld [vmem:[#allocation5 + $0x11ac] sm:$0xff]
        %v1021 = vld [vmem:[#allocation5 + $0x11b4] sm:$0xf]
        %v1022 = vld [vmem:[#allocation5 + $0x11b8] sm:$0xff]
        %v1023 = vld [vmem:[#allocation5 + $0x11c0] sm:$0xff]
        %v1024 = vld [vmem:[#allocation5 + $0x11c8] sm:$0xff]
        %v1025 = vld [vmem:[#allocation5 + $0x11d0] sm:$0xff]
        %v1026 = vld [vmem:[#allocation5 + $0x11d8] sm:$0xf]
        %v1027 = vld [vmem:[#allocation5 + $0x11dc] sm:$0xff]
        %v1028 = vld [vmem:[#allocation5 + $0x11e4] sm:$0xff]
        %v1029 = vld [vmem:[#allocation5 + $0x11ec] sm:$0xff]
        %v1030 = vld [vmem:[#allocation5 + $0x11f4] sm:$0xff]
        %v1031 = vld [vmem:[#allocation5 + $0x11fc] sm:$0xf]
        %v1032 = vld [vmem:[#allocation5 + $0x1200] sm:$0xff]
        %v1033 = vld [vmem:[#allocation5 + $0x1208] sm:$0xff]
        %v1034 = vld [vmem:[#allocation5 + $0x1210] sm:$0xff]
        %v1035 = vld [vmem:[#allocation5 + $0x1218] sm:$0xff]
        %v1036 = vld [vmem:[#allocation5 + $0x1220] sm:$0xf]
        %v1037 = vld [vmem:[#allocation5 + $0x1224] sm:$0xff]
        %v1038 = vld [vmem:[#allocation5 + $0x122c] sm:$0xff]
        %v1039 = vld [vmem:[#allocation5 + $0x1234] sm:$0xff]
        %v1040 = vld [vmem:[#allocation5 + $0x123c] sm:$0xff]
        %v1041 = vld [vmem:[#allocation5 + $0x1244] sm:$0xf]
        %v1042 = vld [vmem:[#allocation5 + $0x1248] sm:$0xff]
        %v1043 = vld [vmem:[#allocation5 + $0x1250] sm:$0xff]
        %v1044 = vld [vmem:[#allocation5 + $0x1258] sm:$0xff]
        %v1045 = vld [vmem:[#allocation5 + $0x1260] sm:$0xff]
        %v1046 = vld [vmem:[#allocation5 + $0x1268] sm:$0xf]
        %v1047 = vld [vmem:[#allocation5 + $0x126c] sm:$0x11]
        %v1048 = vld [vmem:[#allocation5 + $0x1274] sm:$0x11]
        %v1049 = vld [vmem:[#allocation5 + $0x127c] sm:$0x11]
        %v1050 = vld [vmem:[#allocation5 + $0x1284] sm:$0x11]
        %v1051 = vld [vmem:[#allocation5 + $0x128c] sm:$0x1]
        %v1062 = vunpack.c.l.b16 %v382
        %v1063 = vunpack.c.h.b16 %v382
        %v1064 = vunpack.c.l.b16 %v383
        %v1065 = vunpack.c.h.b16 %v383
        %v1066 = vunpack.c.l.b16 %v384
        %v1067 = vunpack.c.h.b16 %v384
        %v1068 = vunpack.c.l.b16 %v385
        %v1069 = vunpack.c.h.b16 %v385
        %v1070 = vunpack.c.l.b16 %v386
        %v1071 = vunpack.c.l.b16 %v387
        %v1072 = vunpack.c.h.b16 %v387
        %v1073 = vunpack.c.l.b16 %v388
        %v1074 = vunpack.c.h.b16 %v388
        %v1075 = vunpack.c.l.b16 %v389
        %v1076 = vunpack.c.h.b16 %v389
        %v1077 = vunpack.c.l.b16 %v390
        %v1078 = vunpack.c.h.b16 %v390
        %v1079 = vunpack.c.l.b16 %v391
        %v1080 = vpack.c.b16 %v1071, %v1062
        %v1081 = vpack.c.b16 %v1072, %v1063
        %v1082 = vpack.c.b16 %v1073, %v1064
        %v1083 = vpack.c.b16 %v1074, %v1065
        %v1084 = vpack.c.b16 %v1075, %v1066
        %v1085 = vpack.c.b16 %v1076, %v1067
        %v1086 = vpack.c.b16 %v1077, %v1068
        %v1087 = vpack.c.b16 %v1078, %v1069
        %v1088 = vpack.c.b16 %v1079, %v1070
        %v1757 = vunpack.c.l.b16 %v392
        %v1758 = vunpack.c.h.b16 %v392
        %v1759 = vunpack.c.l.b16 %v393
        %v1760 = vunpack.c.h.b16 %v393
        %v1761 = vunpack.c.l.b16 %v394
        %v1762 = vunpack.c.h.b16 %v394
        %v1763 = vunpack.c.l.b16 %v395
        %v1764 = vunpack.c.h.b16 %v395
        %v1765 = vunpack.c.l.b16 %v396
        %v1766 = vunpack.c.l.b16 %v397
        %v1767 = vunpack.c.h.b16 %v397
        %v1768 = vunpack.c.l.b16 %v398
        %v1769 = vunpack.c.h.b16 %v398
        %v1770 = vunpack.c.l.b16 %v399
        %v1771 = vunpack.c.h.b16 %v399
        %v1772 = vunpack.c.l.b16 %v400
        %v1773 = vunpack.c.h.b16 %v400
        %v1774 = vunpack.c.l.b16 %v401
        %v1775 = vunpack.c.l.b16 %v402
        %v1776 = vunpack.c.h.b16 %v402
        %v1777 = vunpack.c.l.b16 %v403
        %v1778 = vunpack.c.h.b16 %v403
        %v1779 = vunpack.c.l.b16 %v404
        %v1780 = vunpack.c.h.b16 %v404
        %v1781 = vunpack.c.l.b16 %v405
        %v1782 = vunpack.c.h.b16 %v405
        %v1783 = vunpack.c.l.b16 %v406
        %v1784 = vunpack.c.l.b16 %v407
        %v1785 = vunpack.c.h.b16 %v407
        %v1786 = vunpack.c.l.b16 %v408
        %v1787 = vunpack.c.h.b16 %v408
        %v1788 = vunpack.c.l.b16 %v409
        %v1789 = vunpack.c.h.b16 %v409
        %v1790 = vunpack.c.l.b16 %v410
        %v1791 = vunpack.c.h.b16 %v410
        %v1792 = vunpack.c.l.b16 %v411
        %v1793 = vunpack.c.l.b16 %v412
        %v1794 = vunpack.c.h.b16 %v412
        %v1795 = vunpack.c.l.b16 %v413
        %v1796 = vunpack.c.h.b16 %v413
        %v1797 = vunpack.c.l.b16 %v414
        %v1798 = vunpack.c.h.b16 %v414
        %v1799 = vunpack.c.l.b16 %v415
        %v1800 = vunpack.c.h.b16 %v415
        %v1801 = vunpack.c.l.b16 %v416
        %v1802 = vunpack.c.l.b16 %v417
        %v1803 = vunpack.c.h.b16 %v417
        %v1804 = vunpack.c.l.b16 %v418
        %v1805 = vunpack.c.h.b16 %v418
        %v1806 = vunpack.c.l.b16 %v419
        %v1807 = vunpack.c.h.b16 %v419
        %v1808 = vunpack.c.l.b16 %v420
        %v1809 = vunpack.c.h.b16 %v420
        %v1810 = vunpack.c.l.b16 %v421
        %v1811 = vunpack.c.l.b16 %v422
        %v1812 = vunpack.c.h.b16 %v422
        %v1813 = vunpack.c.l.b16 %v423
        %v1814 = vunpack.c.h.b16 %v423
        %v1815 = vunpack.c.l.b16 %v424
        %v1816 = vunpack.c.h.b16 %v424
        %v1817 = vunpack.c.l.b16 %v425
        %v1818 = vunpack.c.h.b16 %v425
        %v1819 = vunpack.c.l.b16 %v426
        %v1820 = vunpack.c.l.b16 %v427
        %v1821 = vunpack.c.h.b16 %v427
        %v1822 = vunpack.c.l.b16 %v428
        %v1823 = vunpack.c.h.b16 %v428
        %v1824 = vunpack.c.l.b16 %v429
        %v1825 = vunpack.c.h.b16 %v429
        %v1826 = vunpack.c.l.b16 %v430
        %v1827 = vunpack.c.h.b16 %v430
        %v1828 = vunpack.c.l.b16 %v431
        %v1829 = vunpack.c.l.b16 %v432
        %v1830 = vunpack.c.h.b16 %v432
        %v1831 = vunpack.c.l.b16 %v433
        %v1832 = vunpack.c.h.b16 %v433
        %v1833 = vunpack.c.l.b16 %v434
        %v1834 = vunpack.c.h.b16 %v434
        %v1835 = vunpack.c.l.b16 %v435
        %v1836 = vunpack.c.h.b16 %v435
        %v1837 = vunpack.c.l.b16 %v436
        %v1838 = vunpack.c.l.b16 %v437
        %v1839 = vunpack.c.h.b16 %v437
        %v1840 = vunpack.c.l.b16 %v438
        %v1841 = vunpack.c.h.b16 %v438
        %v1842 = vunpack.c.l.b16 %v439
        %v1843 = vunpack.c.h.b16 %v439
        %v1844 = vunpack.c.l.b16 %v440
        %v1845 = vunpack.c.h.b16 %v440
        %v1846 = vunpack.c.l.b16 %v441
        %v1847 = vunpack.c.l.b16 %v442
        %v1848 = vunpack.c.h.b16 %v442
        %v1849 = vunpack.c.l.b16 %v443
        %v1850 = vunpack.c.h.b16 %v443
        %v1851 = vunpack.c.l.b16 %v444
        %v1852 = vunpack.c.h.b16 %v444
        %v1853 = vunpack.c.l.b16 %v445
        %v1854 = vunpack.c.h.b16 %v445
        %v1855 = vunpack.c.l.b16 %v446
        %v1856 = vunpack.c.l.b16 %v447
        %v1857 = vunpack.c.h.b16 %v447
        %v1858 = vunpack.c.l.b16 %v448
        %v1859 = vunpack.c.h.b16 %v448
        %v1860 = vunpack.c.l.b16 %v449
        %v1861 = vunpack.c.h.b16 %v449
        %v1862 = vunpack.c.l.b16 %v450
        %v1863 = vunpack.c.h.b16 %v450
        %v1864 = vunpack.c.l.b16 %v451
        %v1865 = vunpack.c.l.b16 %v452
        %v1866 = vunpack.c.h.b16 %v452
        %v1867 = vunpack.c.l.b16 %v453
        %v1868 = vunpack.c.h.b16 %v453
        %v1869 = vunpack.c.l.b16 %v454
        %v1870 = vunpack.c.h.b16 %v454
        %v1871 = vunpack.c.l.b16 %v455
        %v1872 = vunpack.c.h.b16 %v455
        %v1873 = vunpack.c.l.b16 %v456
        %v1874 = vunpack.c.l.b16 %v457
        %v1875 = vunpack.c.h.b16 %v457
        %v1876 = vunpack.c.l.b16 %v458
        %v1877 = vunpack.c.h.b16 %v458
        %v1878 = vunpack.c.l.b16 %v459
        %v1879 = vunpack.c.h.b16 %v459
        %v1880 = vunpack.c.l.b16 %v460
        %v1881 = vunpack.c.h.b16 %v460
        %v1882 = vunpack.c.l.b16 %v461
        %v1883 = vunpack.c.l.b16 %v462
        %v1884 = vunpack.c.h.b16 %v462
        %v1885 = vunpack.c.l.b16 %v463
        %v1886 = vunpack.c.h.b16 %v463
        %v1887 = vunpack.c.l.b16 %v464
        %v1888 = vunpack.c.h.b16 %v464
        %v1889 = vunpack.c.l.b16 %v465
        %v1890 = vunpack.c.h.b16 %v465
        %v1891 = vunpack.c.l.b16 %v466
        %v1892 = vunpack.c.l.b16 %v467
        %v1893 = vunpack.c.h.b16 %v467
        %v1894 = vunpack.c.l.b16 %v468
        %v1895 = vunpack.c.h.b16 %v468
        %v1896 = vunpack.c.l.b16 %v469
        %v1897 = vunpack.c.h.b16 %v469
        %v1898 = vunpack.c.l.b16 %v470
        %v1899 = vunpack.c.h.b16 %v470
        %v1900 = vunpack.c.l.b16 %v471
        %v1901 = vunpack.c.l.b16 %v472
        %v1902 = vunpack.c.h.b16 %v472
        %v1903 = vunpack.c.l.b16 %v473
        %v1904 = vunpack.c.h.b16 %v473
        %v1905 = vunpack.c.l.b16 %v474
        %v1906 = vunpack.c.h.b16 %v474
        %v1907 = vunpack.c.l.b16 %v475
        %v1908 = vunpack.c.h.b16 %v475
        %v1909 = vunpack.c.l.b16 %v476
        %v1910 = vunpack.c.l.b16 %v477
        %v1911 = vunpack.c.h.b16 %v477
        %v1912 = vunpack.c.l.b16 %v478
        %v1913 = vunpack.c.h.b16 %v478
        %v1914 = vunpack.c.l.b16 %v479
        %v1915 = vunpack.c.h.b16 %v479
        %v1916 = vunpack.c.l.b16 %v480
        %v1917 = vunpack.c.h.b16 %v480
        %v1918 = vunpack.c.l.b16 %v481
        %v1919 = vunpack.c.l.b16 %v482
        %v1920 = vunpack.c.h.b16 %v482
        %v1921 = vunpack.c.l.b16 %v483
        %v1922 = vunpack.c.h.b16 %v483
        %v1923 = vunpack.c.l.b16 %v484
        %v1924 = vunpack.c.h.b16 %v484
        %v1925 = vunpack.c.l.b16 %v485
        %v1926 = vunpack.c.h.b16 %v485
        %v1927 = vunpack.c.l.b16 %v486
        %v1928 = vunpack.c.l.b16 %v487
        %v1929 = vunpack.c.h.b16 %v487
        %v1930 = vunpack.c.l.b16 %v488
        %v1931 = vunpack.c.h.b16 %v488
        %v1932 = vunpack.c.l.b16 %v489
        %v1933 = vunpack.c.h.b16 %v489
        %v1934 = vunpack.c.l.b16 %v490
        %v1935 = vunpack.c.h.b16 %v490
        %v1936 = vunpack.c.l.b16 %v491
        %v1937 = vunpack.c.l.b16 %v492
        %v1938 = vunpack.c.h.b16 %v492
        %v1939 = vunpack.c.l.b16 %v493
        %v1940 = vunpack.c.h.b16 %v493
        %v1941 = vunpack.c.l.b16 %v494
        %v1942 = vunpack.c.h.b16 %v494
        %v1943 = vunpack.c.l.b16 %v495
        %v1944 = vunpack.c.h.b16 %v495
        %v1945 = vunpack.c.l.b16 %v496
        %v1946 = vunpack.c.l.b16 %v497
        %v1947 = vunpack.c.h.b16 %v497
        %v1948 = vunpack.c.l.b16 %v498
        %v1949 = vunpack.c.h.b16 %v498
        %v1950 = vunpack.c.l.b16 %v499
        %v1951 = vunpack.c.h.b16 %v499
        %v1952 = vunpack.c.l.b16 %v500
        %v1953 = vunpack.c.h.b16 %v500
        %v1954 = vunpack.c.l.b16 %v501
        %v1955 = vunpack.c.l.b16 %v502
        %v1956 = vunpack.c.h.b16 %v502
        %v1957 = vunpack.c.l.b16 %v503
        %v1958 = vunpack.c.h.b16 %v503
        %v1959 = vunpack.c.l.b16 %v504
        %v1960 = vunpack.c.h.b16 %v504
        %v1961 = vunpack.c.l.b16 %v505
        %v1962 = vunpack.c.h.b16 %v505
        %v1963 = vunpack.c.l.b16 %v506
        %v1964 = vunpack.c.l.b16 %v507
        %v1965 = vunpack.c.h.b16 %v507
        %v1966 = vunpack.c.l.b16 %v508
        %v1967 = vunpack.c.h.b16 %v508
        %v1968 = vunpack.c.l.b16 %v509
        %v1969 = vunpack.c.h.b16 %v509
        %v1970 = vunpack.c.l.b16 %v510
        %v1971 = vunpack.c.h.b16 %v510
        %v1972 = vunpack.c.l.b16 %v511
        %v1973 = vunpack.c.l.b16 %v512
        %v1974 = vunpack.c.h.b16 %v512
        %v1975 = vunpack.c.l.b16 %v513
        %v1976 = vunpack.c.h.b16 %v513
        %v1977 = vunpack.c.l.b16 %v514
        %v1978 = vunpack.c.h.b16 %v514
        %v1979 = vunpack.c.l.b16 %v515
        %v1980 = vunpack.c.h.b16 %v515
        %v1981 = vunpack.c.l.b16 %v516
        %v1982 = vunpack.c.l.b16 %v517
        %v1983 = vunpack.c.h.b16 %v517
        %v1984 = vunpack.c.l.b16 %v518
        %v1985 = vunpack.c.h.b16 %v518
        %v1986 = vunpack.c.l.b16 %v519
        %v1987 = vunpack.c.h.b16 %v519
        %v1988 = vunpack.c.l.b16 %v520
        %v1989 = vunpack.c.h.b16 %v520
        %v1990 = vunpack.c.l.b16 %v521
        %v1991 = vunpack.c.l.b16 %v522
        %v1992 = vunpack.c.h.b16 %v522
        %v1993 = vunpack.c.l.b16 %v523
        %v1994 = vunpack.c.h.b16 %v523
        %v1995 = vunpack.c.l.b16 %v524
        %v1996 = vunpack.c.h.b16 %v524
        %v1997 = vunpack.c.l.b16 %v525
        %v1998 = vunpack.c.h.b16 %v525
        %v1999 = vunpack.c.l.b16 %v526
        %v2000 = vunpack.c.l.b16 %v527
        %v2001 = vunpack.c.h.b16 %v527
        %v2002 = vunpack.c.l.b16 %v528
        %v2003 = vunpack.c.h.b16 %v528
        %v2004 = vunpack.c.l.b16 %v529
        %v2005 = vunpack.c.h.b16 %v529
        %v2006 = vunpack.c.l.b16 %v530
        %v2007 = vunpack.c.h.b16 %v530
        %v2008 = vunpack.c.l.b16 %v531
        %v2009 = vunpack.c.l.b16 %v532
        %v2010 = vunpack.c.h.b16 %v532
        %v2011 = vunpack.c.l.b16 %v533
        %v2012 = vunpack.c.h.b16 %v533
        %v2013 = vunpack.c.l.b16 %v534
        %v2014 = vunpack.c.h.b16 %v534
        %v2015 = vunpack.c.l.b16 %v535
        %v2016 = vunpack.c.h.b16 %v535
        %v2017 = vunpack.c.l.b16 %v536
        %v2018 = vunpack.c.l.b16 %v537
        %v2019 = vunpack.c.h.b16 %v537
        %v2020 = vunpack.c.l.b16 %v538
        %v2021 = vunpack.c.h.b16 %v538
        %v2022 = vunpack.c.l.b16 %v539
        %v2023 = vunpack.c.h.b16 %v539
        %v2024 = vunpack.c.l.b16 %v540
        %v2025 = vunpack.c.h.b16 %v540
        %v2026 = vunpack.c.l.b16 %v541
        %v2027 = vunpack.c.l.b16 %v542
        %v2028 = vunpack.c.h.b16 %v542
        %v2029 = vunpack.c.l.b16 %v543
        %v2030 = vunpack.c.h.b16 %v543
        %v2031 = vunpack.c.l.b16 %v544
        %v2032 = vunpack.c.h.b16 %v544
        %v2033 = vunpack.c.l.b16 %v545
        %v2034 = vunpack.c.h.b16 %v545
        %v2035 = vunpack.c.l.b16 %v546
        %v2036 = vunpack.c.l.b16 %v547
        %v2037 = vunpack.c.h.b16 %v547
        %v2038 = vunpack.c.l.b16 %v548
        %v2039 = vunpack.c.h.b16 %v548
        %v2040 = vunpack.c.l.b16 %v549
        %v2041 = vunpack.c.h.b16 %v549
        %v2042 = vunpack.c.l.b16 %v550
        %v2043 = vunpack.c.h.b16 %v550
        %v2044 = vunpack.c.l.b16 %v551
        %v2045 = vunpack.c.l.b16 %v552
        %v2046 = vunpack.c.h.b16 %v552
        %v2047 = vunpack.c.l.b16 %v553
        %v2048 = vunpack.c.h.b16 %v553
        %v2049 = vunpack.c.l.b16 %v554
        %v2050 = vunpack.c.h.b16 %v554
        %v2051 = vunpack.c.l.b16 %v555
        %v2052 = vunpack.c.h.b16 %v555
        %v2053 = vunpack.c.l.b16 %v556
        %v2054 = vunpack.c.l.b16 %v557
        %v2055 = vunpack.c.h.b16 %v557
        %v2056 = vunpack.c.l.b16 %v558
        %v2057 = vunpack.c.h.b16 %v558
        %v2058 = vunpack.c.l.b16 %v559
        %v2059 = vunpack.c.h.b16 %v559
        %v2060 = vunpack.c.l.b16 %v560
        %v2061 = vunpack.c.h.b16 %v560
        %v2062 = vunpack.c.l.b16 %v561
        %v2063 = vunpack.c.l.b16 %v562
        %v2064 = vunpack.c.h.b16 %v562
        %v2065 = vunpack.c.l.b16 %v563
        %v2066 = vunpack.c.h.b16 %v563
        %v2067 = vunpack.c.l.b16 %v564
        %v2068 = vunpack.c.h.b16 %v564
        %v2069 = vunpack.c.l.b16 %v565
        %v2070 = vunpack.c.h.b16 %v565
        %v2071 = vunpack.c.l.b16 %v566
        %v2072 = vunpack.c.l.b16 %v567
        %v2073 = vunpack.c.h.b16 %v567
        %v2074 = vunpack.c.l.b16 %v568
        %v2075 = vunpack.c.h.b16 %v568
        %v2076 = vunpack.c.l.b16 %v569
        %v2077 = vunpack.c.h.b16 %v569
        %v2078 = vunpack.c.l.b16 %v570
        %v2079 = vunpack.c.h.b16 %v570
        %v2080 = vunpack.c.l.b16 %v571
        %v2081 = vunpack.c.l.b16 %v572
        %v2082 = vunpack.c.h.b16 %v572
        %v2083 = vunpack.c.l.b16 %v573
        %v2084 = vunpack.c.h.b16 %v573
        %v2085 = vunpack.c.l.b16 %v574
        %v2086 = vunpack.c.h.b16 %v574
        %v2087 = vunpack.c.l.b16 %v575
        %v2088 = vunpack.c.h.b16 %v575
        %v2089 = vunpack.c.l.b16 %v576
        %v2090 = vunpack.c.l.b16 %v577
        %v2091 = vunpack.c.h.b16 %v577
        %v2092 = vunpack.c.l.b16 %v578
        %v2093 = vunpack.c.h.b16 %v578
        %v2094 = vunpack.c.l.b16 %v579
        %v2095 = vunpack.c.h.b16 %v579
        %v2096 = vunpack.c.l.b16 %v580
        %v2097 = vunpack.c.h.b16 %v580
        %v2098 = vunpack.c.l.b16 %v581
        %v2099 = vunpack.c.l.b16 %v582
        %v2100 = vunpack.c.h.b16 %v582
        %v2101 = vunpack.c.l.b16 %v583
        %v2102 = vunpack.c.h.b16 %v583
        %v2103 = vunpack.c.l.b16 %v584
        %v2104 = vunpack.c.h.b16 %v584
        %v2105 = vunpack.c.l.b16 %v585
        %v2106 = vunpack.c.h.b16 %v585
        %v2107 = vunpack.c.l.b16 %v586
        %v2108 = vunpack.c.l.b16 %v587
        %v2109 = vunpack.c.h.b16 %v587
        %v2110 = vunpack.c.l.b16 %v588
        %v2111 = vunpack.c.h.b16 %v588
        %v2112 = vunpack.c.l.b16 %v589
        %v2113 = vunpack.c.h.b16 %v589
        %v2114 = vunpack.c.l.b16 %v590
        %v2115 = vunpack.c.h.b16 %v590
        %v2116 = vunpack.c.l.b16 %v591
        %v2117 = vunpack.c.l.b16 %v592
        %v2118 = vunpack.c.h.b16 %v592
        %v2119 = vunpack.c.l.b16 %v593
        %v2120 = vunpack.c.h.b16 %v593
        %v2121 = vunpack.c.l.b16 %v594
        %v2122 = vunpack.c.h.b16 %v594
        %v2123 = vunpack.c.l.b16 %v595
        %v2124 = vunpack.c.h.b16 %v595
        %v2125 = vunpack.c.l.b16 %v596
        %v2126 = vunpack.c.l.b16 %v597
        %v2127 = vunpack.c.h.b16 %v597
        %v2128 = vunpack.c.l.b16 %v598
        %v2129 = vunpack.c.h.b16 %v598
        %v2130 = vunpack.c.l.b16 %v599
        %v2131 = vunpack.c.h.b16 %v599
        %v2132 = vunpack.c.l.b16 %v600
        %v2133 = vunpack.c.h.b16 %v600
        %v2134 = vunpack.c.l.b16 %v601
        %v2135 = vunpack.c.l.b16 %v602
        %v2136 = vunpack.c.h.b16 %v602
        %v2137 = vunpack.c.l.b16 %v603
        %v2138 = vunpack.c.h.b16 %v603
        %v2139 = vunpack.c.l.b16 %v604
        %v2140 = vunpack.c.h.b16 %v604
        %v2141 = vunpack.c.l.b16 %v605
        %v2142 = vunpack.c.h.b16 %v605
        %v2143 = vunpack.c.l.b16 %v606
        %v2144 = vunpack.c.l.b16 %v607
        %v2145 = vunpack.c.h.b16 %v607
        %v2146 = vunpack.c.l.b16 %v608
        %v2147 = vunpack.c.h.b16 %v608
        %v2148 = vunpack.c.l.b16 %v609
        %v2149 = vunpack.c.h.b16 %v609
        %v2150 = vunpack.c.l.b16 %v610
        %v2151 = vunpack.c.h.b16 %v610
        %v2152 = vunpack.c.l.b16 %v611
        %v2153 = vunpack.c.l.b16 %v612
        %v2154 = vunpack.c.h.b16 %v612
        %v2155 = vunpack.c.l.b16 %v613
        %v2156 = vunpack.c.h.b16 %v613
        %v2157 = vunpack.c.l.b16 %v614
        %v2158 = vunpack.c.h.b16 %v614
        %v2159 = vunpack.c.l.b16 %v615
        %v2160 = vunpack.c.h.b16 %v615
        %v2161 = vunpack.c.l.b16 %v616
        %v2162 = vunpack.c.l.b16 %v617
        %v2163 = vunpack.c.h.b16 %v617
        %v2164 = vunpack.c.l.b16 %v618
        %v2165 = vunpack.c.h.b16 %v618
        %v2166 = vunpack.c.l.b16 %v619
        %v2167 = vunpack.c.h.b16 %v619
        %v2168 = vunpack.c.l.b16 %v620
        %v2169 = vunpack.c.h.b16 %v620
        %v2170 = vunpack.c.l.b16 %v621
        %v2171 = vunpack.c.l.b16 %v622
        %v2172 = vunpack.c.h.b16 %v622
        %v2173 = vunpack.c.l.b16 %v623
        %v2174 = vunpack.c.h.b16 %v623
        %v2175 = vunpack.c.l.b16 %v624
        %v2176 = vunpack.c.h.b16 %v624
        %v2177 = vunpack.c.l.b16 %v625
        %v2178 = vunpack.c.h.b16 %v625
        %v2179 = vunpack.c.l.b16 %v626
        %v2180 = vunpack.c.l.b16 %v627
        %v2181 = vunpack.c.h.b16 %v627
        %v2182 = vunpack.c.l.b16 %v628
        %v2183 = vunpack.c.h.b16 %v628
        %v2184 = vunpack.c.l.b16 %v629
        %v2185 = vunpack.c.h.b16 %v629
        %v2186 = vunpack.c.l.b16 %v630
        %v2187 = vunpack.c.h.b16 %v630
        %v2188 = vunpack.c.l.b16 %v631
        %v2189 = vunpack.c.l.b16 %v632
        %v2190 = vunpack.c.h.b16 %v632
        %v2191 = vunpack.c.l.b16 %v633
        %v2192 = vunpack.c.h.b16 %v633
        %v2193 = vunpack.c.l.b16 %v634
        %v2194 = vunpack.c.h.b16 %v634
        %v2195 = vunpack.c.l.b16 %v635
        %v2196 = vunpack.c.h.b16 %v635
        %v2197 = vunpack.c.l.b16 %v636
        %v2198 = vunpack.c.l.b16 %v637
        %v2199 = vunpack.c.h.b16 %v637
        %v2200 = vunpack.c.l.b16 %v638
        %v2201 = vunpack.c.h.b16 %v638
        %v2202 = vunpack.c.l.b16 %v639
        %v2203 = vunpack.c.h.b16 %v639
        %v2204 = vunpack.c.l.b16 %v640
        %v2205 = vunpack.c.h.b16 %v640
        %v2206 = vunpack.c.l.b16 %v641
        %v2207 = vunpack.c.l.b16 %v642
        %v2208 = vunpack.c.h.b16 %v642
        %v2209 = vunpack.c.l.b16 %v643
        %v2210 = vunpack.c.h.b16 %v643
        %v2211 = vunpack.c.l.b16 %v644
        %v2212 = vunpack.c.h.b16 %v644
        %v2213 = vunpack.c.l.b16 %v645
        %v2214 = vunpack.c.h.b16 %v645
        %v2215 = vunpack.c.l.b16 %v646
        %v2216 = vunpack.c.l.b16 %v647
        %v2217 = vunpack.c.h.b16 %v647
        %v2218 = vunpack.c.l.b16 %v648
        %v2219 = vunpack.c.h.b16 %v648
        %v2220 = vunpack.c.l.b16 %v649
        %v2221 = vunpack.c.h.b16 %v649
        %v2222 = vunpack.c.l.b16 %v650
        %v2223 = vunpack.c.h.b16 %v650
        %v2224 = vunpack.c.l.b16 %v651
        %v2225 = vunpack.c.l.b16 %v652
        %v2226 = vunpack.c.h.b16 %v652
        %v2227 = vunpack.c.l.b16 %v653
        %v2228 = vunpack.c.h.b16 %v653
        %v2229 = vunpack.c.l.b16 %v654
        %v2230 = vunpack.c.h.b16 %v654
        %v2231 = vunpack.c.l.b16 %v655
        %v2232 = vunpack.c.h.b16 %v655
        %v2233 = vunpack.c.l.b16 %v656
        %v2234 = vunpack.c.l.b16 %v657
        %v2235 = vunpack.c.h.b16 %v657
        %v2236 = vunpack.c.l.b16 %v658
        %v2237 = vunpack.c.h.b16 %v658
        %v2238 = vunpack.c.l.b16 %v659
        %v2239 = vunpack.c.h.b16 %v659
        %v2240 = vunpack.c.l.b16 %v660
        %v2241 = vunpack.c.h.b16 %v660
        %v2242 = vunpack.c.l.b16 %v661
        %v2243 = vunpack.c.l.b16 %v662
        %v2244 = vunpack.c.h.b16 %v662
        %v2245 = vunpack.c.l.b16 %v663
        %v2246 = vunpack.c.h.b16 %v663
        %v2247 = vunpack.c.l.b16 %v664
        %v2248 = vunpack.c.h.b16 %v664
        %v2249 = vunpack.c.l.b16 %v665
        %v2250 = vunpack.c.h.b16 %v665
        %v2251 = vunpack.c.l.b16 %v666
        %v2252 = vunpack.c.l.b16 %v667
        %v2253 = vunpack.c.h.b16 %v667
        %v2254 = vunpack.c.l.b16 %v668
        %v2255 = vunpack.c.h.b16 %v668
        %v2256 = vunpack.c.l.b16 %v669
        %v2257 = vunpack.c.h.b16 %v669
        %v2258 = vunpack.c.l.b16 %v670
        %v2259 = vunpack.c.h.b16 %v670
        %v2260 = vunpack.c.l.b16 %v671
        %v2261 = vunpack.c.l.b16 %v672
        %v2262 = vunpack.c.h.b16 %v672
        %v2263 = vunpack.c.l.b16 %v673
        %v2264 = vunpack.c.h.b16 %v673
        %v2265 = vunpack.c.l.b16 %v674
        %v2266 = vunpack.c.h.b16 %v674
        %v2267 = vunpack.c.l.b16 %v675
        %v2268 = vunpack.c.h.b16 %v675
        %v2269 = vunpack.c.l.b16 %v676
        %v2270 = vunpack.c.l.b16 %v677
        %v2271 = vunpack.c.h.b16 %v677
        %v2272 = vunpack.c.l.b16 %v678
        %v2273 = vunpack.c.h.b16 %v678
        %v2274 = vunpack.c.l.b16 %v679
        %v2275 = vunpack.c.h.b16 %v679
        %v2276 = vunpack.c.l.b16 %v680
        %v2277 = vunpack.c.h.b16 %v680
        %v2278 = vunpack.c.l.b16 %v681
        %v2279 = vunpack.c.l.b16 %v682
        %v2280 = vunpack.c.h.b16 %v682
        %v2281 = vunpack.c.l.b16 %v683
        %v2282 = vunpack.c.h.b16 %v683
        %v2283 = vunpack.c.l.b16 %v684
        %v2284 = vunpack.c.h.b16 %v684
        %v2285 = vunpack.c.l.b16 %v685
        %v2286 = vunpack.c.h.b16 %v685
        %v2287 = vunpack.c.l.b16 %v686
        %v2288 = vunpack.c.l.b16 %v687
        %v2289 = vunpack.c.h.b16 %v687
        %v2290 = vunpack.c.l.b16 %v688
        %v2291 = vunpack.c.h.b16 %v688
        %v2292 = vunpack.c.l.b16 %v689
        %v2293 = vunpack.c.h.b16 %v689
        %v2294 = vunpack.c.l.b16 %v690
        %v2295 = vunpack.c.h.b16 %v690
        %v2296 = vunpack.c.l.b16 %v691
        %v2297 = vunpack.c.l.b16 %v692
        %v2298 = vunpack.c.h.b16 %v692
        %v2299 = vunpack.c.l.b16 %v693
        %v2300 = vunpack.c.h.b16 %v693
        %v2301 = vunpack.c.l.b16 %v694
        %v2302 = vunpack.c.h.b16 %v694
        %v2303 = vunpack.c.l.b16 %v695
        %v2304 = vunpack.c.h.b16 %v695
        %v2305 = vunpack.c.l.b16 %v696
        %v2306 = vunpack.c.l.b16 %v697
        %v2307 = vunpack.c.h.b16 %v697
        %v2308 = vunpack.c.l.b16 %v698
        %v2309 = vunpack.c.h.b16 %v698
        %v2310 = vunpack.c.l.b16 %v699
        %v2311 = vunpack.c.h.b16 %v699
        %v2312 = vunpack.c.l.b16 %v700
        %v2313 = vunpack.c.h.b16 %v700
        %v2314 = vunpack.c.l.b16 %v701
        %v2315 = vunpack.c.l.b16 %v702
        %v2316 = vunpack.c.h.b16 %v702
        %v2317 = vunpack.c.l.b16 %v703
        %v2318 = vunpack.c.h.b16 %v703
        %v2319 = vunpack.c.l.b16 %v704
        %v2320 = vunpack.c.h.b16 %v704
        %v2321 = vunpack.c.l.b16 %v705
        %v2322 = vunpack.c.h.b16 %v705
        %v2323 = vunpack.c.l.b16 %v706
        %v2324 = vunpack.c.l.b16 %v707
        %v2325 = vunpack.c.h.b16 %v707
        %v2326 = vunpack.c.l.b16 %v708
        %v2327 = vunpack.c.h.b16 %v708
        %v2328 = vunpack.c.l.b16 %v709
        %v2329 = vunpack.c.h.b16 %v709
        %v2330 = vunpack.c.l.b16 %v710
        %v2331 = vunpack.c.h.b16 %v710
        %v2332 = vunpack.c.l.b16 %v711
        %v2333 = vunpack.c.l.b16 %v712
        %v2334 = vunpack.c.h.b16 %v712
        %v2335 = vunpack.c.l.b16 %v713
        %v2336 = vunpack.c.h.b16 %v713
        %v2337 = vunpack.c.l.b16 %v714
        %v2338 = vunpack.c.h.b16 %v714
        %v2339 = vunpack.c.l.b16 %v715
        %v2340 = vunpack.c.h.b16 %v715
        %v2341 = vunpack.c.l.b16 %v716
        %v2342 = vunpack.c.l.b16 %v717
        %v2343 = vunpack.c.h.b16 %v717
        %v2344 = vunpack.c.l.b16 %v718
        %v2345 = vunpack.c.h.b16 %v718
        %v2346 = vunpack.c.l.b16 %v719
        %v2347 = vunpack.c.h.b16 %v719
        %v2348 = vunpack.c.l.b16 %v720
        %v2349 = vunpack.c.h.b16 %v720
        %v2350 = vunpack.c.l.b16 %v721
        %v2351 = vunpack.c.l.b16 %v722
        %v2352 = vunpack.c.h.b16 %v722
        %v2353 = vunpack.c.l.b16 %v723
        %v2354 = vunpack.c.h.b16 %v723
        %v2355 = vunpack.c.l.b16 %v724
        %v2356 = vunpack.c.h.b16 %v724
        %v2357 = vunpack.c.l.b16 %v725
        %v2358 = vunpack.c.h.b16 %v725
        %v2359 = vunpack.c.l.b16 %v726
        %v2360 = vunpack.c.l.b16 %v727
        %v2361 = vunpack.c.h.b16 %v727
        %v2362 = vunpack.c.l.b16 %v728
        %v2363 = vunpack.c.h.b16 %v728
        %v2364 = vunpack.c.l.b16 %v729
        %v2365 = vunpack.c.h.b16 %v729
        %v2366 = vunpack.c.l.b16 %v730
        %v2367 = vunpack.c.h.b16 %v730
        %v2368 = vunpack.c.l.b16 %v731
        %v2369 = vunpack.c.l.b16 %v732
        %v2370 = vunpack.c.h.b16 %v732
        %v2371 = vunpack.c.l.b16 %v733
        %v2372 = vunpack.c.h.b16 %v733
        %v2373 = vunpack.c.l.b16 %v734
        %v2374 = vunpack.c.h.b16 %v734
        %v2375 = vunpack.c.l.b16 %v735
        %v2376 = vunpack.c.h.b16 %v735
        %v2377 = vunpack.c.l.b16 %v736
        %v2378 = vunpack.c.l.b16 %v737
        %v2379 = vunpack.c.h.b16 %v737
        %v2380 = vunpack.c.l.b16 %v738
        %v2381 = vunpack.c.h.b16 %v738
        %v2382 = vunpack.c.l.b16 %v739
        %v2383 = vunpack.c.h.b16 %v739
        %v2384 = vunpack.c.l.b16 %v740
        %v2385 = vunpack.c.h.b16 %v740
        %v2386 = vunpack.c.l.b16 %v741
        %v2387 = vunpack.c.l.b16 %v742
        %v2388 = vunpack.c.h.b16 %v742
        %v2389 = vunpack.c.l.b16 %v743
        %v2390 = vunpack.c.h.b16 %v743
        %v2391 = vunpack.c.l.b16 %v744
        %v2392 = vunpack.c.h.b16 %v744
        %v2393 = vunpack.c.l.b16 %v745
        %v2394 = vunpack.c.h.b16 %v745
        %v2395 = vunpack.c.l.b16 %v746
        %v2396 = vunpack.c.l.b16 %v747
        %v2397 = vunpack.c.h.b16 %v747
        %v2398 = vunpack.c.l.b16 %v748
        %v2399 = vunpack.c.h.b16 %v748
        %v2400 = vunpack.c.l.b16 %v749
        %v2401 = vunpack.c.h.b16 %v749
        %v2402 = vunpack.c.l.b16 %v750
        %v2403 = vunpack.c.h.b16 %v750
        %v2404 = vunpack.c.l.b16 %v751
        %v2405 = vunpack.c.l.b16 %v752
        %v2406 = vunpack.c.h.b16 %v752
        %v2407 = vunpack.c.l.b16 %v753
        %v2408 = vunpack.c.h.b16 %v753
        %v2409 = vunpack.c.l.b16 %v754
        %v2410 = vunpack.c.h.b16 %v754
        %v2411 = vunpack.c.l.b16 %v755
        %v2412 = vunpack.c.h.b16 %v755
        %v2413 = vunpack.c.l.b16 %v756
        %v2414 = vunpack.c.l.b16 %v757
        %v2415 = vunpack.c.h.b16 %v757
        %v2416 = vunpack.c.l.b16 %v758
        %v2417 = vunpack.c.h.b16 %v758
        %v2418 = vunpack.c.l.b16 %v759
        %v2419 = vunpack.c.h.b16 %v759
        %v2420 = vunpack.c.l.b16 %v760
        %v2421 = vunpack.c.h.b16 %v760
        %v2422 = vunpack.c.l.b16 %v761
        %v2423 = vunpack.c.l.b16 %v762
        %v2424 = vunpack.c.h.b16 %v762
        %v2425 = vunpack.c.l.b16 %v763
        %v2426 = vunpack.c.h.b16 %v763
        %v2427 = vunpack.c.l.b16 %v764
        %v2428 = vunpack.c.h.b16 %v764
        %v2429 = vunpack.c.l.b16 %v765
        %v2430 = vunpack.c.h.b16 %v765
        %v2431 = vunpack.c.l.b16 %v766
        %v2432 = vunpack.c.l.b16 %v767
        %v2433 = vunpack.c.h.b16 %v767
        %v2434 = vunpack.c.l.b16 %v768
        %v2435 = vunpack.c.h.b16 %v768
        %v2436 = vunpack.c.l.b16 %v769
        %v2437 = vunpack.c.h.b16 %v769
        %v2438 = vunpack.c.l.b16 %v770
        %v2439 = vunpack.c.h.b16 %v770
        %v2440 = vunpack.c.l.b16 %v771
        %v2441 = vunpack.c.l.b16 %v772
        %v2442 = vunpack.c.h.b16 %v772
        %v2443 = vunpack.c.l.b16 %v773
        %v2444 = vunpack.c.h.b16 %v773
        %v2445 = vunpack.c.l.b16 %v774
        %v2446 = vunpack.c.h.b16 %v774
        %v2447 = vunpack.c.l.b16 %v775
        %v2448 = vunpack.c.h.b16 %v775
        %v2449 = vunpack.c.l.b16 %v776
        %v2450 = vunpack.c.l.b16 %v777
        %v2451 = vunpack.c.h.b16 %v777
        %v2452 = vunpack.c.l.b16 %v778
        %v2453 = vunpack.c.h.b16 %v778
        %v2454 = vunpack.c.l.b16 %v779
        %v2455 = vunpack.c.h.b16 %v779
        %v2456 = vunpack.c.l.b16 %v780
        %v2457 = vunpack.c.h.b16 %v780
        %v2458 = vunpack.c.l.b16 %v781
        %v2459 = vunpack.c.l.b16 %v782
        %v2460 = vunpack.c.h.b16 %v782
        %v2461 = vunpack.c.l.b16 %v783
        %v2462 = vunpack.c.h.b16 %v783
        %v2463 = vunpack.c.l.b16 %v784
        %v2464 = vunpack.c.h.b16 %v784
        %v2465 = vunpack.c.l.b16 %v785
        %v2466 = vunpack.c.h.b16 %v785
        %v2467 = vunpack.c.l.b16 %v786
        %v2468 = vunpack.c.l.b16 %v787
        %v2469 = vunpack.c.h.b16 %v787
        %v2470 = vunpack.c.l.b16 %v788
        %v2471 = vunpack.c.h.b16 %v788
        %v2472 = vunpack.c.l.b16 %v789
        %v2473 = vunpack.c.h.b16 %v789
        %v2474 = vunpack.c.l.b16 %v790
        %v2475 = vunpack.c.h.b16 %v790
        %v2476 = vunpack.c.l.b16 %v791
        %v2477 = vunpack.c.l.b16 %v792
        %v2478 = vunpack.c.h.b16 %v792
        %v2479 = vunpack.c.l.b16 %v793
        %v2480 = vunpack.c.h.b16 %v793
        %v2481 = vunpack.c.l.b16 %v794
        %v2482 = vunpack.c.h.b16 %v794
        %v2483 = vunpack.c.l.b16 %v795
        %v2484 = vunpack.c.h.b16 %v795
        %v2485 = vunpack.c.l.b16 %v796
        %v2486 = vunpack.c.l.b16 %v797
        %v2487 = vunpack.c.h.b16 %v797
        %v2488 = vunpack.c.l.b16 %v798
        %v2489 = vunpack.c.h.b16 %v798
        %v2490 = vunpack.c.l.b16 %v799
        %v2491 = vunpack.c.h.b16 %v799
        %v2492 = vunpack.c.l.b16 %v800
        %v2493 = vunpack.c.h.b16 %v800
        %v2494 = vunpack.c.l.b16 %v801
        %v2495 = vunpack.c.l.b16 %v802
        %v2496 = vunpack.c.h.b16 %v802
        %v2497 = vunpack.c.l.b16 %v803
        %v2498 = vunpack.c.h.b16 %v803
        %v2499 = vunpack.c.l.b16 %v804
        %v2500 = vunpack.c.h.b16 %v804
        %v2501 = vunpack.c.l.b16 %v805
        %v2502 = vunpack.c.h.b16 %v805
        %v2503 = vunpack.c.l.b16 %v806
        %v2504 = vunpack.c.l.b16 %v807
        %v2505 = vunpack.c.h.b16 %v807
        %v2506 = vunpack.c.l.b16 %v808
        %v2507 = vunpack.c.h.b16 %v808
        %v2508 = vunpack.c.l.b16 %v809
        %v2509 = vunpack.c.h.b16 %v809
        %v2510 = vunpack.c.l.b16 %v810
        %v2511 = vunpack.c.h.b16 %v810
        %v2512 = vunpack.c.l.b16 %v811
        %v2513 = vunpack.c.l.b16 %v812
        %v2514 = vunpack.c.h.b16 %v812
        %v2515 = vunpack.c.l.b16 %v813
        %v2516 = vunpack.c.h.b16 %v813
        %v2517 = vunpack.c.l.b16 %v814
        %v2518 = vunpack.c.h.b16 %v814
        %v2519 = vunpack.c.l.b16 %v815
        %v2520 = vunpack.c.h.b16 %v815
        %v2521 = vunpack.c.l.b16 %v816
        %v2522 = vunpack.c.l.b16 %v817
        %v2523 = vunpack.c.h.b16 %v817
        %v2524 = vunpack.c.l.b16 %v818
        %v2525 = vunpack.c.h.b16 %v818
        %v2526 = vunpack.c.l.b16 %v819
        %v2527 = vunpack.c.h.b16 %v819
        %v2528 = vunpack.c.l.b16 %v820
        %v2529 = vunpack.c.h.b16 %v820
        %v2530 = vunpack.c.l.b16 %v821
        %v2531 = vunpack.c.l.b16 %v822
        %v2532 = vunpack.c.h.b16 %v822
        %v2533 = vunpack.c.l.b16 %v823
        %v2534 = vunpack.c.h.b16 %v823
        %v2535 = vunpack.c.l.b16 %v824
        %v2536 = vunpack.c.h.b16 %v824
        %v2537 = vunpack.c.l.b16 %v825
        %v2538 = vunpack.c.h.b16 %v825
        %v2539 = vunpack.c.l.b16 %v826
        %v2540 = vunpack.c.l.b16 %v827
        %v2541 = vunpack.c.h.b16 %v827
        %v2542 = vunpack.c.l.b16 %v828
        %v2543 = vunpack.c.h.b16 %v828
        %v2544 = vunpack.c.l.b16 %v829
        %v2545 = vunpack.c.h.b16 %v829
        %v2546 = vunpack.c.l.b16 %v830
        %v2547 = vunpack.c.h.b16 %v830
        %v2548 = vunpack.c.l.b16 %v831
        %v2549 = vunpack.c.l.b16 %v832
        %v2550 = vunpack.c.h.b16 %v832
        %v2551 = vunpack.c.l.b16 %v833
        %v2552 = vunpack.c.h.b16 %v833
        %v2553 = vunpack.c.l.b16 %v834
        %v2554 = vunpack.c.h.b16 %v834
        %v2555 = vunpack.c.l.b16 %v835
        %v2556 = vunpack.c.h.b16 %v835
        %v2557 = vunpack.c.l.b16 %v836
        %v2558 = vunpack.c.l.b16 %v837
        %v2559 = vunpack.c.h.b16 %v837
        %v2560 = vunpack.c.l.b16 %v838
        %v2561 = vunpack.c.h.b16 %v838
        %v2562 = vunpack.c.l.b16 %v839
        %v2563 = vunpack.c.h.b16 %v839
        %v2564 = vunpack.c.l.b16 %v840
        %v2565 = vunpack.c.h.b16 %v840
        %v2566 = vunpack.c.l.b16 %v841
        %v2567 = vunpack.c.l.b16 %v842
        %v2568 = vunpack.c.h.b16 %v842
        %v2569 = vunpack.c.l.b16 %v843
        %v2570 = vunpack.c.h.b16 %v843
        %v2571 = vunpack.c.l.b16 %v844
        %v2572 = vunpack.c.h.b16 %v844
        %v2573 = vunpack.c.l.b16 %v845
        %v2574 = vunpack.c.h.b16 %v845
        %v2575 = vunpack.c.l.b16 %v846
        %v2576 = vunpack.c.l.b16 %v847
        %v2577 = vunpack.c.h.b16 %v847
        %v2578 = vunpack.c.l.b16 %v848
        %v2579 = vunpack.c.h.b16 %v848
        %v2580 = vunpack.c.l.b16 %v849
        %v2581 = vunpack.c.h.b16 %v849
        %v2582 = vunpack.c.l.b16 %v850
        %v2583 = vunpack.c.h.b16 %v850
        %v2584 = vunpack.c.l.b16 %v851
        %v2585 = vunpack.c.l.b16 %v852
        %v2586 = vunpack.c.h.b16 %v852
        %v2587 = vunpack.c.l.b16 %v853
        %v2588 = vunpack.c.h.b16 %v853
        %v2589 = vunpack.c.l.b16 %v854
        %v2590 = vunpack.c.h.b16 %v854
        %v2591 = vunpack.c.l.b16 %v855
        %v2592 = vunpack.c.h.b16 %v855
        %v2593 = vunpack.c.l.b16 %v856
        %v2594 = vunpack.c.l.b16 %v857
        %v2595 = vunpack.c.h.b16 %v857
        %v2596 = vunpack.c.l.b16 %v858
        %v2597 = vunpack.c.h.b16 %v858
        %v2598 = vunpack.c.l.b16 %v859
        %v2599 = vunpack.c.h.b16 %v859
        %v2600 = vunpack.c.l.b16 %v860
        %v2601 = vunpack.c.h.b16 %v860
        %v2602 = vunpack.c.l.b16 %v861
        %v2603 = vunpack.c.l.b16 %v862
        %v2604 = vunpack.c.h.b16 %v862
        %v2605 = vunpack.c.l.b16 %v863
        %v2606 = vunpack.c.h.b16 %v863
        %v2607 = vunpack.c.l.b16 %v864
        %v2608 = vunpack.c.h.b16 %v864
        %v2609 = vunpack.c.l.b16 %v865
        %v2610 = vunpack.c.h.b16 %v865
        %v2611 = vunpack.c.l.b16 %v866
        %v2612 = vunpack.c.l.b16 %v867
        %v2613 = vunpack.c.h.b16 %v867
        %v2614 = vunpack.c.l.b16 %v868
        %v2615 = vunpack.c.h.b16 %v868
        %v2616 = vunpack.c.l.b16 %v869
        %v2617 = vunpack.c.h.b16 %v869
        %v2618 = vunpack.c.l.b16 %v870
        %v2619 = vunpack.c.h.b16 %v870
        %v2620 = vunpack.c.l.b16 %v871
        %v2621 = vunpack.c.l.b16 %v872
        %v2622 = vunpack.c.h.b16 %v872
        %v2623 = vunpack.c.l.b16 %v873
        %v2624 = vunpack.c.h.b16 %v873
        %v2625 = vunpack.c.l.b16 %v874
        %v2626 = vunpack.c.h.b16 %v874
        %v2627 = vunpack.c.l.b16 %v875
        %v2628 = vunpack.c.h.b16 %v875
        %v2629 = vunpack.c.l.b16 %v876
        %v2630 = vunpack.c.l.b16 %v877
        %v2631 = vunpack.c.h.b16 %v877
        %v2632 = vunpack.c.l.b16 %v878
        %v2633 = vunpack.c.h.b16 %v878
        %v2634 = vunpack.c.l.b16 %v879
        %v2635 = vunpack.c.h.b16 %v879
        %v2636 = vunpack.c.l.b16 %v880
        %v2637 = vunpack.c.h.b16 %v880
        %v2638 = vunpack.c.l.b16 %v881
        %v2639 = vunpack.c.l.b16 %v882
        %v2640 = vunpack.c.h.b16 %v882
        %v2641 = vunpack.c.l.b16 %v883
        %v2642 = vunpack.c.h.b16 %v883
        %v2643 = vunpack.c.l.b16 %v884
        %v2644 = vunpack.c.h.b16 %v884
        %v2645 = vunpack.c.l.b16 %v885
        %v2646 = vunpack.c.h.b16 %v885
        %v2647 = vunpack.c.l.b16 %v886
        %v2648 = vunpack.c.l.b16 %v887
        %v2649 = vunpack.c.h.b16 %v887
        %v2650 = vunpack.c.l.b16 %v888
        %v2651 = vunpack.c.h.b16 %v888
        %v2652 = vunpack.c.l.b16 %v889
        %v2653 = vunpack.c.h.b16 %v889
        %v2654 = vunpack.c.l.b16 %v890
        %v2655 = vunpack.c.h.b16 %v890
        %v2656 = vunpack.c.l.b16 %v891
        %v2657 = vunpack.c.l.b16 %v892
        %v2658 = vunpack.c.h.b16 %v892
        %v2659 = vunpack.c.l.b16 %v893
        %v2660 = vunpack.c.h.b16 %v893
        %v2661 = vunpack.c.l.b16 %v894
        %v2662 = vunpack.c.h.b16 %v894
        %v2663 = vunpack.c.l.b16 %v895
        %v2664 = vunpack.c.h.b16 %v895
        %v2665 = vunpack.c.l.b16 %v896
        %v2666 = vunpack.c.l.b16 %v897
        %v2667 = vunpack.c.h.b16 %v897
        %v2668 = vunpack.c.l.b16 %v898
        %v2669 = vunpack.c.h.b16 %v898
        %v2670 = vunpack.c.l.b16 %v899
        %v2671 = vunpack.c.h.b16 %v899
        %v2672 = vunpack.c.l.b16 %v900
        %v2673 = vunpack.c.h.b16 %v900
        %v2674 = vunpack.c.l.b16 %v901
        %v2675 = vunpack.c.l.b16 %v902
        %v2676 = vunpack.c.h.b16 %v902
        %v2677 = vunpack.c.l.b16 %v903
        %v2678 = vunpack.c.h.b16 %v903
        %v2679 = vunpack.c.l.b16 %v904
        %v2680 = vunpack.c.h.b16 %v904
        %v2681 = vunpack.c.l.b16 %v905
        %v2682 = vunpack.c.h.b16 %v905
        %v2683 = vunpack.c.l.b16 %v906
        %v2684 = vunpack.c.l.b16 %v907
        %v2685 = vunpack.c.h.b16 %v907
        %v2686 = vunpack.c.l.b16 %v908
        %v2687 = vunpack.c.h.b16 %v908
        %v2688 = vunpack.c.l.b16 %v909
        %v2689 = vunpack.c.h.b16 %v909
        %v2690 = vunpack.c.l.b16 %v910
        %v2691 = vunpack.c.h.b16 %v910
        %v2692 = vunpack.c.l.b16 %v911
        %v2693 = vunpack.c.l.b16 %v912
        %v2694 = vunpack.c.h.b16 %v912
        %v2695 = vunpack.c.l.b16 %v913
        %v2696 = vunpack.c.h.b16 %v913
        %v2697 = vunpack.c.l.b16 %v914
        %v2698 = vunpack.c.h.b16 %v914
        %v2699 = vunpack.c.l.b16 %v915
        %v2700 = vunpack.c.h.b16 %v915
        %v2701 = vunpack.c.l.b16 %v916
        %v2702 = vunpack.c.l.b16 %v917
        %v2703 = vunpack.c.h.b16 %v917
        %v2704 = vunpack.c.l.b16 %v918
        %v2705 = vunpack.c.h.b16 %v918
        %v2706 = vunpack.c.l.b16 %v919
        %v2707 = vunpack.c.h.b16 %v919
        %v2708 = vunpack.c.l.b16 %v920
        %v2709 = vunpack.c.h.b16 %v920
        %v2710 = vunpack.c.l.b16 %v921
        %v2711 = vunpack.c.l.b16 %v922
        %v2712 = vunpack.c.h.b16 %v922
        %v2713 = vunpack.c.l.b16 %v923
        %v2714 = vunpack.c.h.b16 %v923
        %v2715 = vunpack.c.l.b16 %v924
        %v2716 = vunpack.c.h.b16 %v924
        %v2717 = vunpack.c.l.b16 %v925
        %v2718 = vunpack.c.h.b16 %v925
        %v2719 = vunpack.c.l.b16 %v926
        %v2720 = vunpack.c.l.b16 %v927
        %v2721 = vunpack.c.h.b16 %v927
        %v2722 = vunpack.c.l.b16 %v928
        %v2723 = vunpack.c.h.b16 %v928
        %v2724 = vunpack.c.l.b16 %v929
        %v2725 = vunpack.c.h.b16 %v929
        %v2726 = vunpack.c.l.b16 %v930
        %v2727 = vunpack.c.h.b16 %v930
        %v2728 = vunpack.c.l.b16 %v931
        %v2729 = vunpack.c.l.b16 %v932
        %v2730 = vunpack.c.h.b16 %v932
        %v2731 = vunpack.c.l.b16 %v933
        %v2732 = vunpack.c.h.b16 %v933
        %v2733 = vunpack.c.l.b16 %v934
        %v2734 = vunpack.c.h.b16 %v934
        %v2735 = vunpack.c.l.b16 %v935
        %v2736 = vunpack.c.h.b16 %v935
        %v2737 = vunpack.c.l.b16 %v936
        %v2738 = vunpack.c.l.b16 %v937
        %v2739 = vunpack.c.h.b16 %v937
        %v2740 = vunpack.c.l.b16 %v938
        %v2741 = vunpack.c.h.b16 %v938
        %v2742 = vunpack.c.l.b16 %v939
        %v2743 = vunpack.c.h.b16 %v939
        %v2744 = vunpack.c.l.b16 %v940
        %v2745 = vunpack.c.h.b16 %v940
        %v2746 = vunpack.c.l.b16 %v941
        %v2747 = vunpack.c.l.b16 %v942
        %v2748 = vunpack.c.h.b16 %v942
        %v2749 = vunpack.c.l.b16 %v943
        %v2750 = vunpack.c.h.b16 %v943
        %v2751 = vunpack.c.l.b16 %v944
        %v2752 = vunpack.c.h.b16 %v944
        %v2753 = vunpack.c.l.b16 %v945
        %v2754 = vunpack.c.h.b16 %v945
        %v2755 = vunpack.c.l.b16 %v946
        %v2756 = vunpack.c.l.b16 %v947
        %v2757 = vunpack.c.h.b16 %v947
        %v2758 = vunpack.c.l.b16 %v948
        %v2759 = vunpack.c.h.b16 %v948
        %v2760 = vunpack.c.l.b16 %v949
        %v2761 = vunpack.c.h.b16 %v949
        %v2762 = vunpack.c.l.b16 %v950
        %v2763 = vunpack.c.h.b16 %v950
        %v2764 = vunpack.c.l.b16 %v951
        %v2765 = vunpack.c.l.b16 %v952
        %v2766 = vunpack.c.h.b16 %v952
        %v2767 = vunpack.c.l.b16 %v953
        %v2768 = vunpack.c.h.b16 %v953
        %v2769 = vunpack.c.l.b16 %v954
        %v2770 = vunpack.c.h.b16 %v954
        %v2771 = vunpack.c.l.b16 %v955
        %v2772 = vunpack.c.h.b16 %v955
        %v2773 = vunpack.c.l.b16 %v956
        %v2774 = vunpack.c.l.b16 %v957
        %v2775 = vunpack.c.h.b16 %v957
        %v2776 = vunpack.c.l.b16 %v958
        %v2777 = vunpack.c.h.b16 %v958
        %v2778 = vunpack.c.l.b16 %v959
        %v2779 = vunpack.c.h.b16 %v959
        %v2780 = vunpack.c.l.b16 %v960
        %v2781 = vunpack.c.h.b16 %v960
        %v2782 = vunpack.c.l.b16 %v961
        %v2783 = vunpack.c.l.b16 %v962
        %v2784 = vunpack.c.h.b16 %v962
        %v2785 = vunpack.c.l.b16 %v963
        %v2786 = vunpack.c.h.b16 %v963
        %v2787 = vunpack.c.l.b16 %v964
        %v2788 = vunpack.c.h.b16 %v964
        %v2789 = vunpack.c.l.b16 %v965
        %v2790 = vunpack.c.h.b16 %v965
        %v2791 = vunpack.c.l.b16 %v966
        %v2792 = vunpack.c.l.b16 %v967
        %v2793 = vunpack.c.h.b16 %v967
        %v2794 = vunpack.c.l.b16 %v968
        %v2795 = vunpack.c.h.b16 %v968
        %v2796 = vunpack.c.l.b16 %v969
        %v2797 = vunpack.c.h.b16 %v969
        %v2798 = vunpack.c.l.b16 %v970
        %v2799 = vunpack.c.h.b16 %v970
        %v2800 = vunpack.c.l.b16 %v971
        %v2801 = vunpack.c.l.b16 %v972
        %v2802 = vunpack.c.h.b16 %v972
        %v2803 = vunpack.c.l.b16 %v973
        %v2804 = vunpack.c.h.b16 %v973
        %v2805 = vunpack.c.l.b16 %v974
        %v2806 = vunpack.c.h.b16 %v974
        %v2807 = vunpack.c.l.b16 %v975
        %v2808 = vunpack.c.h.b16 %v975
        %v2809 = vunpack.c.l.b16 %v976
        %v2810 = vunpack.c.l.b16 %v977
        %v2811 = vunpack.c.h.b16 %v977
        %v2812 = vunpack.c.l.b16 %v978
        %v2813 = vunpack.c.h.b16 %v978
        %v2814 = vunpack.c.l.b16 %v979
        %v2815 = vunpack.c.h.b16 %v979
        %v2816 = vunpack.c.l.b16 %v980
        %v2817 = vunpack.c.h.b16 %v980
        %v2818 = vunpack.c.l.b16 %v981
        %v2819 = vunpack.c.l.b16 %v982
        %v2820 = vunpack.c.h.b16 %v982
        %v2821 = vunpack.c.l.b16 %v983
        %v2822 = vunpack.c.h.b16 %v983
        %v2823 = vunpack.c.l.b16 %v984
        %v2824 = vunpack.c.h.b16 %v984
        %v2825 = vunpack.c.l.b16 %v985
        %v2826 = vunpack.c.h.b16 %v985
        %v2827 = vunpack.c.l.b16 %v986
        %v2828 = vunpack.c.l.b16 %v987
        %v2829 = vunpack.c.h.b16 %v987
        %v2830 = vunpack.c.l.b16 %v988
        %v2831 = vunpack.c.h.b16 %v988
        %v2832 = vunpack.c.l.b16 %v989
        %v2833 = vunpack.c.h.b16 %v989
        %v2834 = vunpack.c.l.b16 %v990
        %v2835 = vunpack.c.h.b16 %v990
        %v2836 = vunpack.c.l.b16 %v991
        %v2837 = vunpack.c.l.b16 %v992
        %v2838 = vunpack.c.h.b16 %v992
        %v2839 = vunpack.c.l.b16 %v993
        %v2840 = vunpack.c.h.b16 %v993
        %v2841 = vunpack.c.l.b16 %v994
        %v2842 = vunpack.c.h.b16 %v994
        %v2843 = vunpack.c.l.b16 %v995
        %v2844 = vunpack.c.h.b16 %v995
        %v2845 = vunpack.c.l.b16 %v996
        %v2846 = vunpack.c.l.b16 %v997
        %v2847 = vunpack.c.h.b16 %v997
        %v2848 = vunpack.c.l.b16 %v998
        %v2849 = vunpack.c.h.b16 %v998
        %v2850 = vunpack.c.l.b16 %v999
        %v2851 = vunpack.c.h.b16 %v999
        %v2852 = vunpack.c.l.b16 %v1000
        %v2853 = vunpack.c.h.b16 %v1000
        %v2854 = vunpack.c.l.b16 %v1001
        %v2855 = vunpack.c.l.b16 %v1002
        %v2856 = vunpack.c.h.b16 %v1002
        %v2857 = vunpack.c.l.b16 %v1003
        %v2858 = vunpack.c.h.b16 %v1003
        %v2859 = vunpack.c.l.b16 %v1004
        %v2860 = vunpack.c.h.b16 %v1004
        %v2861 = vunpack.c.l.b16 %v1005
        %v2862 = vunpack.c.h.b16 %v1005
        %v2863 = vunpack.c.l.b16 %v1006
        %v2864 = vunpack.c.l.b16 %v1007
        %v2865 = vunpack.c.h.b16 %v1007
        %v2866 = vunpack.c.l.b16 %v1008
        %v2867 = vunpack.c.h.b16 %v1008
        %v2868 = vunpack.c.l.b16 %v1009
        %v2869 = vunpack.c.h.b16 %v1009
        %v2870 = vunpack.c.l.b16 %v1010
        %v2871 = vunpack.c.h.b16 %v1010
        %v2872 = vunpack.c.l.b16 %v1011
        %v2873 = vunpack.c.l.b16 %v1012
        %v2874 = vunpack.c.h.b16 %v1012
        %v2875 = vunpack.c.l.b16 %v1013
        %v2876 = vunpack.c.h.b16 %v1013
        %v2877 = vunpack.c.l.b16 %v1014
        %v2878 = vunpack.c.h.b16 %v1014
        %v2879 = vunpack.c.l.b16 %v1015
        %v2880 = vunpack.c.h.b16 %v1015
        %v2881 = vunpack.c.l.b16 %v1016
        %v2882 = vunpack.c.l.b16 %v1017
        %v2883 = vunpack.c.h.b16 %v1017
        %v2884 = vunpack.c.l.b16 %v1018
        %v2885 = vunpack.c.h.b16 %v1018
        %v2886 = vunpack.c.l.b16 %v1019
        %v2887 = vunpack.c.h.b16 %v1019
        %v2888 = vunpack.c.l.b16 %v1020
        %v2889 = vunpack.c.h.b16 %v1020
        %v2890 = vunpack.c.l.b16 %v1021
        %v2891 = vunpack.c.l.b16 %v1022
        %v2892 = vunpack.c.h.b16 %v1022
        %v2893 = vunpack.c.l.b16 %v1023
        %v2894 = vunpack.c.h.b16 %v1023
        %v2895 = vunpack.c.l.b16 %v1024
        %v2896 = vunpack.c.h.b16 %v1024
        %v2897 = vunpack.c.l.b16 %v1025
        %v2898 = vunpack.c.h.b16 %v1025
        %v2899 = vunpack.c.l.b16 %v1026
        %v2900 = vunpack.c.l.b16 %v1027
        %v2901 = vunpack.c.h.b16 %v1027
        %v2902 = vunpack.c.l.b16 %v1028
        %v2903 = vunpack.c.h.b16 %v1028
        %v2904 = vunpack.c.l.b16 %v1029
        %v2905 = vunpack.c.h.b16 %v1029
        %v2906 = vunpack.c.l.b16 %v1030
        %v2907 = vunpack.c.h.b16 %v1030
        %v2908 = vunpack.c.l.b16 %v1031
        %v2909 = vunpack.c.l.b16 %v1032
        %v2910 = vunpack.c.h.b16 %v1032
        %v2911 = vunpack.c.l.b16 %v1033
        %v2912 = vunpack.c.h.b16 %v1033
        %v2913 = vunpack.c.l.b16 %v1034
        %v2914 = vunpack.c.h.b16 %v1034
        %v2915 = vunpack.c.l.b16 %v1035
        %v2916 = vunpack.c.h.b16 %v1035
        %v2917 = vunpack.c.l.b16 %v1036
        %v2918 = vunpack.c.l.b16 %v1037
        %v2919 = vunpack.c.h.b16 %v1037
        %v2920 = vunpack.c.l.b16 %v1038
        %v2921 = vunpack.c.h.b16 %v1038
        %v2922 = vunpack.c.l.b16 %v1039
        %v2923 = vunpack.c.h.b16 %v1039
        %v2924 = vunpack.c.l.b16 %v1040
        %v2925 = vunpack.c.h.b16 %v1040
        %v2926 = vunpack.c.l.b16 %v1041
        %v2927 = vunpack.c.l.b16 %v1042
        %v2928 = vunpack.c.h.b16 %v1042
        %v2929 = vunpack.c.l.b16 %v1043
        %v2930 = vunpack.c.h.b16 %v1043
        %v2931 = vunpack.c.l.b16 %v1044
        %v2932 = vunpack.c.h.b16 %v1044
        %v2933 = vunpack.c.l.b16 %v1045
        %v2934 = vunpack.c.h.b16 %v1045
        %v2935 = vunpack.c.l.b16 %v1046
        %v2936 = vunpack.c.l.b16 %v1047
        %v2937 = vunpack.c.h.b16 %v1047
        %v2938 = vunpack.c.l.b16 %v1048
        %v2939 = vunpack.c.h.b16 %v1048
        %v2940 = vunpack.c.l.b16 %v1049
        %v2941 = vunpack.c.h.b16 %v1049
        %v2942 = vunpack.c.l.b16 %v1050
        %v2943 = vunpack.c.h.b16 %v1050
        %v2944 = vunpack.c.l.b16 %v1051
        %v2945 = vpack.c.b16 %v1766, %v1757
        %v2946 = vpack.c.b16 %v1767, %v1758
        %v2947 = vpack.c.b16 %v1768, %v1759
        %v2948 = vpack.c.b16 %v1769, %v1760
        %v2949 = vpack.c.b16 %v1770, %v1761
        %v2950 = vpack.c.b16 %v1771, %v1762
        %v2951 = vpack.c.b16 %v1772, %v1763
        %v2952 = vpack.c.b16 %v1773, %v1764
        %v2953 = vpack.c.b16 %v1774, %v1765
        %v2954 = vpack.c.b16 %v1784, %v1775
        %v2955 = vpack.c.b16 %v1785, %v1776
        %v2956 = vpack.c.b16 %v1786, %v1777
        %v2957 = vpack.c.b16 %v1787, %v1778
        %v2958 = vpack.c.b16 %v1788, %v1779
        %v2959 = vpack.c.b16 %v1789, %v1780
        %v2960 = vpack.c.b16 %v1790, %v1781
        %v2961 = vpack.c.b16 %v1791, %v1782
        %v2962 = vpack.c.b16 %v1792, %v1783
        %v2963 = vpack.c.b16 %v1802, %v1793
        %v2964 = vpack.c.b16 %v1803, %v1794
        %v2965 = vpack.c.b16 %v1804, %v1795
        %v2966 = vpack.c.b16 %v1805, %v1796
        %v2967 = vpack.c.b16 %v1806, %v1797
        %v2968 = vpack.c.b16 %v1807, %v1798
        %v2969 = vpack.c.b16 %v1808, %v1799
        %v2970 = vpack.c.b16 %v1809, %v1800
        %v2971 = vpack.c.b16 %v1810, %v1801
        %v2972 = vpack.c.b16 %v1820, %v1811
        %v2973 = vpack.c.b16 %v1821, %v1812
        %v2974 = vpack.c.b16 %v1822, %v1813
        %v2975 = vpack.c.b16 %v1823, %v1814
        %v2976 = vpack.c.b16 %v1824, %v1815
        %v2977 = vpack.c.b16 %v1825, %v1816
        %v2978 = vpack.c.b16 %v1826, %v1817
        %v2979 = vpack.c.b16 %v1827, %v1818
        %v2980 = vpack.c.b16 %v1828, %v1819
        %v2981 = vpack.c.b16 %v1838, %v1829
        %v2982 = vpack.c.b16 %v1839, %v1830
        %v2983 = vpack.c.b16 %v1840, %v1831
        %v2984 = vpack.c.b16 %v1841, %v1832
        %v2985 = vpack.c.b16 %v1842, %v1833
        %v2986 = vpack.c.b16 %v1843, %v1834
        %v2987 = vpack.c.b16 %v1844, %v1835
        %v2988 = vpack.c.b16 %v1845, %v1836
        %v2989 = vpack.c.b16 %v1846, %v1837
        %v2990 = vpack.c.b16 %v1856, %v1847
        %v2991 = vpack.c.b16 %v1857, %v1848
        %v2992 = vpack.c.b16 %v1858, %v1849
        %v2993 = vpack.c.b16 %v1859, %v1850
        %v2994 = vpack.c.b16 %v1860, %v1851
        %v2995 = vpack.c.b16 %v1861, %v1852
        %v2996 = vpack.c.b16 %v1862, %v1853
        %v2997 = vpack.c.b16 %v1863, %v1854
        %v2998 = vpack.c.b16 %v1864, %v1855
        %v2999 = vpack.c.b16 %v1874, %v1865
        %v3000 = vpack.c.b16 %v1875, %v1866
        %v3001 = vpack.c.b16 %v1876, %v1867
        %v3002 = vpack.c.b16 %v1877, %v1868
        %v3003 = vpack.c.b16 %v1878, %v1869
        %v3004 = vpack.c.b16 %v1879, %v1870
        %v3005 = vpack.c.b16 %v1880, %v1871
        %v3006 = vpack.c.b16 %v1881, %v1872
        %v3007 = vpack.c.b16 %v1882, %v1873
        %v3008 = vpack.c.b16 %v1892, %v1883
        %v3009 = vpack.c.b16 %v1893, %v1884
        %v3010 = vpack.c.b16 %v1894, %v1885
        %v3011 = vpack.c.b16 %v1895, %v1886
        %v3012 = vpack.c.b16 %v1896, %v1887
        %v3013 = vpack.c.b16 %v1897, %v1888
        %v3014 = vpack.c.b16 %v1898, %v1889
        %v3015 = vpack.c.b16 %v1899, %v1890
        %v3016 = vpack.c.b16 %v1900, %v1891
        %v3017 = vpack.c.b16 %v1910, %v1901
        %v3018 = vpack.c.b16 %v1911, %v1902
        %v3019 = vpack.c.b16 %v1912, %v1903
        %v3020 = vpack.c.b16 %v1913, %v1904
        %v3021 = vpack.c.b16 %v1914, %v1905
        %v3022 = vpack.c.b16 %v1915, %v1906
        %v3023 = vpack.c.b16 %v1916, %v1907
        %v3024 = vpack.c.b16 %v1917, %v1908
        %v3025 = vpack.c.b16 %v1918, %v1909
        %v3026 = vpack.c.b16 %v1928, %v1919
        %v3027 = vpack.c.b16 %v1929, %v1920
        %v3028 = vpack.c.b16 %v1930, %v1921
        %v3029 = vpack.c.b16 %v1931, %v1922
        %v3030 = vpack.c.b16 %v1932, %v1923
        %v3031 = vpack.c.b16 %v1933, %v1924
        %v3032 = vpack.c.b16 %v1934, %v1925
        %v3033 = vpack.c.b16 %v1935, %v1926
        %v3034 = vpack.c.b16 %v1936, %v1927
        %v3035 = vpack.c.b16 %v1946, %v1937
        %v3036 = vpack.c.b16 %v1947, %v1938
        %v3037 = vpack.c.b16 %v1948, %v1939
        %v3038 = vpack.c.b16 %v1949, %v1940
        %v3039 = vpack.c.b16 %v1950, %v1941
        %v3040 = vpack.c.b16 %v1951, %v1942
        %v3041 = vpack.c.b16 %v1952, %v1943
        %v3042 = vpack.c.b16 %v1953, %v1944
        %v3043 = vpack.c.b16 %v1954, %v1945
        %v3044 = vpack.c.b16 %v1964, %v1955
        %v3045 = vpack.c.b16 %v1965, %v1956
        %v3046 = vpack.c.b16 %v1966, %v1957
        %v3047 = vpack.c.b16 %v1967, %v1958
        %v3048 = vpack.c.b16 %v1968, %v1959
        %v3049 = vpack.c.b16 %v1969, %v1960
        %v3050 = vpack.c.b16 %v1970, %v1961
        %v3051 = vpack.c.b16 %v1971, %v1962
        %v3052 = vpack.c.b16 %v1972, %v1963
        %v3053 = vpack.c.b16 %v1982, %v1973
        %v3054 = vpack.c.b16 %v1983, %v1974
        %v3055 = vpack.c.b16 %v1984, %v1975
        %v3056 = vpack.c.b16 %v1985, %v1976
        %v3057 = vpack.c.b16 %v1986, %v1977
        %v3058 = vpack.c.b16 %v1987, %v1978
        %v3059 = vpack.c.b16 %v1988, %v1979
        %v3060 = vpack.c.b16 %v1989, %v1980
        %v3061 = vpack.c.b16 %v1990, %v1981
        %v3062 = vpack.c.b16 %v2000, %v1991
        %v3063 = vpack.c.b16 %v2001, %v1992
        %v3064 = vpack.c.b16 %v2002, %v1993
        %v3065 = vpack.c.b16 %v2003, %v1994
        %v3066 = vpack.c.b16 %v2004, %v1995
        %v3067 = vpack.c.b16 %v2005, %v1996
        %v3068 = vpack.c.b16 %v2006, %v1997
        %v3069 = vpack.c.b16 %v2007, %v1998
        %v3070 = vpack.c.b16 %v2008, %v1999
        %v3071 = vpack.c.b16 %v2018, %v2009
        %v3072 = vpack.c.b16 %v2019, %v2010
        %v3073 = vpack.c.b16 %v2020, %v2011
        %v3074 = vpack.c.b16 %v2021, %v2012
        %v3075 = vpack.c.b16 %v2022, %v2013
        %v3076 = vpack.c.b16 %v2023, %v2014
        %v3077 = vpack.c.b16 %v2024, %v2015
        %v3078 = vpack.c.b16 %v2025, %v2016
        %v3079 = vpack.c.b16 %v2026, %v2017
        %v3080 = vpack.c.b16 %v2036, %v2027
        %v3081 = vpack.c.b16 %v2037, %v2028
        %v3082 = vpack.c.b16 %v2038, %v2029
        %v3083 = vpack.c.b16 %v2039, %v2030
        %v3084 = vpack.c.b16 %v2040, %v2031
        %v3085 = vpack.c.b16 %v2041, %v2032
        %v3086 = vpack.c.b16 %v2042, %v2033
        %v3087 = vpack.c.b16 %v2043, %v2034
        %v3088 = vpack.c.b16 %v2044, %v2035
        %v3089 = vpack.c.b16 %v2054, %v2045
        %v3090 = vpack.c.b16 %v2055, %v2046
        %v3091 = vpack.c.b16 %v2056, %v2047
        %v3092 = vpack.c.b16 %v2057, %v2048
        %v3093 = vpack.c.b16 %v2058, %v2049
        %v3094 = vpack.c.b16 %v2059, %v2050
        %v3095 = vpack.c.b16 %v2060, %v2051
        %v3096 = vpack.c.b16 %v2061, %v2052
        %v3097 = vpack.c.b16 %v2062, %v2053
        %v3098 = vpack.c.b16 %v2072, %v2063
        %v3099 = vpack.c.b16 %v2073, %v2064
        %v3100 = vpack.c.b16 %v2074, %v2065
        %v3101 = vpack.c.b16 %v2075, %v2066
        %v3102 = vpack.c.b16 %v2076, %v2067
        %v3103 = vpack.c.b16 %v2077, %v2068
        %v3104 = vpack.c.b16 %v2078, %v2069
        %v3105 = vpack.c.b16 %v2079, %v2070
        %v3106 = vpack.c.b16 %v2080, %v2071
        %v3107 = vpack.c.b16 %v2090, %v2081
        %v3108 = vpack.c.b16 %v2091, %v2082
        %v3109 = vpack.c.b16 %v2092, %v2083
        %v3110 = vpack.c.b16 %v2093, %v2084
        %v3111 = vpack.c.b16 %v2094, %v2085
        %v3112 = vpack.c.b16 %v2095, %v2086
        %v3113 = vpack.c.b16 %v2096, %v2087
        %v3114 = vpack.c.b16 %v2097, %v2088
        %v3115 = vpack.c.b16 %v2098, %v2089
        %v3116 = vpack.c.b16 %v2108, %v2099
        %v3117 = vpack.c.b16 %v2109, %v2100
        %v3118 = vpack.c.b16 %v2110, %v2101
        %v3119 = vpack.c.b16 %v2111, %v2102
        %v3120 = vpack.c.b16 %v2112, %v2103
        %v3121 = vpack.c.b16 %v2113, %v2104
        %v3122 = vpack.c.b16 %v2114, %v2105
        %v3123 = vpack.c.b16 %v2115, %v2106
        %v3124 = vpack.c.b16 %v2116, %v2107
        %v3125 = vpack.c.b16 %v2126, %v2117
        %v3126 = vpack.c.b16 %v2127, %v2118
        %v3127 = vpack.c.b16 %v2128, %v2119
        %v3128 = vpack.c.b16 %v2129, %v2120
        %v3129 = vpack.c.b16 %v2130, %v2121
        %v3130 = vpack.c.b16 %v2131, %v2122
        %v3131 = vpack.c.b16 %v2132, %v2123
        %v3132 = vpack.c.b16 %v2133, %v2124
        %v3133 = vpack.c.b16 %v2134, %v2125
        %v3134 = vpack.c.b16 %v2144, %v2135
        %v3135 = vpack.c.b16 %v2145, %v2136
        %v3136 = vpack.c.b16 %v2146, %v2137
        %v3137 = vpack.c.b16 %v2147, %v2138
        %v3138 = vpack.c.b16 %v2148, %v2139
        %v3139 = vpack.c.b16 %v2149, %v2140
        %v3140 = vpack.c.b16 %v2150, %v2141
        %v3141 = vpack.c.b16 %v2151, %v2142
        %v3142 = vpack.c.b16 %v2152, %v2143
        %v3143 = vpack.c.b16 %v2162, %v2153
        %v3144 = vpack.c.b16 %v2163, %v2154
        %v3145 = vpack.c.b16 %v2164, %v2155
        %v3146 = vpack.c.b16 %v2165, %v2156
        %v3147 = vpack.c.b16 %v2166, %v2157
        %v3148 = vpack.c.b16 %v2167, %v2158
        %v3149 = vpack.c.b16 %v2168, %v2159
        %v3150 = vpack.c.b16 %v2169, %v2160
        %v3151 = vpack.c.b16 %v2170, %v2161
        %v3152 = vpack.c.b16 %v2180, %v2171
        %v3153 = vpack.c.b16 %v2181, %v2172
        %v3154 = vpack.c.b16 %v2182, %v2173
        %v3155 = vpack.c.b16 %v2183, %v2174
        %v3156 = vpack.c.b16 %v2184, %v2175
        %v3157 = vpack.c.b16 %v2185, %v2176
        %v3158 = vpack.c.b16 %v2186, %v2177
        %v3159 = vpack.c.b16 %v2187, %v2178
        %v3160 = vpack.c.b16 %v2188, %v2179
        %v3161 = vpack.c.b16 %v2198, %v2189
        %v3162 = vpack.c.b16 %v2199, %v2190
        %v3163 = vpack.c.b16 %v2200, %v2191
        %v3164 = vpack.c.b16 %v2201, %v2192
        %v3165 = vpack.c.b16 %v2202, %v2193
        %v3166 = vpack.c.b16 %v2203, %v2194
        %v3167 = vpack.c.b16 %v2204, %v2195
        %v3168 = vpack.c.b16 %v2205, %v2196
        %v3169 = vpack.c.b16 %v2206, %v2197
        %v3170 = vpack.c.b16 %v2216, %v2207
        %v3171 = vpack.c.b16 %v2217, %v2208
        %v3172 = vpack.c.b16 %v2218, %v2209
        %v3173 = vpack.c.b16 %v2219, %v2210
        %v3174 = vpack.c.b16 %v2220, %v2211
        %v3175 = vpack.c.b16 %v2221, %v2212
        %v3176 = vpack.c.b16 %v2222, %v2213
        %v3177 = vpack.c.b16 %v2223, %v2214
        %v3178 = vpack.c.b16 %v2224, %v2215
        %v3179 = vpack.c.b16 %v2234, %v2225
        %v3180 = vpack.c.b16 %v2235, %v2226
        %v3181 = vpack.c.b16 %v2236, %v2227
        %v3182 = vpack.c.b16 %v2237, %v2228
        %v3183 = vpack.c.b16 %v2238, %v2229
        %v3184 = vpack.c.b16 %v2239, %v2230
        %v3185 = vpack.c.b16 %v2240, %v2231
        %v3186 = vpack.c.b16 %v2241, %v2232
        %v3187 = vpack.c.b16 %v2242, %v2233
        %v3188 = vpack.c.b16 %v2252, %v2243
        %v3189 = vpack.c.b16 %v2253, %v2244
        %v3190 = vpack.c.b16 %v2254, %v2245
        %v3191 = vpack.c.b16 %v2255, %v2246
        %v3192 = vpack.c.b16 %v2256, %v2247
        %v3193 = vpack.c.b16 %v2257, %v2248
        %v3194 = vpack.c.b16 %v2258, %v2249
        %v3195 = vpack.c.b16 %v2259, %v2250
        %v3196 = vpack.c.b16 %v2260, %v2251
        %v3197 = vpack.c.b16 %v2270, %v2261
        %v3198 = vpack.c.b16 %v2271, %v2262
        %v3199 = vpack.c.b16 %v2272, %v2263
        %v3200 = vpack.c.b16 %v2273, %v2264
        %v3201 = vpack.c.b16 %v2274, %v2265
        %v3202 = vpack.c.b16 %v2275, %v2266
        %v3203 = vpack.c.b16 %v2276, %v2267
        %v3204 = vpack.c.b16 %v2277, %v2268
        %v3205 = vpack.c.b16 %v2278, %v2269
        %v3206 = vpack.c.b16 %v2288, %v2279
        %v3207 = vpack.c.b16 %v2289, %v2280
        %v3208 = vpack.c.b16 %v2290, %v2281
        %v3209 = vpack.c.b16 %v2291, %v2282
        %v3210 = vpack.c.b16 %v2292, %v2283
        %v3211 = vpack.c.b16 %v2293, %v2284
        %v3212 = vpack.c.b16 %v2294, %v2285
        %v3213 = vpack.c.b16 %v2295, %v2286
        %v3214 = vpack.c.b16 %v2296, %v2287
        %v3215 = vpack.c.b16 %v2306, %v2297
        %v3216 = vpack.c.b16 %v2307, %v2298
        %v3217 = vpack.c.b16 %v2308, %v2299
        %v3218 = vpack.c.b16 %v2309, %v2300
        %v3219 = vpack.c.b16 %v2310, %v2301
        %v3220 = vpack.c.b16 %v2311, %v2302
        %v3221 = vpack.c.b16 %v2312, %v2303
        %v3222 = vpack.c.b16 %v2313, %v2304
        %v3223 = vpack.c.b16 %v2314, %v2305
        %v3224 = vpack.c.b16 %v2324, %v2315
        %v3225 = vpack.c.b16 %v2325, %v2316
        %v3226 = vpack.c.b16 %v2326, %v2317
        %v3227 = vpack.c.b16 %v2327, %v2318
        %v3228 = vpack.c.b16 %v2328, %v2319
        %v3229 = vpack.c.b16 %v2329, %v2320
        %v3230 = vpack.c.b16 %v2330, %v2321
        %v3231 = vpack.c.b16 %v2331, %v2322
        %v3232 = vpack.c.b16 %v2332, %v2323
        %v3233 = vpack.c.b16 %v2342, %v2333
        %v3234 = vpack.c.b16 %v2343, %v2334
        %v3235 = vpack.c.b16 %v2344, %v2335
        %v3236 = vpack.c.b16 %v2345, %v2336
        %v3237 = vpack.c.b16 %v2346, %v2337
        %v3238 = vpack.c.b16 %v2347, %v2338
        %v3239 = vpack.c.b16 %v2348, %v2339
        %v3240 = vpack.c.b16 %v2349, %v2340
        %v3241 = vpack.c.b16 %v2350, %v2341
        %v3242 = vpack.c.b16 %v2360, %v2351
        %v3243 = vpack.c.b16 %v2361, %v2352
        %v3244 = vpack.c.b16 %v2362, %v2353
        %v3245 = vpack.c.b16 %v2363, %v2354
        %v3246 = vpack.c.b16 %v2364, %v2355
        %v3247 = vpack.c.b16 %v2365, %v2356
        %v3248 = vpack.c.b16 %v2366, %v2357
        %v3249 = vpack.c.b16 %v2367, %v2358
        %v3250 = vpack.c.b16 %v2368, %v2359
        %v3251 = vpack.c.b16 %v2378, %v2369
        %v3252 = vpack.c.b16 %v2379, %v2370
        %v3253 = vpack.c.b16 %v2380, %v2371
        %v3254 = vpack.c.b16 %v2381, %v2372
        %v3255 = vpack.c.b16 %v2382, %v2373
        %v3256 = vpack.c.b16 %v2383, %v2374
        %v3257 = vpack.c.b16 %v2384, %v2375
        %v3258 = vpack.c.b16 %v2385, %v2376
        %v3259 = vpack.c.b16 %v2386, %v2377
        %v3260 = vpack.c.b16 %v2396, %v2387
        %v3261 = vpack.c.b16 %v2397, %v2388
        %v3262 = vpack.c.b16 %v2398, %v2389
        %v3263 = vpack.c.b16 %v2399, %v2390
        %v3264 = vpack.c.b16 %v2400, %v2391
        %v3265 = vpack.c.b16 %v2401, %v2392
        %v3266 = vpack.c.b16 %v2402, %v2393
        %v3267 = vpack.c.b16 %v2403, %v2394
        %v3268 = vpack.c.b16 %v2404, %v2395
        %v3269 = vpack.c.b16 %v2414, %v2405
        %v3270 = vpack.c.b16 %v2415, %v2406
        %v3271 = vpack.c.b16 %v2416, %v2407
        %v3272 = vpack.c.b16 %v2417, %v2408
        %v3273 = vpack.c.b16 %v2418, %v2409
        %v3274 = vpack.c.b16 %v2419, %v2410
        %v3275 = vpack.c.b16 %v2420, %v2411
        %v3276 = vpack.c.b16 %v2421, %v2412
        %v3277 = vpack.c.b16 %v2422, %v2413
        %v3278 = vpack.c.b16 %v2432, %v2423
        %v3279 = vpack.c.b16 %v2433, %v2424
        %v3280 = vpack.c.b16 %v2434, %v2425
        %v3281 = vpack.c.b16 %v2435, %v2426
        %v3282 = vpack.c.b16 %v2436, %v2427
        %v3283 = vpack.c.b16 %v2437, %v2428
        %v3284 = vpack.c.b16 %v2438, %v2429
        %v3285 = vpack.c.b16 %v2439, %v2430
        %v3286 = vpack.c.b16 %v2440, %v2431
        %v3287 = vpack.c.b16 %v2450, %v2441
        %v3288 = vpack.c.b16 %v2451, %v2442
        %v3289 = vpack.c.b16 %v2452, %v2443
        %v3290 = vpack.c.b16 %v2453, %v2444
        %v3291 = vpack.c.b16 %v2454, %v2445
        %v3292 = vpack.c.b16 %v2455, %v2446
        %v3293 = vpack.c.b16 %v2456, %v2447
        %v3294 = vpack.c.b16 %v2457, %v2448
        %v3295 = vpack.c.b16 %v2458, %v2449
        %v3296 = vpack.c.b16 %v2468, %v2459
        %v3297 = vpack.c.b16 %v2469, %v2460
        %v3298 = vpack.c.b16 %v2470, %v2461
        %v3299 = vpack.c.b16 %v2471, %v2462
        %v3300 = vpack.c.b16 %v2472, %v2463
        %v3301 = vpack.c.b16 %v2473, %v2464
        %v3302 = vpack.c.b16 %v2474, %v2465
        %v3303 = vpack.c.b16 %v2475, %v2466
        %v3304 = vpack.c.b16 %v2476, %v2467
        %v3305 = vpack.c.b16 %v2486, %v2477
        %v3306 = vpack.c.b16 %v2487, %v2478
        %v3307 = vpack.c.b16 %v2488, %v2479
        %v3308 = vpack.c.b16 %v2489, %v2480
        %v3309 = vpack.c.b16 %v2490, %v2481
        %v3310 = vpack.c.b16 %v2491, %v2482
        %v3311 = vpack.c.b16 %v2492, %v2483
        %v3312 = vpack.c.b16 %v2493, %v2484
        %v3313 = vpack.c.b16 %v2494, %v2485
        %v3314 = vpack.c.b16 %v2504, %v2495
        %v3315 = vpack.c.b16 %v2505, %v2496
        %v3316 = vpack.c.b16 %v2506, %v2497
        %v3317 = vpack.c.b16 %v2507, %v2498
        %v3318 = vpack.c.b16 %v2508, %v2499
        %v3319 = vpack.c.b16 %v2509, %v2500
        %v3320 = vpack.c.b16 %v2510, %v2501
        %v3321 = vpack.c.b16 %v2511, %v2502
        %v3322 = vpack.c.b16 %v2512, %v2503
        %v3323 = vpack.c.b16 %v2522, %v2513
        %v3324 = vpack.c.b16 %v2523, %v2514
        %v3325 = vpack.c.b16 %v2524, %v2515
        %v3326 = vpack.c.b16 %v2525, %v2516
        %v3327 = vpack.c.b16 %v2526, %v2517
        %v3328 = vpack.c.b16 %v2527, %v2518
        %v3329 = vpack.c.b16 %v2528, %v2519
        %v3330 = vpack.c.b16 %v2529, %v2520
        %v3331 = vpack.c.b16 %v2530, %v2521
        %v3332 = vpack.c.b16 %v2540, %v2531
        %v3333 = vpack.c.b16 %v2541, %v2532
        %v3334 = vpack.c.b16 %v2542, %v2533
        %v3335 = vpack.c.b16 %v2543, %v2534
        %v3336 = vpack.c.b16 %v2544, %v2535
        %v3337 = vpack.c.b16 %v2545, %v2536
        %v3338 = vpack.c.b16 %v2546, %v2537
        %v3339 = vpack.c.b16 %v2547, %v2538
        %v3340 = vpack.c.b16 %v2548, %v2539
        %v3341 = vpack.c.b16 %v2558, %v2549
        %v3342 = vpack.c.b16 %v2559, %v2550
        %v3343 = vpack.c.b16 %v2560, %v2551
        %v3344 = vpack.c.b16 %v2561, %v2552
        %v3345 = vpack.c.b16 %v2562, %v2553
        %v3346 = vpack.c.b16 %v2563, %v2554
        %v3347 = vpack.c.b16 %v2564, %v2555
        %v3348 = vpack.c.b16 %v2565, %v2556
        %v3349 = vpack.c.b16 %v2566, %v2557
        %v3350 = vpack.c.b16 %v2576, %v2567
        %v3351 = vpack.c.b16 %v2577, %v2568
        %v3352 = vpack.c.b16 %v2578, %v2569
        %v3353 = vpack.c.b16 %v2579, %v2570
        %v3354 = vpack.c.b16 %v2580, %v2571
        %v3355 = vpack.c.b16 %v2581, %v2572
        %v3356 = vpack.c.b16 %v2582, %v2573
        %v3357 = vpack.c.b16 %v2583, %v2574
        %v3358 = vpack.c.b16 %v2584, %v2575
        %v3359 = vpack.c.b16 %v2594, %v2585
        %v3360 = vpack.c.b16 %v2595, %v2586
        %v3361 = vpack.c.b16 %v2596, %v2587
        %v3362 = vpack.c.b16 %v2597, %v2588
        %v3363 = vpack.c.b16 %v2598, %v2589
        %v3364 = vpack.c.b16 %v2599, %v2590
        %v3365 = vpack.c.b16 %v2600, %v2591
        %v3366 = vpack.c.b16 %v2601, %v2592
        %v3367 = vpack.c.b16 %v2602, %v2593
        %v3368 = vpack.c.b16 %v2612, %v2603
        %v3369 = vpack.c.b16 %v2613, %v2604
        %v3370 = vpack.c.b16 %v2614, %v2605
        %v3371 = vpack.c.b16 %v2615, %v2606
        %v3372 = vpack.c.b16 %v2616, %v2607
        %v3373 = vpack.c.b16 %v2617, %v2608
        %v3374 = vpack.c.b16 %v2618, %v2609
        %v3375 = vpack.c.b16 %v2619, %v2610
        %v3376 = vpack.c.b16 %v2620, %v2611
        %v3377 = vpack.c.b16 %v2630, %v2621
        %v3378 = vpack.c.b16 %v2631, %v2622
        %v3379 = vpack.c.b16 %v2632, %v2623
        %v3380 = vpack.c.b16 %v2633, %v2624
        %v3381 = vpack.c.b16 %v2634, %v2625
        %v3382 = vpack.c.b16 %v2635, %v2626
        %v3383 = vpack.c.b16 %v2636, %v2627
        %v3384 = vpack.c.b16 %v2637, %v2628
        %v3385 = vpack.c.b16 %v2638, %v2629
        %v3386 = vpack.c.b16 %v2648, %v2639
        %v3387 = vpack.c.b16 %v2649, %v2640
        %v3388 = vpack.c.b16 %v2650, %v2641
        %v3389 = vpack.c.b16 %v2651, %v2642
        %v3390 = vpack.c.b16 %v2652, %v2643
        %v3391 = vpack.c.b16 %v2653, %v2644
        %v3392 = vpack.c.b16 %v2654, %v2645
        %v3393 = vpack.c.b16 %v2655, %v2646
        %v3394 = vpack.c.b16 %v2656, %v2647
        %v3395 = vpack.c.b16 %v2666, %v2657
        %v3396 = vpack.c.b16 %v2667, %v2658
        %v3397 = vpack.c.b16 %v2668, %v2659
        %v3398 = vpack.c.b16 %v2669, %v2660
        %v3399 = vpack.c.b16 %v2670, %v2661
        %v3400 = vpack.c.b16 %v2671, %v2662
        %v3401 = vpack.c.b16 %v2672, %v2663
        %v3402 = vpack.c.b16 %v2673, %v2664
        %v3403 = vpack.c.b16 %v2674, %v2665
        %v3404 = vpack.c.b16 %v2684, %v2675
        %v3405 = vpack.c.b16 %v2685, %v2676
        %v3406 = vpack.c.b16 %v2686, %v2677
        %v3407 = vpack.c.b16 %v2687, %v2678
        %v3408 = vpack.c.b16 %v2688, %v2679
        %v3409 = vpack.c.b16 %v2689, %v2680
        %v3410 = vpack.c.b16 %v2690, %v2681
        %v3411 = vpack.c.b16 %v2691, %v2682
        %v3412 = vpack.c.b16 %v2692, %v2683
        %v3413 = vpack.c.b16 %v2702, %v2693
        %v3414 = vpack.c.b16 %v2703, %v2694
        %v3415 = vpack.c.b16 %v2704, %v2695
        %v3416 = vpack.c.b16 %v2705, %v2696
        %v3417 = vpack.c.b16 %v2706, %v2697
        %v3418 = vpack.c.b16 %v2707, %v2698
        %v3419 = vpack.c.b16 %v2708, %v2699
        %v3420 = vpack.c.b16 %v2709, %v2700
        %v3421 = vpack.c.b16 %v2710, %v2701
        %v3422 = vpack.c.b16 %v2720, %v2711
        %v3423 = vpack.c.b16 %v2721, %v2712
        %v3424 = vpack.c.b16 %v2722, %v2713
        %v3425 = vpack.c.b16 %v2723, %v2714
        %v3426 = vpack.c.b16 %v2724, %v2715
        %v3427 = vpack.c.b16 %v2725, %v2716
        %v3428 = vpack.c.b16 %v2726, %v2717
        %v3429 = vpack.c.b16 %v2727, %v2718
        %v3430 = vpack.c.b16 %v2728, %v2719
        %v3431 = vpack.c.b16 %v2738, %v2729
        %v3432 = vpack.c.b16 %v2739, %v2730
        %v3433 = vpack.c.b16 %v2740, %v2731
        %v3434 = vpack.c.b16 %v2741, %v2732
        %v3435 = vpack.c.b16 %v2742, %v2733
        %v3436 = vpack.c.b16 %v2743, %v2734
        %v3437 = vpack.c.b16 %v2744, %v2735
        %v3438 = vpack.c.b16 %v2745, %v2736
        %v3439 = vpack.c.b16 %v2746, %v2737
        %v3440 = vpack.c.b16 %v2756, %v2747
        %v3441 = vpack.c.b16 %v2757, %v2748
        %v3442 = vpack.c.b16 %v2758, %v2749
        %v3443 = vpack.c.b16 %v2759, %v2750
        %v3444 = vpack.c.b16 %v2760, %v2751
        %v3445 = vpack.c.b16 %v2761, %v2752
        %v3446 = vpack.c.b16 %v2762, %v2753
        %v3447 = vpack.c.b16 %v2763, %v2754
        %v3448 = vpack.c.b16 %v2764, %v2755
        %v3449 = vpack.c.b16 %v2774, %v2765
        %v3450 = vpack.c.b16 %v2775, %v2766
        %v3451 = vpack.c.b16 %v2776, %v2767
        %v3452 = vpack.c.b16 %v2777, %v2768
        %v3453 = vpack.c.b16 %v2778, %v2769
        %v3454 = vpack.c.b16 %v2779, %v2770
        %v3455 = vpack.c.b16 %v2780, %v2771
        %v3456 = vpack.c.b16 %v2781, %v2772
        %v3457 = vpack.c.b16 %v2782, %v2773
        %v3458 = vpack.c.b16 %v2792, %v2783
        %v3459 = vpack.c.b16 %v2793, %v2784
        %v3460 = vpack.c.b16 %v2794, %v2785
        %v3461 = vpack.c.b16 %v2795, %v2786
        %v3462 = vpack.c.b16 %v2796, %v2787
        %v3463 = vpack.c.b16 %v2797, %v2788
        %v3464 = vpack.c.b16 %v2798, %v2789
        %v3465 = vpack.c.b16 %v2799, %v2790
        %v3466 = vpack.c.b16 %v2800, %v2791
        %v3467 = vpack.c.b16 %v2810, %v2801
        %v3468 = vpack.c.b16 %v2811, %v2802
        %v3469 = vpack.c.b16 %v2812, %v2803
        %v3470 = vpack.c.b16 %v2813, %v2804
        %v3471 = vpack.c.b16 %v2814, %v2805
        %v3472 = vpack.c.b16 %v2815, %v2806
        %v3473 = vpack.c.b16 %v2816, %v2807
        %v3474 = vpack.c.b16 %v2817, %v2808
        %v3475 = vpack.c.b16 %v2818, %v2809
        %v3476 = vpack.c.b16 %v2828, %v2819
        %v3477 = vpack.c.b16 %v2829, %v2820
        %v3478 = vpack.c.b16 %v2830, %v2821
        %v3479 = vpack.c.b16 %v2831, %v2822
        %v3480 = vpack.c.b16 %v2832, %v2823
        %v3481 = vpack.c.b16 %v2833, %v2824
        %v3482 = vpack.c.b16 %v2834, %v2825
        %v3483 = vpack.c.b16 %v2835, %v2826
        %v3484 = vpack.c.b16 %v2836, %v2827
        %v3485 = vpack.c.b16 %v2846, %v2837
        %v3486 = vpack.c.b16 %v2847, %v2838
        %v3487 = vpack.c.b16 %v2848, %v2839
        %v3488 = vpack.c.b16 %v2849, %v2840
        %v3489 = vpack.c.b16 %v2850, %v2841
        %v3490 = vpack.c.b16 %v2851, %v2842
        %v3491 = vpack.c.b16 %v2852, %v2843
        %v3492 = vpack.c.b16 %v2853, %v2844
        %v3493 = vpack.c.b16 %v2854, %v2845
        %v3494 = vpack.c.b16 %v2864, %v2855
        %v3495 = vpack.c.b16 %v2865, %v2856
        %v3496 = vpack.c.b16 %v2866, %v2857
        %v3497 = vpack.c.b16 %v2867, %v2858
        %v3498 = vpack.c.b16 %v2868, %v2859
        %v3499 = vpack.c.b16 %v2869, %v2860
        %v3500 = vpack.c.b16 %v2870, %v2861
        %v3501 = vpack.c.b16 %v2871, %v2862
        %v3502 = vpack.c.b16 %v2872, %v2863
        %v3503 = vpack.c.b16 %v2882, %v2873
        %v3504 = vpack.c.b16 %v2883, %v2874
        %v3505 = vpack.c.b16 %v2884, %v2875
        %v3506 = vpack.c.b16 %v2885, %v2876
        %v3507 = vpack.c.b16 %v2886, %v2877
        %v3508 = vpack.c.b16 %v2887, %v2878
        %v3509 = vpack.c.b16 %v2888, %v2879
        %v3510 = vpack.c.b16 %v2889, %v2880
        %v3511 = vpack.c.b16 %v2890, %v2881
        %v3512 = vpack.c.b16 %v2900, %v2891
        %v3513 = vpack.c.b16 %v2901, %v2892
        %v3514 = vpack.c.b16 %v2902, %v2893
        %v3515 = vpack.c.b16 %v2903, %v2894
        %v3516 = vpack.c.b16 %v2904, %v2895
        %v3517 = vpack.c.b16 %v2905, %v2896
        %v3518 = vpack.c.b16 %v2906, %v2897
        %v3519 = vpack.c.b16 %v2907, %v2898
        %v3520 = vpack.c.b16 %v2908, %v2899
        %v3521 = vpack.c.b16 %v2918, %v2909
        %v3522 = vpack.c.b16 %v2919, %v2910
        %v3523 = vpack.c.b16 %v2920, %v2911
        %v3524 = vpack.c.b16 %v2921, %v2912
        %v3525 = vpack.c.b16 %v2922, %v2913
        %v3526 = vpack.c.b16 %v2923, %v2914
        %v3527 = vpack.c.b16 %v2924, %v2915
        %v3528 = vpack.c.b16 %v2925, %v2916
        %v3529 = vpack.c.b16 %v2926, %v2917
        %v3530 = vpack.c.b16 %v2936, %v2927
        %v3531 = vpack.c.b16 %v2937, %v2928
        %v3532 = vpack.c.b16 %v2938, %v2929
        %v3533 = vpack.c.b16 %v2939, %v2930
        %v3534 = vpack.c.b16 %v2940, %v2931
        %v3535 = vpack.c.b16 %v2941, %v2932
        %v3536 = vpack.c.b16 %v2942, %v2933
        %v3537 = vpack.c.b16 %v2943, %v2934
        %v3538 = vpack.c.b16 %v2944, %v2935
        %vm4124 = vcmask 211968
        %v4126 = vsel %vm4124, %v1088, 0
        %vm4128 = vcmask 1044480
        %v4130 = vsel %vm4128, %v3530, 0
        %v4133 = vsel %vm4128, %v3531, 0
        %v4136 = vsel %vm4128, %v3532, 0
        %v4139 = vsel %vm4128, %v3533, 0
        %v4142 = vsel %vm4128, %v3534, 0
        %v4145 = vsel %vm4128, %v3535, 0
        %v4148 = vsel %vm4128, %v3536, 0
        %v4151 = vsel %vm4128, %v3537, 0
        %v4154 = vsel %vm4128, %v3538, 0
        %4156 = vmatprep.subr.bf16.mxu0 %v3009
        %4157 = vmatpush1.bf16.msra.mxu0 %v3008
        %4158 = vmatprep.subr.bf16.mxu0 %v3000
        %4159 = vmatpush1.bf16.msra.mxu0 %v2999
        %4160 = vmatprep.subr.bf16.mxu0 %v2991
        %4161 = vmatpush1.bf16.msra.mxu0 %v2990
        %4162 = vmatprep.subr.bf16.mxu0 %v2982
        %4163 = vmatpush1.bf16.msra.mxu0 %v2981
        %4164 = vmatprep.subr.bf16.mxu0 %v2973
        %4165 = vmatpush1.bf16.msra.mxu0 %v2972
        %4166 = vmatprep.subr.bf16.mxu0 %v2964
        %4167 = vmatpush1.bf16.msra.mxu0 %v2963
        %4168 = vmatprep.subr.bf16.mxu0 %v2955
        %4169 = vmatpush1.bf16.msra.mxu0 %v2954
        %4170 = vmatprep.subr.bf16.mxu0 %v2946
        %4171 = vmatpush1.bf16.msra.mxu0 %v2945
        %4172 = vmatprep.subr.bf16.mxu0 %v3081
        %4173 = vmatpush2.bf16.msra.mxu0 %v3080
        %4174 = vmatprep.subr.bf16.mxu0 %v3072
        %4175 = vmatpush2.bf16.msra.mxu0 %v3071
        %4176 = vmatprep.subr.bf16.mxu0 %v3063
        %4177 = vmatpush2.bf16.msra.mxu0 %v3062
        %4178 = vmatprep.subr.bf16.mxu0 %v3054
        %4179 = vmatpush2.bf16.msra.mxu0 %v3053
        %4180 = vmatprep.subr.bf16.mxu0 %v3045
        %4181 = vmatpush2.bf16.msra.mxu0 %v3044
        %4182 = vmatprep.subr.bf16.mxu0 %v3036
        %4183 = vmatpush2.bf16.msra.mxu0 %v3035
        %4184 = vmatprep.subr.bf16.mxu0 %v3027
        %4185 = vmatpush2.bf16.msra.mxu0 %v3026
        %4186 = vmatprep.subr.bf16.mxu0 %v3018
        %4187 = vmatpush2.bf16.msra.mxu0 %v3017
        %4188 = vmatprep.mubr.bf16.mxu0 %v1081
        %4189 = vmatmul.mubr.bf16.gmra.mxu0 %v1080
        %v4190 = vpop.f32.mrf.mxu0
        %v4191 = vadd.f32 0.0, %v4190
        %v4192 = vpop.f32.mrf.mxu0
        %v4193 = vadd.f32 0.0, %v4192
        %v4194 = vpop.f32.mrf.mxu0
        %v4195 = vadd.f32 0.0, %v4194
        %v4196 = vpop.f32.mrf.mxu0
        %v4197 = vadd.f32 0.0, %v4196
        %4198 = vdwg.mxu0
        %4199 = vmatprep.subr.bf16.mxu0 %v3153
        %4200 = vmatpush1.bf16.msra.mxu0 %v3152
        %4201 = vmatprep.subr.bf16.mxu0 %v3144
        %4202 = vmatpush1.bf16.msra.mxu0 %v3143
        %4203 = vmatprep.subr.bf16.mxu0 %v3135
        %4204 = vmatpush1.bf16.msra.mxu0 %v3134
        %4205 = vmatprep.subr.bf16.mxu0 %v3126
        %4206 = vmatpush1.bf16.msra.mxu0 %v3125
        %4207 = vmatprep.subr.bf16.mxu0 %v3117
        %4208 = vmatpush1.bf16.msra.mxu0 %v3116
        %4209 = vmatprep.subr.bf16.mxu0 %v3108
        %4210 = vmatpush1.bf16.msra.mxu0 %v3107
        %4211 = vmatprep.subr.bf16.mxu0 %v3099
        %4212 = vmatpush1.bf16.msra.mxu0 %v3098
        %4213 = vmatprep.subr.bf16.mxu0 %v3090
        %4214 = vmatpush1.bf16.msra.mxu0 %v3089
        %4215 = vmatprep.subr.bf16.mxu0 %v3225
        %4216 = vmatpush2.bf16.msra.mxu0 %v3224
        %4217 = vmatprep.subr.bf16.mxu0 %v3216
        %4218 = vmatpush2.bf16.msra.mxu0 %v3215
        %4219 = vmatprep.subr.bf16.mxu0 %v3207
        %4220 = vmatpush2.bf16.msra.mxu0 %v3206
        %4221 = vmatprep.subr.bf16.mxu0 %v3198
        %4222 = vmatpush2.bf16.msra.mxu0 %v3197
        %4223 = vmatprep.subr.bf16.mxu0 %v3189
        %4224 = vmatpush2.bf16.msra.mxu0 %v3188
        %4225 = vmatprep.subr.bf16.mxu0 %v3180
        %4226 = vmatpush2.bf16.msra.mxu0 %v3179
        %4227 = vmatprep.subr.bf16.mxu0 %v3171
        %4228 = vmatpush2.bf16.msra.mxu0 %v3170
        %4229 = vmatprep.subr.bf16.mxu0 %v3162
        %4230 = vmatpush2.bf16.msra.mxu0 %v3161
        %4231 = vmatprep.mubr.bf16.mxu0 %v1083
        %4232 = vmatmul.mubr.bf16.gmra.mxu0 %v1082
        %v4233 = vpop.f32.mrf.mxu0
        %v4234 = vadd.f32 %v4191, %v4233
        %v4235 = vpop.f32.mrf.mxu0
        %v4236 = vadd.f32 %v4193, %v4235
        %v4237 = vpop.f32.mrf.mxu0
        %v4238 = vadd.f32 %v4195, %v4237
        %v4239 = vpop.f32.mrf.mxu0
        %v4240 = vadd.f32 %v4197, %v4239
        %4241 = vdwg.mxu0
        %4242 = vmatprep.subr.bf16.mxu0 %v3297
        %4243 = vmatpush1.bf16.msra.mxu0 %v3296
        %4244 = vmatprep.subr.bf16.mxu0 %v3288
        %4245 = vmatpush1.bf16.msra.mxu0 %v3287
        %4246 = vmatprep.subr.bf16.mxu0 %v3279
        %4247 = vmatpush1.bf16.msra.mxu0 %v3278
        %4248 = vmatprep.subr.bf16.mxu0 %v3270
        %4249 = vmatpush1.bf16.msra.mxu0 %v3269
        %4250 = vmatprep.subr.bf16.mxu0 %v3261
        %4251 = vmatpush1.bf16.msra.mxu0 %v3260
        %4252 = vmatprep.subr.bf16.mxu0 %v3252
        %4253 = vmatpush1.bf16.msra.mxu0 %v3251
        %4254 = vmatprep.subr.bf16.mxu0 %v3243
        %4255 = vmatpush1.bf16.msra.mxu0 %v3242
        %4256 = vmatprep.subr.bf16.mxu0 %v3234
        %4257 = vmatpush1.bf16.msra.mxu0 %v3233
        %4258 = vmatprep.subr.bf16.mxu0 %v3369
        %4259 = vmatpush2.bf16.msra.mxu0 %v3368
        %4260 = vmatprep.subr.bf16.mxu0 %v3360
        %4261 = vmatpush2.bf16.msra.mxu0 %v3359
        %4262 = vmatprep.subr.bf16.mxu0 %v3351
        %4263 = vmatpush2.bf16.msra.mxu0 %v3350
        %4264 = vmatprep.subr.bf16.mxu0 %v3342
        %4265 = vmatpush2.bf16.msra.mxu0 %v3341
        %4266 = vmatprep.subr.bf16.mxu0 %v3333
        %4267 = vmatpush2.bf16.msra.mxu0 %v3332
        %4268 = vmatprep.subr.bf16.mxu0 %v3324
        %4269 = vmatpush2.bf16.msra.mxu0 %v3323
        %4270 = vmatprep.subr.bf16.mxu0 %v3315
        %4271 = vmatpush2.bf16.msra.mxu0 %v3314
        %4272 = vmatprep.subr.bf16.mxu0 %v3306
        %4273 = vmatpush2.bf16.msra.mxu0 %v3305
        %4274 = vmatprep.mubr.bf16.mxu0 %v1085
        %4275 = vmatmul.mubr.bf16.gmra.mxu0 %v1084
        %v4276 = vpop.f32.mrf.mxu0
        %v4277 = vadd.f32 %v4234, %v4276
        %v4278 = vpop.f32.mrf.mxu0
        %v4279 = vadd.f32 %v4236, %v4278
        %v4280 = vpop.f32.mrf.mxu0
        %v4281 = vadd.f32 %v4238, %v4280
        %v4282 = vpop.f32.mrf.mxu0
        %v4283 = vadd.f32 %v4240, %v4282
        %4284 = vdwg.mxu0
        %4285 = vmatprep.subr.bf16.mxu0 %v3441
        %4286 = vmatpush1.bf16.msra.mxu0 %v3440
        %4287 = vmatprep.subr.bf16.mxu0 %v3432
        %4288 = vmatpush1.bf16.msra.mxu0 %v3431
        %4289 = vmatprep.subr.bf16.mxu0 %v3423
        %4290 = vmatpush1.bf16.msra.mxu0 %v3422
        %4291 = vmatprep.subr.bf16.mxu0 %v3414
        %4292 = vmatpush1.bf16.msra.mxu0 %v3413
        %4293 = vmatprep.subr.bf16.mxu0 %v3405
        %4294 = vmatpush1.bf16.msra.mxu0 %v3404
        %4295 = vmatprep.subr.bf16.mxu0 %v3396
        %4296 = vmatpush1.bf16.msra.mxu0 %v3395
        %4297 = vmatprep.subr.bf16.mxu0 %v3387
        %4298 = vmatpush1.bf16.msra.mxu0 %v3386
        %4299 = vmatprep.subr.bf16.mxu0 %v3378
        %4300 = vmatpush1.bf16.msra.mxu0 %v3377
        %4301 = vmatprep.subr.bf16.mxu0 %v3513
        %4302 = vmatpush2.bf16.msra.mxu0 %v3512
        %4303 = vmatprep.subr.bf16.mxu0 %v3504
        %4304 = vmatpush2.bf16.msra.mxu0 %v3503
        %4305 = vmatprep.subr.bf16.mxu0 %v3495
        %4306 = vmatpush2.bf16.msra.mxu0 %v3494
        %4307 = vmatprep.subr.bf16.mxu0 %v3486
        %4308 = vmatpush2.bf16.msra.mxu0 %v3485
        %4309 = vmatprep.subr.bf16.mxu0 %v3477
        %4310 = vmatpush2.bf16.msra.mxu0 %v3476
        %4311 = vmatprep.subr.bf16.mxu0 %v3468
        %4312 = vmatpush2.bf16.msra.mxu0 %v3467
        %4313 = vmatprep.subr.bf16.mxu0 %v3459
        %4314 = vmatpush2.bf16.msra.mxu0 %v3458
        %4315 = vmatprep.subr.bf16.mxu0 %v3450
        %4316 = vmatpush2.bf16.msra.mxu0 %v3449
        %4317 = vmatprep.mubr.bf16.mxu0 %v1087
        %4318 = vmatmul.mubr.bf16.gmra.mxu0 %v1086
        %v4319 = vpop.f32.mrf.mxu0
        %v4320 = vadd.f32 %v4277, %v4319
        %v4321 = vpop.f32.mrf.mxu0
        %v4322 = vadd.f32 %v4279, %v4321
        %v4323 = vpop.f32.mrf.mxu0
        %v4324 = vadd.f32 %v4281, %v4323
        %v4325 = vpop.f32.mrf.mxu0
        %v4326 = vadd.f32 %v4283, %v4325
        %4327 = vdwg.mxu0
        %4328 = vmatprep.subr.bf16.mxu0 0
        %4329 = vmatpush1.bf16.msra.mxu0 0
        %4330 = vmatprep.subr.bf16.mxu0 0
        %4331 = vmatpush1.bf16.msra.mxu0 0
        %4332 = vmatprep.subr.bf16.mxu0 0
        %4333 = vmatpush1.bf16.msra.mxu0 0
        %4334 = vmatprep.subr.bf16.mxu0 0
        %4335 = vmatpush1.bf16.msra.mxu0 0
        %4336 = vmatprep.subr.bf16.mxu0 0
        %4337 = vmatpush1.bf16.msra.mxu0 0
        %4338 = vmatprep.subr.bf16.mxu0 0
        %4339 = vmatpush1.bf16.msra.mxu0 0
        %4340 = vmatprep.subr.bf16.mxu0 %v4133
        %4341 = vmatpush1.bf16.msra.mxu0 %v4130
        %4342 = vmatprep.subr.bf16.mxu0 %v3522
        %4343 = vmatpush1.bf16.msra.mxu0 %v3521
        %4344 = vmatprep.subr.bf16.mxu0 0
        %4345 = vmatpush2.bf16.msra.mxu0 0
        %4346 = vmatprep.subr.bf16.mxu0 0
        %4347 = vmatpush2.bf16.msra.mxu0 0
        %4348 = vmatprep.subr.bf16.mxu0 0
        %4349 = vmatpush2.bf16.msra.mxu0 0
        %4350 = vmatprep.subr.bf16.mxu0 0
        %4351 = vmatpush2.bf16.msra.mxu0 0
        %4352 = vmatprep.subr.bf16.mxu0 0
        %4353 = vmatpush2.bf16.msra.mxu0 0
        %4354 = vmatprep.subr.bf16.mxu0 0
        %4355 = vmatpush2.bf16.msra.mxu0 0
        %4356 = vmatprep.subr.bf16.mxu0 0
        %4357 = vmatpush2.bf16.msra.mxu0 0
        %4358 = vmatprep.subr.bf16.mxu0 0
        %4359 = vmatpush2.bf16.msra.mxu0 0
        %4360 = vmatprep.mubr.bf16.mxu0 0
        %4361 = vmatmul.mubr.bf16.gmra.mxu0 %v4126
        %v4362 = vpop.f32.mrf.mxu0
        %v4363 = vadd.f32 %v4320, %v4362
        %v4364 = vpop.f32.mrf.mxu0
        %v4365 = vadd.f32 %v4322, %v4364
        %v4366 = vpop.f32.mrf.mxu0
        %v4367 = vadd.f32 %v4324, %v4366
        %v4368 = vpop.f32.mrf.mxu0
        %v4369 = vadd.f32 %v4326, %v4368
        %4370 = vdwg.mxu0
        %4371 = vmatprep.subr.bf16.mxu0 %v3011
        %4372 = vmatpush1.bf16.msra.mxu0 %v3010
        %4373 = vmatprep.subr.bf16.mxu0 %v3002
        %4374 = vmatpush1.bf16.msra.mxu0 %v3001
        %4375 = vmatprep.subr.bf16.mxu0 %v2993
        %4376 = vmatpush1.bf16.msra.mxu0 %v2992
        %4377 = vmatprep.subr.bf16.mxu0 %v2984
        %4378 = vmatpush1.bf16.msra.mxu0 %v2983
        %4379 = vmatprep.subr.bf16.mxu0 %v2975
        %4380 = vmatpush1.bf16.msra.mxu0 %v2974
        %4381 = vmatprep.subr.bf16.mxu0 %v2966
        %4382 = vmatpush1.bf16.msra.mxu0 %v2965
        %4383 = vmatprep.subr.bf16.mxu0 %v2957
        %4384 = vmatpush1.bf16.msra.mxu0 %v2956
        %4385 = vmatprep.subr.bf16.mxu0 %v2948
        %4386 = vmatpush1.bf16.msra.mxu0 %v2947
        %4387 = vmatprep.subr.bf16.mxu0 %v3083
        %4388 = vmatpush2.bf16.msra.mxu0 %v3082
        %4389 = vmatprep.subr.bf16.mxu0 %v3074
        %4390 = vmatpush2.bf16.msra.mxu0 %v3073
        %4391 = vmatprep.subr.bf16.mxu0 %v3065
        %4392 = vmatpush2.bf16.msra.mxu0 %v3064
        %4393 = vmatprep.subr.bf16.mxu0 %v3056
        %4394 = vmatpush2.bf16.msra.mxu0 %v3055
        %4395 = vmatprep.subr.bf16.mxu0 %v3047
        %4396 = vmatpush2.bf16.msra.mxu0 %v3046
        %4397 = vmatprep.subr.bf16.mxu0 %v3038
        %4398 = vmatpush2.bf16.msra.mxu0 %v3037
        %4399 = vmatprep.subr.bf16.mxu0 %v3029
        %4400 = vmatpush2.bf16.msra.mxu0 %v3028
        %4401 = vmatprep.subr.bf16.mxu0 %v3020
        %4402 = vmatpush2.bf16.msra.mxu0 %v3019
        %4403 = vmatprep.mubr.bf16.mxu0 %v1081
        %4404 = vmatmul.mubr.bf16.gmra.mxu0 %v1080
        %v4405 = vpop.f32.mrf.mxu0
        %v4406 = vadd.f32 0.0, %v4405
        %v4407 = vpop.f32.mrf.mxu0
        %v4408 = vadd.f32 0.0, %v4407
        %v4409 = vpop.f32.mrf.mxu0
        %v4410 = vadd.f32 0.0, %v4409
        %v4411 = vpop.f32.mrf.mxu0
        %v4412 = vadd.f32 0.0, %v4411
        %4413 = vdwg.mxu0
        %4414 = vmatprep.subr.bf16.mxu0 %v3155
        %4415 = vmatpush1.bf16.msra.mxu0 %v3154
        %4416 = vmatprep.subr.bf16.mxu0 %v3146
        %4417 = vmatpush1.bf16.msra.mxu0 %v3145
        %4418 = vmatprep.subr.bf16.mxu0 %v3137
        %4419 = vmatpush1.bf16.msra.mxu0 %v3136
        %4420 = vmatprep.subr.bf16.mxu0 %v3128
        %4421 = vmatpush1.bf16.msra.mxu0 %v3127
        %4422 = vmatprep.subr.bf16.mxu0 %v3119
        %4423 = vmatpush1.bf16.msra.mxu0 %v3118
        %4424 = vmatprep.subr.bf16.mxu0 %v3110
        %4425 = vmatpush1.bf16.msra.mxu0 %v3109
        %4426 = vmatprep.subr.bf16.mxu0 %v3101
        %4427 = vmatpush1.bf16.msra.mxu0 %v3100
        %4428 = vmatprep.subr.bf16.mxu0 %v3092
        %4429 = vmatpush1.bf16.msra.mxu0 %v3091
        %4430 = vmatprep.subr.bf16.mxu0 %v3227
        %4431 = vmatpush2.bf16.msra.mxu0 %v3226
        %4432 = vmatprep.subr.bf16.mxu0 %v3218
        %4433 = vmatpush2.bf16.msra.mxu0 %v3217
        %4434 = vmatprep.subr.bf16.mxu0 %v3209
        %4435 = vmatpush2.bf16.msra.mxu0 %v3208
        %4436 = vmatprep.subr.bf16.mxu0 %v3200
        %4437 = vmatpush2.bf16.msra.mxu0 %v3199
        %4438 = vmatprep.subr.bf16.mxu0 %v3191
        %4439 = vmatpush2.bf16.msra.mxu0 %v3190
        %4440 = vmatprep.subr.bf16.mxu0 %v3182
        %4441 = vmatpush2.bf16.msra.mxu0 %v3181
        %4442 = vmatprep.subr.bf16.mxu0 %v3173
        %4443 = vmatpush2.bf16.msra.mxu0 %v3172
        %4444 = vmatprep.subr.bf16.mxu0 %v3164
        %4445 = vmatpush2.bf16.msra.mxu0 %v3163
        %4446 = vmatprep.mubr.bf16.mxu0 %v1083
        %4447 = vmatmul.mubr.bf16.gmra.mxu0 %v1082
        %v4448 = vpop.f32.mrf.mxu0
        %v4449 = vadd.f32 %v4406, %v4448
        %v4450 = vpop.f32.mrf.mxu0
        %v4451 = vadd.f32 %v4408, %v4450
        %v4452 = vpop.f32.mrf.mxu0
        %v4453 = vadd.f32 %v4410, %v4452
        %v4454 = vpop.f32.mrf.mxu0
        %v4455 = vadd.f32 %v4412, %v4454
        %4456 = vdwg.mxu0
        %4457 = vmatprep.subr.bf16.mxu0 %v3299
        %4458 = vmatpush1.bf16.msra.mxu0 %v3298
        %4459 = vmatprep.subr.bf16.mxu0 %v3290
        %4460 = vmatpush1.bf16.msra.mxu0 %v3289
        %4461 = vmatprep.subr.bf16.mxu0 %v3281
        %4462 = vmatpush1.bf16.msra.mxu0 %v3280
        %4463 = vmatprep.subr.bf16.mxu0 %v3272
        %4464 = vmatpush1.bf16.msra.mxu0 %v3271
        %4465 = vmatprep.subr.bf16.mxu0 %v3263
        %4466 = vmatpush1.bf16.msra.mxu0 %v3262
        %4467 = vmatprep.subr.bf16.mxu0 %v3254
        %4468 = vmatpush1.bf16.msra.mxu0 %v3253
        %4469 = vmatprep.subr.bf16.mxu0 %v3245
        %4470 = vmatpush1.bf16.msra.mxu0 %v3244
        %4471 = vmatprep.subr.bf16.mxu0 %v3236
        %4472 = vmatpush1.bf16.msra.mxu0 %v3235
        %4473 = vmatprep.subr.bf16.mxu0 %v3371
        %4474 = vmatpush2.bf16.msra.mxu0 %v3370
        %4475 = vmatprep.subr.bf16.mxu0 %v3362
        %4476 = vmatpush2.bf16.msra.mxu0 %v3361
        %4477 = vmatprep.subr.bf16.mxu0 %v3353
        %4478 = vmatpush2.bf16.msra.mxu0 %v3352
        %4479 = vmatprep.subr.bf16.mxu0 %v3344
        %4480 = vmatpush2.bf16.msra.mxu0 %v3343
        %4481 = vmatprep.subr.bf16.mxu0 %v3335
        %4482 = vmatpush2.bf16.msra.mxu0 %v3334
        %4483 = vmatprep.subr.bf16.mxu0 %v3326
        %4484 = vmatpush2.bf16.msra.mxu0 %v3325
        %4485 = vmatprep.subr.bf16.mxu0 %v3317
        %4486 = vmatpush2.bf16.msra.mxu0 %v3316
        %4487 = vmatprep.subr.bf16.mxu0 %v3308
        %4488 = vmatpush2.bf16.msra.mxu0 %v3307
        %4489 = vmatprep.mubr.bf16.mxu0 %v1085
        %4490 = vmatmul.mubr.bf16.gmra.mxu0 %v1084
        %v4491 = vpop.f32.mrf.mxu0
        %v4492 = vadd.f32 %v4449, %v4491
        %v4493 = vpop.f32.mrf.mxu0
        %v4494 = vadd.f32 %v4451, %v4493
        %v4495 = vpop.f32.mrf.mxu0
        %v4496 = vadd.f32 %v4453, %v4495
        %v4497 = vpop.f32.mrf.mxu0
        %v4498 = vadd.f32 %v4455, %v4497
        %4499 = vdwg.mxu0
        %4500 = vmatprep.subr.bf16.mxu0 %v3443
        %4501 = vmatpush1.bf16.msra.mxu0 %v3442
        %4502 = vmatprep.subr.bf16.mxu0 %v3434
        %4503 = vmatpush1.bf16.msra.mxu0 %v3433
        %4504 = vmatprep.subr.bf16.mxu0 %v3425
        %4505 = vmatpush1.bf16.msra.mxu0 %v3424
        %4506 = vmatprep.subr.bf16.mxu0 %v3416
        %4507 = vmatpush1.bf16.msra.mxu0 %v3415
        %4508 = vmatprep.subr.bf16.mxu0 %v3407
        %4509 = vmatpush1.bf16.msra.mxu0 %v3406
        %4510 = vmatprep.subr.bf16.mxu0 %v3398
        %4511 = vmatpush1.bf16.msra.mxu0 %v3397
        %4512 = vmatprep.subr.bf16.mxu0 %v3389
        %4513 = vmatpush1.bf16.msra.mxu0 %v3388
        %4514 = vmatprep.subr.bf16.mxu0 %v3380
        %4515 = vmatpush1.bf16.msra.mxu0 %v3379
        %4516 = vmatprep.subr.bf16.mxu0 %v3515
        %4517 = vmatpush2.bf16.msra.mxu0 %v3514
        %4518 = vmatprep.subr.bf16.mxu0 %v3506
        %4519 = vmatpush2.bf16.msra.mxu0 %v3505
        %4520 = vmatprep.subr.bf16.mxu0 %v3497
        %4521 = vmatpush2.bf16.msra.mxu0 %v3496
        %4522 = vmatprep.subr.bf16.mxu0 %v3488
        %4523 = vmatpush2.bf16.msra.mxu0 %v3487
        %4524 = vmatprep.subr.bf16.mxu0 %v3479
        %4525 = vmatpush2.bf16.msra.mxu0 %v3478
        %4526 = vmatprep.subr.bf16.mxu0 %v3470
        %4527 = vmatpush2.bf16.msra.mxu0 %v3469
        %4528 = vmatprep.subr.bf16.mxu0 %v3461
        %4529 = vmatpush2.bf16.msra.mxu0 %v3460
        %4530 = vmatprep.subr.bf16.mxu0 %v3452
        %4531 = vmatpush2.bf16.msra.mxu0 %v3451
        %4532 = vmatprep.mubr.bf16.mxu0 %v1087
        %4533 = vmatmul.mubr.bf16.gmra.mxu0 %v1086
        %v4534 = vpop.f32.mrf.mxu0
        %v4535 = vadd.f32 %v4492, %v4534
        %v4536 = vpop.f32.mrf.mxu0
        %v4537 = vadd.f32 %v4494, %v4536
        %v4538 = vpop.f32.mrf.mxu0
        %v4539 = vadd.f32 %v4496, %v4538
        %v4540 = vpop.f32.mrf.mxu0
        %v4541 = vadd.f32 %v4498, %v4540
        %4542 = vdwg.mxu0
        %4543 = vmatprep.subr.bf16.mxu0 0
        %4544 = vmatpush1.bf16.msra.mxu0 0
        %4545 = vmatprep.subr.bf16.mxu0 0
        %4546 = vmatpush1.bf16.msra.mxu0 0
        %4547 = vmatprep.subr.bf16.mxu0 0
        %4548 = vmatpush1.bf16.msra.mxu0 0
        %4549 = vmatprep.subr.bf16.mxu0 0
        %4550 = vmatpush1.bf16.msra.mxu0 0
        %4551 = vmatprep.subr.bf16.mxu0 0
        %4552 = vmatpush1.bf16.msra.mxu0 0
        %4553 = vmatprep.subr.bf16.mxu0 0
        %4554 = vmatpush1.bf16.msra.mxu0 0
        %4555 = vmatprep.subr.bf16.mxu0 %v4139
        %4556 = vmatpush1.bf16.msra.mxu0 %v4136
        %4557 = vmatprep.subr.bf16.mxu0 %v3524
        %4558 = vmatpush1.bf16.msra.mxu0 %v3523
        %4559 = vmatprep.subr.bf16.mxu0 0
        %4560 = vmatpush2.bf16.msra.mxu0 0
        %4561 = vmatprep.subr.bf16.mxu0 0
        %4562 = vmatpush2.bf16.msra.mxu0 0
        %4563 = vmatprep.subr.bf16.mxu0 0
        %4564 = vmatpush2.bf16.msra.mxu0 0
        %4565 = vmatprep.subr.bf16.mxu0 0
        %4566 = vmatpush2.bf16.msra.mxu0 0
        %4567 = vmatprep.subr.bf16.mxu0 0
        %4568 = vmatpush2.bf16.msra.mxu0 0
        %4569 = vmatprep.subr.bf16.mxu0 0
        %4570 = vmatpush2.bf16.msra.mxu0 0
        %4571 = vmatprep.subr.bf16.mxu0 0
        %4572 = vmatpush2.bf16.msra.mxu0 0
        %4573 = vmatprep.subr.bf16.mxu0 0
        %4574 = vmatpush2.bf16.msra.mxu0 0
        %4575 = vmatprep.mubr.bf16.mxu0 0
        %4576 = vmatmul.mubr.bf16.gmra.mxu0 %v4126
        %v4577 = vpop.f32.mrf.mxu0
        %v4578 = vadd.f32 %v4535, %v4577
        %v4579 = vpop.f32.mrf.mxu0
        %v4580 = vadd.f32 %v4537, %v4579
        %v4581 = vpop.f32.mrf.mxu0
        %v4582 = vadd.f32 %v4539, %v4581
        %v4583 = vpop.f32.mrf.mxu0
        %v4584 = vadd.f32 %v4541, %v4583
        %4585 = vdwg.mxu0
        %4586 = vmatprep.subr.bf16.mxu0 %v3013
        %4587 = vmatpush1.bf16.msra.mxu0 %v3012
        %4588 = vmatprep.subr.bf16.mxu0 %v3004
        %4589 = vmatpush1.bf16.msra.mxu0 %v3003
        %4590 = vmatprep.subr.bf16.mxu0 %v2995
        %4591 = vmatpush1.bf16.msra.mxu0 %v2994
        %4592 = vmatprep.subr.bf16.mxu0 %v2986
        %4593 = vmatpush1.bf16.msra.mxu0 %v2985
        %4594 = vmatprep.subr.bf16.mxu0 %v2977
        %4595 = vmatpush1.bf16.msra.mxu0 %v2976
        %4596 = vmatprep.subr.bf16.mxu0 %v2968
        %4597 = vmatpush1.bf16.msra.mxu0 %v2967
        %4598 = vmatprep.subr.bf16.mxu0 %v2959
        %4599 = vmatpush1.bf16.msra.mxu0 %v2958
        %4600 = vmatprep.subr.bf16.mxu0 %v2950
        %4601 = vmatpush1.bf16.msra.mxu0 %v2949
        %4602 = vmatprep.subr.bf16.mxu0 %v3085
        %4603 = vmatpush2.bf16.msra.mxu0 %v3084
        %4604 = vmatprep.subr.bf16.mxu0 %v3076
        %4605 = vmatpush2.bf16.msra.mxu0 %v3075
        %4606 = vmatprep.subr.bf16.mxu0 %v3067
        %4607 = vmatpush2.bf16.msra.mxu0 %v3066
        %4608 = vmatprep.subr.bf16.mxu0 %v3058
        %4609 = vmatpush2.bf16.msra.mxu0 %v3057
        %4610 = vmatprep.subr.bf16.mxu0 %v3049
        %4611 = vmatpush2.bf16.msra.mxu0 %v3048
        %4612 = vmatprep.subr.bf16.mxu0 %v3040
        %4613 = vmatpush2.bf16.msra.mxu0 %v3039
        %4614 = vmatprep.subr.bf16.mxu0 %v3031
        %4615 = vmatpush2.bf16.msra.mxu0 %v3030
        %4616 = vmatprep.subr.bf16.mxu0 %v3022
        %4617 = vmatpush2.bf16.msra.mxu0 %v3021
        %4618 = vmatprep.mubr.bf16.mxu0 %v1081
        %4619 = vmatmul.mubr.bf16.gmra.mxu0 %v1080
        %v4620 = vpop.f32.mrf.mxu0
        %v4621 = vadd.f32 0.0, %v4620
        %v4622 = vpop.f32.mrf.mxu0
        %v4623 = vadd.f32 0.0, %v4622
        %v4624 = vpop.f32.mrf.mxu0
        %v4625 = vadd.f32 0.0, %v4624
        %v4626 = vpop.f32.mrf.mxu0
        %v4627 = vadd.f32 0.0, %v4626
        %4628 = vdwg.mxu0
        %4629 = vmatprep.subr.bf16.mxu0 %v3157
        %4630 = vmatpush1.bf16.msra.mxu0 %v3156
        %4631 = vmatprep.subr.bf16.mxu0 %v3148
        %4632 = vmatpush1.bf16.msra.mxu0 %v3147
        %4633 = vmatprep.subr.bf16.mxu0 %v3139
        %4634 = vmatpush1.bf16.msra.mxu0 %v3138
        %4635 = vmatprep.subr.bf16.mxu0 %v3130
        %4636 = vmatpush1.bf16.msra.mxu0 %v3129
        %4637 = vmatprep.subr.bf16.mxu0 %v3121
        %4638 = vmatpush1.bf16.msra.mxu0 %v3120
        %4639 = vmatprep.subr.bf16.mxu0 %v3112
        %4640 = vmatpush1.bf16.msra.mxu0 %v3111
        %4641 = vmatprep.subr.bf16.mxu0 %v3103
        %4642 = vmatpush1.bf16.msra.mxu0 %v3102
        %4643 = vmatprep.subr.bf16.mxu0 %v3094
        %4644 = vmatpush1.bf16.msra.mxu0 %v3093
        %4645 = vmatprep.subr.bf16.mxu0 %v3229
        %4646 = vmatpush2.bf16.msra.mxu0 %v3228
        %4647 = vmatprep.subr.bf16.mxu0 %v3220
        %4648 = vmatpush2.bf16.msra.mxu0 %v3219
        %4649 = vmatprep.subr.bf16.mxu0 %v3211
        %4650 = vmatpush2.bf16.msra.mxu0 %v3210
        %4651 = vmatprep.subr.bf16.mxu0 %v3202
        %4652 = vmatpush2.bf16.msra.mxu0 %v3201
        %4653 = vmatprep.subr.bf16.mxu0 %v3193
        %4654 = vmatpush2.bf16.msra.mxu0 %v3192
        %4655 = vmatprep.subr.bf16.mxu0 %v3184
        %4656 = vmatpush2.bf16.msra.mxu0 %v3183
        %4657 = vmatprep.subr.bf16.mxu0 %v3175
        %4658 = vmatpush2.bf16.msra.mxu0 %v3174
        %4659 = vmatprep.subr.bf16.mxu0 %v3166
        %4660 = vmatpush2.bf16.msra.mxu0 %v3165
        %4661 = vmatprep.mubr.bf16.mxu0 %v1083
        %4662 = vmatmul.mubr.bf16.gmra.mxu0 %v1082
        %v4663 = vpop.f32.mrf.mxu0
        %v4664 = vadd.f32 %v4621, %v4663
        %v4665 = vpop.f32.mrf.mxu0
        %v4666 = vadd.f32 %v4623, %v4665
        %v4667 = vpop.f32.mrf.mxu0
        %v4668 = vadd.f32 %v4625, %v4667
        %v4669 = vpop.f32.mrf.mxu0
        %v4670 = vadd.f32 %v4627, %v4669
        %4671 = vdwg.mxu0
        %4672 = vmatprep.subr.bf16.mxu0 %v3301
        %4673 = vmatpush1.bf16.msra.mxu0 %v3300
        %4674 = vmatprep.subr.bf16.mxu0 %v3292
        %4675 = vmatpush1.bf16.msra.mxu0 %v3291
        %4676 = vmatprep.subr.bf16.mxu0 %v3283
        %4677 = vmatpush1.bf16.msra.mxu0 %v3282
        %4678 = vmatprep.subr.bf16.mxu0 %v3274
        %4679 = vmatpush1.bf16.msra.mxu0 %v3273
        %4680 = vmatprep.subr.bf16.mxu0 %v3265
        %4681 = vmatpush1.bf16.msra.mxu0 %v3264
        %4682 = vmatprep.subr.bf16.mxu0 %v3256
        %4683 = vmatpush1.bf16.msra.mxu0 %v3255
        %4684 = vmatprep.subr.bf16.mxu0 %v3247
        %4685 = vmatpush1.bf16.msra.mxu0 %v3246
        %4686 = vmatprep.subr.bf16.mxu0 %v3238
        %4687 = vmatpush1.bf16.msra.mxu0 %v3237
        %4688 = vmatprep.subr.bf16.mxu0 %v3373
        %4689 = vmatpush2.bf16.msra.mxu0 %v3372
        %4690 = vmatprep.subr.bf16.mxu0 %v3364
        %4691 = vmatpush2.bf16.msra.mxu0 %v3363
        %4692 = vmatprep.subr.bf16.mxu0 %v3355
        %4693 = vmatpush2.bf16.msra.mxu0 %v3354
        %4694 = vmatprep.subr.bf16.mxu0 %v3346
        %4695 = vmatpush2.bf16.msra.mxu0 %v3345
        %4696 = vmatprep.subr.bf16.mxu0 %v3337
        %4697 = vmatpush2.bf16.msra.mxu0 %v3336
        %4698 = vmatprep.subr.bf16.mxu0 %v3328
        %4699 = vmatpush2.bf16.msra.mxu0 %v3327
        %4700 = vmatprep.subr.bf16.mxu0 %v3319
        %4701 = vmatpush2.bf16.msra.mxu0 %v3318
        %4702 = vmatprep.subr.bf16.mxu0 %v3310
        %4703 = vmatpush2.bf16.msra.mxu0 %v3309
        %4704 = vmatprep.mubr.bf16.mxu0 %v1085
        %4705 = vmatmul.mubr.bf16.gmra.mxu0 %v1084
        %v4706 = vpop.f32.mrf.mxu0
        %v4707 = vadd.f32 %v4664, %v4706
        %v4708 = vpop.f32.mrf.mxu0
        %v4709 = vadd.f32 %v4666, %v4708
        %v4710 = vpop.f32.mrf.mxu0
        %v4711 = vadd.f32 %v4668, %v4710
        %v4712 = vpop.f32.mrf.mxu0
        %v4713 = vadd.f32 %v4670, %v4712
        %4714 = vdwg.mxu0
        %4715 = vmatprep.subr.bf16.mxu0 %v3445
        %4716 = vmatpush1.bf16.msra.mxu0 %v3444
        %4717 = vmatprep.subr.bf16.mxu0 %v3436
        %4718 = vmatpush1.bf16.msra.mxu0 %v3435
        %4719 = vmatprep.subr.bf16.mxu0 %v3427
        %4720 = vmatpush1.bf16.msra.mxu0 %v3426
        %4721 = vmatprep.subr.bf16.mxu0 %v3418
        %4722 = vmatpush1.bf16.msra.mxu0 %v3417
        %4723 = vmatprep.subr.bf16.mxu0 %v3409
        %4724 = vmatpush1.bf16.msra.mxu0 %v3408
        %4725 = vmatprep.subr.bf16.mxu0 %v3400
        %4726 = vmatpush1.bf16.msra.mxu0 %v3399
        %4727 = vmatprep.subr.bf16.mxu0 %v3391
        %4728 = vmatpush1.bf16.msra.mxu0 %v3390
        %4729 = vmatprep.subr.bf16.mxu0 %v3382
        %4730 = vmatpush1.bf16.msra.mxu0 %v3381
        %4731 = vmatprep.subr.bf16.mxu0 %v3517
        %4732 = vmatpush2.bf16.msra.mxu0 %v3516
        %4733 = vmatprep.subr.bf16.mxu0 %v3508
        %4734 = vmatpush2.bf16.msra.mxu0 %v3507
        %4735 = vmatprep.subr.bf16.mxu0 %v3499
        %4736 = vmatpush2.bf16.msra.mxu0 %v3498
        %4737 = vmatprep.subr.bf16.mxu0 %v3490
        %4738 = vmatpush2.bf16.msra.mxu0 %v3489
        %4739 = vmatprep.subr.bf16.mxu0 %v3481
        %4740 = vmatpush2.bf16.msra.mxu0 %v3480
        %4741 = vmatprep.subr.bf16.mxu0 %v3472
        %4742 = vmatpush2.bf16.msra.mxu0 %v3471
        %4743 = vmatprep.subr.bf16.mxu0 %v3463
        %4744 = vmatpush2.bf16.msra.mxu0 %v3462
        %4745 = vmatprep.subr.bf16.mxu0 %v3454
        %4746 = vmatpush2.bf16.msra.mxu0 %v3453
        %4747 = vmatprep.mubr.bf16.mxu0 %v1087
        %4748 = vmatmul.mubr.bf16.gmra.mxu0 %v1086
        %v4749 = vpop.f32.mrf.mxu0
        %v4750 = vadd.f32 %v4707, %v4749
        %v4751 = vpop.f32.mrf.mxu0
        %v4752 = vadd.f32 %v4709, %v4751
        %v4753 = vpop.f32.mrf.mxu0
        %v4754 = vadd.f32 %v4711, %v4753
        %v4755 = vpop.f32.mrf.mxu0
        %v4756 = vadd.f32 %v4713, %v4755
        %4757 = vdwg.mxu0
        %4758 = vmatprep.subr.bf16.mxu0 0
        %4759 = vmatpush1.bf16.msra.mxu0 0
        %4760 = vmatprep.subr.bf16.mxu0 0
        %4761 = vmatpush1.bf16.msra.mxu0 0
        %4762 = vmatprep.subr.bf16.mxu0 0
        %4763 = vmatpush1.bf16.msra.mxu0 0
        %4764 = vmatprep.subr.bf16.mxu0 0
        %4765 = vmatpush1.bf16.msra.mxu0 0
        %4766 = vmatprep.subr.bf16.mxu0 0
        %4767 = vmatpush1.bf16.msra.mxu0 0
        %4768 = vmatprep.subr.bf16.mxu0 0
        %4769 = vmatpush1.bf16.msra.mxu0 0
        %4770 = vmatprep.subr.bf16.mxu0 %v4145
        %4771 = vmatpush1.bf16.msra.mxu0 %v4142
        %4772 = vmatprep.subr.bf16.mxu0 %v3526
        %4773 = vmatpush1.bf16.msra.mxu0 %v3525
        %4774 = vmatprep.subr.bf16.mxu0 0
        %4775 = vmatpush2.bf16.msra.mxu0 0
        %4776 = vmatprep.subr.bf16.mxu0 0
        %4777 = vmatpush2.bf16.msra.mxu0 0
        %4778 = vmatprep.subr.bf16.mxu0 0
        %4779 = vmatpush2.bf16.msra.mxu0 0
        %4780 = vmatprep.subr.bf16.mxu0 0
        %4781 = vmatpush2.bf16.msra.mxu0 0
        %4782 = vmatprep.subr.bf16.mxu0 0
        %4783 = vmatpush2.bf16.msra.mxu0 0
        %4784 = vmatprep.subr.bf16.mxu0 0
        %4785 = vmatpush2.bf16.msra.mxu0 0
        %4786 = vmatprep.subr.bf16.mxu0 0
        %4787 = vmatpush2.bf16.msra.mxu0 0
        %4788 = vmatprep.subr.bf16.mxu0 0
        %4789 = vmatpush2.bf16.msra.mxu0 0
        %4790 = vmatprep.mubr.bf16.mxu0 0
        %4791 = vmatmul.mubr.bf16.gmra.mxu0 %v4126
        %v4792 = vpop.f32.mrf.mxu0
        %v4793 = vadd.f32 %v4750, %v4792
        %v4794 = vpop.f32.mrf.mxu0
        %v4795 = vadd.f32 %v4752, %v4794
        %v4796 = vpop.f32.mrf.mxu0
        %v4797 = vadd.f32 %v4754, %v4796
        %v4798 = vpop.f32.mrf.mxu0
        %v4799 = vadd.f32 %v4756, %v4798
        %4800 = vdwg.mxu0
        %4801 = vmatprep.subr.bf16.mxu0 %v3015
        %4802 = vmatpush1.bf16.msra.mxu0 %v3014
        %4803 = vmatprep.subr.bf16.mxu0 %v3006
        %4804 = vmatpush1.bf16.msra.mxu0 %v3005
        %4805 = vmatprep.subr.bf16.mxu0 %v2997
        %4806 = vmatpush1.bf16.msra.mxu0 %v2996
        %4807 = vmatprep.subr.bf16.mxu0 %v2988
        %4808 = vmatpush1.bf16.msra.mxu0 %v2987
        %4809 = vmatprep.subr.bf16.mxu0 %v2979
        %4810 = vmatpush1.bf16.msra.mxu0 %v2978
        %4811 = vmatprep.subr.bf16.mxu0 %v2970
        %4812 = vmatpush1.bf16.msra.mxu0 %v2969
        %4813 = vmatprep.subr.bf16.mxu0 %v2961
        %4814 = vmatpush1.bf16.msra.mxu0 %v2960
        %4815 = vmatprep.subr.bf16.mxu0 %v2952
        %4816 = vmatpush1.bf16.msra.mxu0 %v2951
        %4817 = vmatprep.subr.bf16.mxu0 %v3087
        %4818 = vmatpush2.bf16.msra.mxu0 %v3086
        %4819 = vmatprep.subr.bf16.mxu0 %v3078
        %4820 = vmatpush2.bf16.msra.mxu0 %v3077
        %4821 = vmatprep.subr.bf16.mxu0 %v3069
        %4822 = vmatpush2.bf16.msra.mxu0 %v3068
        %4823 = vmatprep.subr.bf16.mxu0 %v3060
        %4824 = vmatpush2.bf16.msra.mxu0 %v3059
        %4825 = vmatprep.subr.bf16.mxu0 %v3051
        %4826 = vmatpush2.bf16.msra.mxu0 %v3050
        %4827 = vmatprep.subr.bf16.mxu0 %v3042
        %4828 = vmatpush2.bf16.msra.mxu0 %v3041
        %4829 = vmatprep.subr.bf16.mxu0 %v3033
        %4830 = vmatpush2.bf16.msra.mxu0 %v3032
        %4831 = vmatprep.subr.bf16.mxu0 %v3024
        %4832 = vmatpush2.bf16.msra.mxu0 %v3023
        %4833 = vmatprep.mubr.bf16.mxu0 %v1081
        %4834 = vmatmul.mubr.bf16.gmra.mxu0 %v1080
        %v4835 = vpop.f32.mrf.mxu0
        %v4836 = vadd.f32 0.0, %v4835
        %v4837 = vpop.f32.mrf.mxu0
        %v4838 = vadd.f32 0.0, %v4837
        %v4839 = vpop.f32.mrf.mxu0
        %v4840 = vadd.f32 0.0, %v4839
        %v4841 = vpop.f32.mrf.mxu0
        %v4842 = vadd.f32 0.0, %v4841
        %4843 = vdwg.mxu0
        %4844 = vmatprep.subr.bf16.mxu0 %v3159
        %4845 = vmatpush1.bf16.msra.mxu0 %v3158
        %4846 = vmatprep.subr.bf16.mxu0 %v3150
        %4847 = vmatpush1.bf16.msra.mxu0 %v3149
        %4848 = vmatprep.subr.bf16.mxu0 %v3141
        %4849 = vmatpush1.bf16.msra.mxu0 %v3140
        %4850 = vmatprep.subr.bf16.mxu0 %v3132
        %4851 = vmatpush1.bf16.msra.mxu0 %v3131
        %4852 = vmatprep.subr.bf16.mxu0 %v3123
        %4853 = vmatpush1.bf16.msra.mxu0 %v3122
        %4854 = vmatprep.subr.bf16.mxu0 %v3114
        %4855 = vmatpush1.bf16.msra.mxu0 %v3113
        %4856 = vmatprep.subr.bf16.mxu0 %v3105
        %4857 = vmatpush1.bf16.msra.mxu0 %v3104
        %4858 = vmatprep.subr.bf16.mxu0 %v3096
        %4859 = vmatpush1.bf16.msra.mxu0 %v3095
        %4860 = vmatprep.subr.bf16.mxu0 %v3231
        %4861 = vmatpush2.bf16.msra.mxu0 %v3230
        %4862 = vmatprep.subr.bf16.mxu0 %v3222
        %4863 = vmatpush2.bf16.msra.mxu0 %v3221
        %4864 = vmatprep.subr.bf16.mxu0 %v3213
        %4865 = vmatpush2.bf16.msra.mxu0 %v3212
        %4866 = vmatprep.subr.bf16.mxu0 %v3204
        %4867 = vmatpush2.bf16.msra.mxu0 %v3203
        %4868 = vmatprep.subr.bf16.mxu0 %v3195
        %4869 = vmatpush2.bf16.msra.mxu0 %v3194
        %4870 = vmatprep.subr.bf16.mxu0 %v3186
        %4871 = vmatpush2.bf16.msra.mxu0 %v3185
        %4872 = vmatprep.subr.bf16.mxu0 %v3177
        %4873 = vmatpush2.bf16.msra.mxu0 %v3176
        %4874 = vmatprep.subr.bf16.mxu0 %v3168
        %4875 = vmatpush2.bf16.msra.mxu0 %v3167
        %4876 = vmatprep.mubr.bf16.mxu0 %v1083
        %4877 = vmatmul.mubr.bf16.gmra.mxu0 %v1082
        %v4878 = vpop.f32.mrf.mxu0
        %v4879 = vadd.f32 %v4836, %v4878
        %v4880 = vpop.f32.mrf.mxu0
        %v4881 = vadd.f32 %v4838, %v4880
        %v4882 = vpop.f32.mrf.mxu0
        %v4883 = vadd.f32 %v4840, %v4882
        %v4884 = vpop.f32.mrf.mxu0
        %v4885 = vadd.f32 %v4842, %v4884
        %4886 = vdwg.mxu0
        %4887 = vmatprep.subr.bf16.mxu0 %v3303
        %4888 = vmatpush1.bf16.msra.mxu0 %v3302
        %4889 = vmatprep.subr.bf16.mxu0 %v3294
        %4890 = vmatpush1.bf16.msra.mxu0 %v3293
        %4891 = vmatprep.subr.bf16.mxu0 %v3285
        %4892 = vmatpush1.bf16.msra.mxu0 %v3284
        %4893 = vmatprep.subr.bf16.mxu0 %v3276
        %4894 = vmatpush1.bf16.msra.mxu0 %v3275
        %4895 = vmatprep.subr.bf16.mxu0 %v3267
        %4896 = vmatpush1.bf16.msra.mxu0 %v3266
        %4897 = vmatprep.subr.bf16.mxu0 %v3258
        %4898 = vmatpush1.bf16.msra.mxu0 %v3257
        %4899 = vmatprep.subr.bf16.mxu0 %v3249
        %4900 = vmatpush1.bf16.msra.mxu0 %v3248
        %4901 = vmatprep.subr.bf16.mxu0 %v3240
        %4902 = vmatpush1.bf16.msra.mxu0 %v3239
        %4903 = vmatprep.subr.bf16.mxu0 %v3375
        %4904 = vmatpush2.bf16.msra.mxu0 %v3374
        %4905 = vmatprep.subr.bf16.mxu0 %v3366
        %4906 = vmatpush2.bf16.msra.mxu0 %v3365
        %4907 = vmatprep.subr.bf16.mxu0 %v3357
        %4908 = vmatpush2.bf16.msra.mxu0 %v3356
        %4909 = vmatprep.subr.bf16.mxu0 %v3348
        %4910 = vmatpush2.bf16.msra.mxu0 %v3347
        %4911 = vmatprep.subr.bf16.mxu0 %v3339
        %4912 = vmatpush2.bf16.msra.mxu0 %v3338
        %4913 = vmatprep.subr.bf16.mxu0 %v3330
        %4914 = vmatpush2.bf16.msra.mxu0 %v3329
        %4915 = vmatprep.subr.bf16.mxu0 %v3321
        %4916 = vmatpush2.bf16.msra.mxu0 %v3320
        %4917 = vmatprep.subr.bf16.mxu0 %v3312
        %4918 = vmatpush2.bf16.msra.mxu0 %v3311
        %4919 = vmatprep.mubr.bf16.mxu0 %v1085
        %4920 = vmatmul.mubr.bf16.gmra.mxu0 %v1084
        %v4921 = vpop.f32.mrf.mxu0
        %v4922 = vadd.f32 %v4879, %v4921
        %v4923 = vpop.f32.mrf.mxu0
        %v4924 = vadd.f32 %v4881, %v4923
        %v4925 = vpop.f32.mrf.mxu0
        %v4926 = vadd.f32 %v4883, %v4925
        %v4927 = vpop.f32.mrf.mxu0
        %v4928 = vadd.f32 %v4885, %v4927
        %4929 = vdwg.mxu0
        %4930 = vmatprep.subr.bf16.mxu0 %v3447
        %4931 = vmatpush1.bf16.msra.mxu0 %v3446
        %4932 = vmatprep.subr.bf16.mxu0 %v3438
        %4933 = vmatpush1.bf16.msra.mxu0 %v3437
        %4934 = vmatprep.subr.bf16.mxu0 %v3429
        %4935 = vmatpush1.bf16.msra.mxu0 %v3428
        %4936 = vmatprep.subr.bf16.mxu0 %v3420
        %4937 = vmatpush1.bf16.msra.mxu0 %v3419
        %4938 = vmatprep.subr.bf16.mxu0 %v3411
        %4939 = vmatpush1.bf16.msra.mxu0 %v3410
        %4940 = vmatprep.subr.bf16.mxu0 %v3402
        %4941 = vmatpush1.bf16.msra.mxu0 %v3401
        %4942 = vmatprep.subr.bf16.mxu0 %v3393
        %4943 = vmatpush1.bf16.msra.mxu0 %v3392
        %4944 = vmatprep.subr.bf16.mxu0 %v3384
        %4945 = vmatpush1.bf16.msra.mxu0 %v3383
        %4946 = vmatprep.subr.bf16.mxu0 %v3519
        %4947 = vmatpush2.bf16.msra.mxu0 %v3518
        %4948 = vmatprep.subr.bf16.mxu0 %v3510
        %4949 = vmatpush2.bf16.msra.mxu0 %v3509
        %4950 = vmatprep.subr.bf16.mxu0 %v3501
        %4951 = vmatpush2.bf16.msra.mxu0 %v3500
        %4952 = vmatprep.subr.bf16.mxu0 %v3492
        %4953 = vmatpush2.bf16.msra.mxu0 %v3491
        %4954 = vmatprep.subr.bf16.mxu0 %v3483
        %4955 = vmatpush2.bf16.msra.mxu0 %v3482
        %4956 = vmatprep.subr.bf16.mxu0 %v3474
        %4957 = vmatpush2.bf16.msra.mxu0 %v3473
        %4958 = vmatprep.subr.bf16.mxu0 %v3465
        %4959 = vmatpush2.bf16.msra.mxu0 %v3464
        %4960 = vmatprep.subr.bf16.mxu0 %v3456
        %4961 = vmatpush2.bf16.msra.mxu0 %v3455
        %4962 = vmatprep.mubr.bf16.mxu0 %v1087
        %4963 = vmatmul.mubr.bf16.gmra.mxu0 %v1086
        %v4964 = vpop.f32.mrf.mxu0
        %v4965 = vadd.f32 %v4922, %v4964
        %v4966 = vpop.f32.mrf.mxu0
        %v4967 = vadd.f32 %v4924, %v4966
        %v4968 = vpop.f32.mrf.mxu0
        %v4969 = vadd.f32 %v4926, %v4968
        %v4970 = vpop.f32.mrf.mxu0
        %v4971 = vadd.f32 %v4928, %v4970
        %4972 = vdwg.mxu0
        %4973 = vmatprep.subr.bf16.mxu0 0
        %4974 = vmatpush1.bf16.msra.mxu0 0
        %4975 = vmatprep.subr.bf16.mxu0 0
        %4976 = vmatpush1.bf16.msra.mxu0 0
        %4977 = vmatprep.subr.bf16.mxu0 0
        %4978 = vmatpush1.bf16.msra.mxu0 0
        %4979 = vmatprep.subr.bf16.mxu0 0
        %4980 = vmatpush1.bf16.msra.mxu0 0
        %4981 = vmatprep.subr.bf16.mxu0 0
        %4982 = vmatpush1.bf16.msra.mxu0 0
        %4983 = vmatprep.subr.bf16.mxu0 0
        %4984 = vmatpush1.bf16.msra.mxu0 0
        %4985 = vmatprep.subr.bf16.mxu0 %v4151
        %4986 = vmatpush1.bf16.msra.mxu0 %v4148
        %4987 = vmatprep.subr.bf16.mxu0 %v3528
        %4988 = vmatpush1.bf16.msra.mxu0 %v3527
        %4989 = vmatprep.subr.bf16.mxu0 0
        %4990 = vmatpush2.bf16.msra.mxu0 0
        %4991 = vmatprep.subr.bf16.mxu0 0
        %4992 = vmatpush2.bf16.msra.mxu0 0
        %4993 = vmatprep.subr.bf16.mxu0 0
        %4994 = vmatpush2.bf16.msra.mxu0 0
        %4995 = vmatprep.subr.bf16.mxu0 0
        %4996 = vmatpush2.bf16.msra.mxu0 0
        %4997 = vmatprep.subr.bf16.mxu0 0
        %4998 = vmatpush2.bf16.msra.mxu0 0
        %4999 = vmatprep.subr.bf16.mxu0 0
        %5000 = vmatpush2.bf16.msra.mxu0 0
        %5001 = vmatprep.subr.bf16.mxu0 0
        %5002 = vmatpush2.bf16.msra.mxu0 0
        %5003 = vmatprep.subr.bf16.mxu0 0
        %5004 = vmatpush2.bf16.msra.mxu0 0
        %5005 = vmatprep.mubr.bf16.mxu0 0
        %5006 = vmatmul.mubr.bf16.gmra.mxu0 %v4126
        %v5007 = vpop.f32.mrf.mxu0
        %v5008 = vadd.f32 %v4965, %v5007
        %v5009 = vpop.f32.mrf.mxu0
        %v5010 = vadd.f32 %v4967, %v5009
        %v5011 = vpop.f32.mrf.mxu0
        %v5012 = vadd.f32 %v4969, %v5011
        %v5013 = vpop.f32.mrf.mxu0
        %v5014 = vadd.f32 %v4971, %v5013
        %5015 = vdwg.mxu0
        %5016 = vmatprep.subr.bf16.mxu0 0
        %5017 = vmatpush1.bf16.msra.mxu0 %v3016
        %5018 = vmatprep.subr.bf16.mxu0 0
        %5019 = vmatpush1.bf16.msra.mxu0 %v3007
        %5020 = vmatprep.subr.bf16.mxu0 0
        %5021 = vmatpush1.bf16.msra.mxu0 %v2998
        %5022 = vmatprep.subr.bf16.mxu0 0
        %5023 = vmatpush1.bf16.msra.mxu0 %v2989
        %5024 = vmatprep.subr.bf16.mxu0 0
        %5025 = vmatpush1.bf16.msra.mxu0 %v2980
        %5026 = vmatprep.subr.bf16.mxu0 0
        %5027 = vmatpush1.bf16.msra.mxu0 %v2971
        %5028 = vmatprep.subr.bf16.mxu0 0
        %5029 = vmatpush1.bf16.msra.mxu0 %v2962
        %5030 = vmatprep.subr.bf16.mxu0 0
        %5031 = vmatpush1.bf16.msra.mxu0 %v2953
        %5032 = vmatprep.subr.bf16.mxu0 0
        %5033 = vmatpush2.bf16.msra.mxu0 %v3088
        %5034 = vmatprep.subr.bf16.mxu0 0
        %5035 = vmatpush2.bf16.msra.mxu0 %v3079
        %5036 = vmatprep.subr.bf16.mxu0 0
        %5037 = vmatpush2.bf16.msra.mxu0 %v3070
        %5038 = vmatprep.subr.bf16.mxu0 0
        %5039 = vmatpush2.bf16.msra.mxu0 %v3061
        %5040 = vmatprep.subr.bf16.mxu0 0
        %5041 = vmatpush2.bf16.msra.mxu0 %v3052
        %5042 = vmatprep.subr.bf16.mxu0 0
        %5043 = vmatpush2.bf16.msra.mxu0 %v3043
        %5044 = vmatprep.subr.bf16.mxu0 0
        %5045 = vmatpush2.bf16.msra.mxu0 %v3034
        %5046 = vmatprep.subr.bf16.mxu0 0
        %5047 = vmatpush2.bf16.msra.mxu0 %v3025
        %5048 = vmatprep.mubr.bf16.mxu0 %v1081
        %5049 = vmatmul.mubr.bf16.gmra.mxu0 %v1080
        %v5050 = vpop.f32.mrf.mxu0
        %v5051 = vadd.f32 0.0, %v5050
        %v5052 = vpop.f32.mrf.mxu0
        %v5053 = vpop.f32.mrf.mxu0
        %v5054 = vadd.f32 0.0, %v5053
        %v5055 = vpop.f32.mrf.mxu0
        %5056 = vdwg.mxu0
        %5057 = vmatprep.subr.bf16.mxu0 0
        %5058 = vmatpush1.bf16.msra.mxu0 %v3160
        %5059 = vmatprep.subr.bf16.mxu0 0
        %5060 = vmatpush1.bf16.msra.mxu0 %v3151
        %5061 = vmatprep.subr.bf16.mxu0 0
        %5062 = vmatpush1.bf16.msra.mxu0 %v3142
        %5063 = vmatprep.subr.bf16.mxu0 0
        %5064 = vmatpush1.bf16.msra.mxu0 %v3133
        %5065 = vmatprep.subr.bf16.mxu0 0
        %5066 = vmatpush1.bf16.msra.mxu0 %v3124
        %5067 = vmatprep.subr.bf16.mxu0 0
        %5068 = vmatpush1.bf16.msra.mxu0 %v3115
        %5069 = vmatprep.subr.bf16.mxu0 0
        %5070 = vmatpush1.bf16.msra.mxu0 %v3106
        %5071 = vmatprep.subr.bf16.mxu0 0
        %5072 = vmatpush1.bf16.msra.mxu0 %v3097
        %5073 = vmatprep.subr.bf16.mxu0 0
        %5074 = vmatpush2.bf16.msra.mxu0 %v3232
        %5075 = vmatprep.subr.bf16.mxu0 0
        %5076 = vmatpush2.bf16.msra.mxu0 %v3223
        %5077 = vmatprep.subr.bf16.mxu0 0
        %5078 = vmatpush2.bf16.msra.mxu0 %v3214
        %5079 = vmatprep.subr.bf16.mxu0 0
        %5080 = vmatpush2.bf16.msra.mxu0 %v3205
        %5081 = vmatprep.subr.bf16.mxu0 0
        %5082 = vmatpush2.bf16.msra.mxu0 %v3196
        %5083 = vmatprep.subr.bf16.mxu0 0
        %5084 = vmatpush2.bf16.msra.mxu0 %v3187
        %5085 = vmatprep.subr.bf16.mxu0 0
        %5086 = vmatpush2.bf16.msra.mxu0 %v3178
        %5087 = vmatprep.subr.bf16.mxu0 0
        %5088 = vmatpush2.bf16.msra.mxu0 %v3169
        %5089 = vmatprep.mubr.bf16.mxu0 %v1083
        %5090 = vmatmul.mubr.bf16.gmra.mxu0 %v1082
        %v5091 = vpop.f32.mrf.mxu0
        %v5092 = vadd.f32 %v5051, %v5091
        %v5093 = vpop.f32.mrf.mxu0
        %v5094 = vpop.f32.mrf.mxu0
        %v5095 = vadd.f32 %v5054, %v5094
        %v5096 = vpop.f32.mrf.mxu0
        %5097 = vdwg.mxu0
        %5098 = vmatprep.subr.bf16.mxu0 0
        %5099 = vmatpush1.bf16.msra.mxu0 %v3304
        %5100 = vmatprep.subr.bf16.mxu0 0
        %5101 = vmatpush1.bf16.msra.mxu0 %v3295
        %5102 = vmatprep.subr.bf16.mxu0 0
        %5103 = vmatpush1.bf16.msra.mxu0 %v3286
        %5104 = vmatprep.subr.bf16.mxu0 0
        %5105 = vmatpush1.bf16.msra.mxu0 %v3277
        %5106 = vmatprep.subr.bf16.mxu0 0
        %5107 = vmatpush1.bf16.msra.mxu0 %v3268
        %5108 = vmatprep.subr.bf16.mxu0 0
        %5109 = vmatpush1.bf16.msra.mxu0 %v3259
        %5110 = vmatprep.subr.bf16.mxu0 0
        %5111 = vmatpush1.bf16.msra.mxu0 %v3250
        %5112 = vmatprep.subr.bf16.mxu0 0
        %5113 = vmatpush1.bf16.msra.mxu0 %v3241
        %5114 = vmatprep.subr.bf16.mxu0 0
        %5115 = vmatpush2.bf16.msra.mxu0 %v3376
        %5116 = vmatprep.subr.bf16.mxu0 0
        %5117 = vmatpush2.bf16.msra.mxu0 %v3367
        %5118 = vmatprep.subr.bf16.mxu0 0
        %5119 = vmatpush2.bf16.msra.mxu0 %v3358
        %5120 = vmatprep.subr.bf16.mxu0 0
        %5121 = vmatpush2.bf16.msra.mxu0 %v3349
        %5122 = vmatprep.subr.bf16.mxu0 0
        %5123 = vmatpush2.bf16.msra.mxu0 %v3340
        %5124 = vmatprep.subr.bf16.mxu0 0
        %5125 = vmatpush2.bf16.msra.mxu0 %v3331
        %5126 = vmatprep.subr.bf16.mxu0 0
        %5127 = vmatpush2.bf16.msra.mxu0 %v3322
        %5128 = vmatprep.subr.bf16.mxu0 0
        %5129 = vmatpush2.bf16.msra.mxu0 %v3313
        %5130 = vmatprep.mubr.bf16.mxu0 %v1085
        %5131 = vmatmul.mubr.bf16.gmra.mxu0 %v1084
        %v5132 = vpop.f32.mrf.mxu0
        %v5133 = vadd.f32 %v5092, %v5132
        %v5134 = vpop.f32.mrf.mxu0
        %v5135 = vpop.f32.mrf.mxu0
        %v5136 = vadd.f32 %v5095, %v5135
        %v5137 = vpop.f32.mrf.mxu0
        %5138 = vdwg.mxu0
        %5139 = vmatprep.subr.bf16.mxu0 0
        %5140 = vmatpush1.bf16.msra.mxu0 %v3448
        %5141 = vmatprep.subr.bf16.mxu0 0
        %5142 = vmatpush1.bf16.msra.mxu0 %v3439
        %5143 = vmatprep.subr.bf16.mxu0 0
        %5144 = vmatpush1.bf16.msra.mxu0 %v3430
        %5145 = vmatprep.subr.bf16.mxu0 0
        %5146 = vmatpush1.bf16.msra.mxu0 %v3421
        %5147 = vmatprep.subr.bf16.mxu0 0
        %5148 = vmatpush1.bf16.msra.mxu0 %v3412
        %5149 = vmatprep.subr.bf16.mxu0 0
        %5150 = vmatpush1.bf16.msra.mxu0 %v3403
        %5151 = vmatprep.subr.bf16.mxu0 0
        %5152 = vmatpush1.bf16.msra.mxu0 %v3394
        %5153 = vmatprep.subr.bf16.mxu0 0
        %5154 = vmatpush1.bf16.msra.mxu0 %v3385
        %5155 = vmatprep.subr.bf16.mxu0 0
        %5156 = vmatpush2.bf16.msra.mxu0 %v3520
        %5157 = vmatprep.subr.bf16.mxu0 0
        %5158 = vmatpush2.bf16.msra.mxu0 %v3511
        %5159 = vmatprep.subr.bf16.mxu0 0
        %5160 = vmatpush2.bf16.msra.mxu0 %v3502
        %5161 = vmatprep.subr.bf16.mxu0 0
        %5162 = vmatpush2.bf16.msra.mxu0 %v3493
        %5163 = vmatprep.subr.bf16.mxu0 0
        %5164 = vmatpush2.bf16.msra.mxu0 %v3484
        %5165 = vmatprep.subr.bf16.mxu0 0
        %5166 = vmatpush2.bf16.msra.mxu0 %v3475
        %5167 = vmatprep.subr.bf16.mxu0 0
        %5168 = vmatpush2.bf16.msra.mxu0 %v3466
        %5169 = vmatprep.subr.bf16.mxu0 0
        %5170 = vmatpush2.bf16.msra.mxu0 %v3457
        %5171 = vmatprep.mubr.bf16.mxu0 %v1087
        %5172 = vmatmul.mubr.bf16.gmra.mxu0 %v1086
        %v5173 = vpop.f32.mrf.mxu0
        %v5174 = vadd.f32 %v5133, %v5173
        %v5175 = vpop.f32.mrf.mxu0
        %v5176 = vpop.f32.mrf.mxu0
        %v5177 = vadd.f32 %v5136, %v5176
        %v5178 = vpop.f32.mrf.mxu0
        %5179 = vdwg.mxu0
        %5180 = vmatprep.subr.bf16.mxu0 0
        %5181 = vmatpush1.bf16.msra.mxu0 0
        %5182 = vmatprep.subr.bf16.mxu0 0
        %5183 = vmatpush1.bf16.msra.mxu0 0
        %5184 = vmatprep.subr.bf16.mxu0 0
        %5185 = vmatpush1.bf16.msra.mxu0 0
        %5186 = vmatprep.subr.bf16.mxu0 0
        %5187 = vmatpush1.bf16.msra.mxu0 0
        %5188 = vmatprep.subr.bf16.mxu0 0
        %5189 = vmatpush1.bf16.msra.mxu0 0
        %5190 = vmatprep.subr.bf16.mxu0 0
        %5191 = vmatpush1.bf16.msra.mxu0 0
        %5192 = vmatprep.subr.bf16.mxu0 0
        %5193 = vmatpush1.bf16.msra.mxu0 %v4154
        %5194 = vmatprep.subr.bf16.mxu0 0
        %5195 = vmatpush1.bf16.msra.mxu0 %v3529
        %5196 = vmatprep.subr.bf16.mxu0 0
        %5197 = vmatpush2.bf16.msra.mxu0 0
        %5198 = vmatprep.subr.bf16.mxu0 0
        %5199 = vmatpush2.bf16.msra.mxu0 0
        %5200 = vmatprep.subr.bf16.mxu0 0
        %5201 = vmatpush2.bf16.msra.mxu0 0
        %5202 = vmatprep.subr.bf16.mxu0 0
        %5203 = vmatpush2.bf16.msra.mxu0 0
        %5204 = vmatprep.subr.bf16.mxu0 0
        %5205 = vmatpush2.bf16.msra.mxu0 0
        %5206 = vmatprep.subr.bf16.mxu0 0
        %5207 = vmatpush2.bf16.msra.mxu0 0
        %5208 = vmatprep.subr.bf16.mxu0 0
        %5209 = vmatpush2.bf16.msra.mxu0 0
        %5210 = vmatprep.subr.bf16.mxu0 0
        %5211 = vmatpush2.bf16.msra.mxu0 0
        %5212 = vmatprep.mubr.bf16.mxu0 0
        %5213 = vmatmul.mubr.bf16.gmra.mxu0 %v4126
        %v5214 = vpop.f32.mrf.mxu0
        %v5215 = vadd.f32 %v5174, %v5214
        %v5216 = vpop.f32.mrf.mxu0
        %v5217 = vpop.f32.mrf.mxu0
        %v5218 = vadd.f32 %v5177, %v5217
        %v5219 = vpop.f32.mrf.mxu0
        %5220 = vdwg.mxu0
        %5223 = vrot.lane.b32.xlu0 %v4363, 64
        %v5224 = vpop.permute.xlu0 %5223
        %5225 = vrot.lane.b32.xlu0 %v4367, 64
        %v5226 = vpop.permute.xlu0 %5225
        %v5229 = vmax.f32 %v4363, %v5224
        %v5230 = vmax.f32 %v4367, %v5226
        %v5231 = vmax.f32 %v5229, %v4365
        %v5232 = vmax.f32 %v5230, %v4369
        %5235 = vrot.lane.b32.xlu0 %v4365, 64
        %v5236 = vpop.permute.xlu0 %5235
        %5237 = vrot.lane.b32.xlu0 %v4369, 64
        %v5238 = vpop.permute.xlu0 %5237
        %v5241 = vmax.f32 %v5231, %v5236
        %v5242 = vmax.f32 %v5232, %v5238
        %v5243 = vmax.f32 %v5241, %v4578
        %v5244 = vmax.f32 %v5242, %v4582
        %5247 = vrot.lane.b32.xlu0 %v4578, 64
        %v5248 = vpop.permute.xlu0 %5247
        %5249 = vrot.lane.b32.xlu0 %v4582, 64
        %v5250 = vpop.permute.xlu0 %5249
        %v5253 = vmax.f32 %v5243, %v5248
        %v5254 = vmax.f32 %v5244, %v5250
        %v5255 = vmax.f32 %v5253, %v4580
        %v5256 = vmax.f32 %v5254, %v4584
        %5259 = vrot.lane.b32.xlu0 %v4580, 64
        %v5260 = vpop.permute.xlu0 %5259
        %5261 = vrot.lane.b32.xlu0 %v4584, 64
        %v5262 = vpop.permute.xlu0 %5261
        %v5265 = vmax.f32 %v5255, %v5260
        %v5266 = vmax.f32 %v5256, %v5262
        %v5267 = vmax.f32 %v5265, %v4793
        %v5268 = vmax.f32 %v5266, %v4797
        %5271 = vrot.lane.b32.xlu0 %v4793, 64
        %v5272 = vpop.permute.xlu0 %5271
        %5273 = vrot.lane.b32.xlu0 %v4797, 64
        %v5274 = vpop.permute.xlu0 %5273
        %v5277 = vmax.f32 %v5267, %v5272
        %v5278 = vmax.f32 %v5268, %v5274
        %v5279 = vmax.f32 %v5277, %v4795
        %v5280 = vmax.f32 %v5278, %v4799
        %5283 = vrot.lane.b32.xlu0 %v4795, 64
        %v5284 = vpop.permute.xlu0 %5283
        %5285 = vrot.lane.b32.xlu0 %v4799, 64
        %v5286 = vpop.permute.xlu0 %5285
        %v5289 = vmax.f32 %v5279, %v5284
        %v5290 = vmax.f32 %v5280, %v5286
        %v5291 = vmax.f32 %v5289, %v5008
        %v5292 = vmax.f32 %v5290, %v5012
        %5295 = vrot.lane.b32.xlu0 %v5008, 64
        %v5296 = vpop.permute.xlu0 %5295
        %5297 = vrot.lane.b32.xlu0 %v5012, 64
        %v5298 = vpop.permute.xlu0 %5297
        %v5301 = vmax.f32 %v5291, %v5296
        %v5302 = vmax.f32 %v5292, %v5298
        %v5303 = vmax.f32 %v5301, %v5010
        %v5304 = vmax.f32 %v5302, %v5014
        %5307 = vrot.lane.b32.xlu0 %v5010, 64
        %v5308 = vpop.permute.xlu0 %5307
        %5309 = vrot.lane.b32.xlu0 %v5014, 64
        %v5310 = vpop.permute.xlu0 %5309
        %v5313 = vmax.f32 %v5303, %v5308
        %v5314 = vmax.f32 %v5304, %v5310
        %v5315 = vmax.f32 %v5313, %v5215
        %v5316 = vmax.f32 %v5314, %v5218
        %v5317 = vld [vmem:[#allocation7] sm:$0x1]
        %v5319 = vlaneseq
        %v5320 = vshrl.u32 %v5319, 7
        %v5321 = vsub.s32 0, %v5320
        %v5322 = vrot.slane %v5317, %v5321
        %v5324 = vadd.f32 %v5315, %v5322
        %v5325 = vadd.f32 %v5316, %v5322
        %v5326 = vmax.f32 %v5324, 0.0
        %v5327 = vmax.f32 %v5325, 0.0
        %v5328 = vld [vmem:[#allocation8] sm:$0xff]
        %v5329 = vld [vmem:[#allocation8 + $0x8] sm:$0xff]
        %v5330 = vld [vmem:[#allocation8 + $0x10] sm:$0xff]
        %v5331 = vld [vmem:[#allocation8 + $0x18] sm:$0xff]
        %v5332 = vld [vmem:[#allocation8 + $0x20] sm:$0xff]
        %v5333 = vld [vmem:[#allocation8 + $0x28] sm:$0xff]
        %v5334 = vld [vmem:[#allocation8 + $0x30] sm:$0xff]
        %v5335 = vld [vmem:[#allocation8 + $0x38] sm:$0xff]
        %v5336 = vld [vmem:[#allocation10] sm:$0x1]
        %v5338 = vlaneseq
        %v5339 = vshrl.u32 %v5338, 7
        %v5340 = vsub.s32 0, %v5339
        %v5341 = vrot.slane %v5336, %v5340
        %vm5343 = vcmask 523264
        %v5345 = vsel %vm5343, %v5326, 0
        %v5348 = vsel %vm5343, %v5327, 0
        %5350 = vmatprep.subr.mxu0 0.0
        %5351 = vmatpush1.msra.mxu0 0.0
        %5352 = vmatprep.subr.mxu0 0.0
        %5353 = vmatpush1.msra.mxu0 0.0
        %5354 = vmatprep.subr.mxu0 0.0
        %5355 = vmatpush1.msra.mxu0 0.0
        %5356 = vmatprep.subr.mxu0 0.0
        %5357 = vmatpush1.msra.mxu0 0.0
        %5358 = vmatprep.subr.mxu0 0.0
        %5359 = vmatpush1.msra.mxu0 0.0
        %5360 = vmatprep.subr.mxu0 0.0
        %5361 = vmatpush1.msra.mxu0 0.0
        %5362 = vmatprep.subr.mxu0 0.0
        %5363 = vmatpush1.msra.mxu0 0.0
        %5364 = vmatprep.subr.mxu0 0.0
        %5365 = vmatpush1.msra.mxu0 0.0
        %5366 = vmatprep.subr.mxu0 0.0
        %5367 = vmatpush1.msra.mxu0 %v5335
        %5368 = vmatprep.subr.mxu0 0.0
        %5369 = vmatpush1.msra.mxu0 %v5334
        %5370 = vmatprep.subr.mxu0 0.0
        %5371 = vmatpush1.msra.mxu0 %v5333
        %5372 = vmatprep.subr.mxu0 0.0
        %5373 = vmatpush1.msra.mxu0 %v5332
        %5374 = vmatprep.subr.mxu0 0.0
        %5375 = vmatpush1.msra.mxu0 %v5331
        %5376 = vmatprep.subr.mxu0 0.0
        %5377 = vmatpush1.msra.mxu0 %v5330
        %5378 = vmatprep.subr.mxu0 0.0
        %5379 = vmatpush1.msra.mxu0 %v5329
        %5380 = vmatprep.subr.mxu0 0.0
        %5381 = vmatpush1.msra.mxu0 %v5328
        %5382 = vmatprep.subr.mxu0 0.0
        %5383 = vmatpush2.msra.mxu0 0.0
        %5384 = vmatprep.subr.mxu0 0.0
        %5385 = vmatpush2.msra.mxu0 0.0
        %5386 = vmatprep.subr.mxu0 0.0
        %5387 = vmatpush2.msra.mxu0 0.0
        %5388 = vmatprep.subr.mxu0 0.0
        %5389 = vmatpush2.msra.mxu0 0.0
        %5390 = vmatprep.subr.mxu0 0.0
        %5391 = vmatpush2.msra.mxu0 0.0
        %5392 = vmatprep.subr.mxu0 0.0
        %5393 = vmatpush2.msra.mxu0 0.0
        %5394 = vmatprep.subr.mxu0 0.0
        %5395 = vmatpush2.msra.mxu0 0.0
        %5396 = vmatprep.subr.mxu0 0.0
        %5397 = vmatpush2.msra.mxu0 0.0
        %5398 = vmatprep.subr.mxu0 0.0
        %5399 = vmatpush2.msra.mxu0 0.0
        %5400 = vmatprep.subr.mxu0 0.0
        %5401 = vmatpush2.msra.mxu0 0.0
        %5402 = vmatprep.subr.mxu0 0.0
        %5403 = vmatpush2.msra.mxu0 0.0
        %5404 = vmatprep.subr.mxu0 0.0
        %5405 = vmatpush2.msra.mxu0 0.0
        %5406 = vmatprep.subr.mxu0 0.0
        %5407 = vmatpush2.msra.mxu0 0.0
        %5408 = vmatprep.subr.mxu0 0.0
        %5409 = vmatpush2.msra.mxu0 0.0
        %5410 = vmatprep.subr.mxu0 0.0
        %5411 = vmatpush2.msra.mxu0 0.0
        %5412 = vmatprep.subr.mxu0 0.0
        %5413 = vmatpush2.msra.mxu0 0.0
        %5414 = vmatprep.mubr.f32.mxu0 0.0
        %5415 = vmatmul.mubr.f32.gmra.mxu0 %v5345
        %v5416 = vpop.f32.mrf.mxu0
        %v5417 = vadd.f32 %v5341, %v5416
        %v5418 = vpop.f32.mrf.mxu0
        %5419 = vmatprep.mubr.f32.mxu0 0.0
        %5420 = vmatmul.mubr.f32.gmra.mxu0 %v5348
        %v5421 = vpop.f32.mrf.mxu0
        %v5422 = vadd.f32 %v5341, %v5421
        %v5423 = vpop.f32.mrf.mxu0
        %5424 = vdwg.mxu0
        %v5425 = vmax.f32 %v5417, 0.0
        %v5426 = vmax.f32 %v5422, 0.0
        %v5427 = vld [vmem:[#allocation11] sm:$0xff]
        %v5428 = vld [vmem:[#allocation11 + $0x8] sm:$0xff]
        %v5429 = vld [vmem:[#allocation11 + $0x10] sm:$0xff]
        %v5430 = vld [vmem:[#allocation11 + $0x18] sm:$0xff]
        %v5431 = vld [vmem:[#allocation11 + $0x20] sm:$0xff]
        %v5432 = vld [vmem:[#allocation11 + $0x28] sm:$0xff]
        %v5433 = vld [vmem:[#allocation11 + $0x30] sm:$0xff]
        %v5434 = vld [vmem:[#allocation11 + $0x38] sm:$0xff]
        %v5435 = vld [vmem:[#allocation13] sm:$0x1]
        %v5437 = vlaneseq
        %v5438 = vshrl.u32 %v5437, 7
        %v5439 = vsub.s32 0, %v5438
        %v5440 = vrot.slane %v5435, %v5439
        %5442 = vmatprep.subr.mxu0 0.0
        %5443 = vmatpush1.msra.mxu0 0.0
        %5444 = vmatprep.subr.mxu0 0.0
        %5445 = vmatpush1.msra.mxu0 0.0
        %5446 = vmatprep.subr.mxu0 0.0
        %5447 = vmatpush1.msra.mxu0 0.0
        %5448 = vmatprep.subr.mxu0 0.0
        %5449 = vmatpush1.msra.mxu0 0.0
        %5450 = vmatprep.subr.mxu0 0.0
        %5451 = vmatpush1.msra.mxu0 0.0
        %5452 = vmatprep.subr.mxu0 0.0
        %5453 = vmatpush1.msra.mxu0 0.0
        %5454 = vmatprep.subr.mxu0 0.0
        %5455 = vmatpush1.msra.mxu0 0.0
        %5456 = vmatprep.subr.mxu0 0.0
        %5457 = vmatpush1.msra.mxu0 0.0
        %5458 = vmatprep.subr.mxu0 0.0
        %5459 = vmatpush1.msra.mxu0 %v5434
        %5460 = vmatprep.subr.mxu0 0.0
        %5461 = vmatpush1.msra.mxu0 %v5433
        %5462 = vmatprep.subr.mxu0 0.0
        %5463 = vmatpush1.msra.mxu0 %v5432
        %5464 = vmatprep.subr.mxu0 0.0
        %5465 = vmatpush1.msra.mxu0 %v5431
        %5466 = vmatprep.subr.mxu0 0.0
        %5467 = vmatpush1.msra.mxu0 %v5430
        %5468 = vmatprep.subr.mxu0 0.0
        %5469 = vmatpush1.msra.mxu0 %v5429
        %5470 = vmatprep.subr.mxu0 0.0
        %5471 = vmatpush1.msra.mxu0 %v5428
        %5472 = vmatprep.subr.mxu0 0.0
        %5473 = vmatpush1.msra.mxu0 %v5427
        %5474 = vmatprep.subr.mxu0 0.0
        %5475 = vmatpush2.msra.mxu0 0.0
        %5476 = vmatprep.subr.mxu0 0.0
        %5477 = vmatpush2.msra.mxu0 0.0
        %5478 = vmatprep.subr.mxu0 0.0
        %5479 = vmatpush2.msra.mxu0 0.0
        %5480 = vmatprep.subr.mxu0 0.0
        %5481 = vmatpush2.msra.mxu0 0.0
        %5482 = vmatprep.subr.mxu0 0.0
        %5483 = vmatpush2.msra.mxu0 0.0
        %5484 = vmatprep.subr.mxu0 0.0
        %5485 = vmatpush2.msra.mxu0 0.0
        %5486 = vmatprep.subr.mxu0 0.0
        %5487 = vmatpush2.msra.mxu0 0.0
        %5488 = vmatprep.subr.mxu0 0.0
        %5489 = vmatpush2.msra.mxu0 0.0
        %5490 = vmatprep.subr.mxu0 0.0
        %5491 = vmatpush2.msra.mxu0 0.0
        %5492 = vmatprep.subr.mxu0 0.0
        %5493 = vmatpush2.msra.mxu0 0.0
        %5494 = vmatprep.subr.mxu0 0.0
        %5495 = vmatpush2.msra.mxu0 0.0
        %5496 = vmatprep.subr.mxu0 0.0
        %5497 = vmatpush2.msra.mxu0 0.0
        %5498 = vmatprep.subr.mxu0 0.0
        %5499 = vmatpush2.msra.mxu0 0.0
        %5500 = vmatprep.subr.mxu0 0.0
        %5501 = vmatpush2.msra.mxu0 0.0
        %5502 = vmatprep.subr.mxu0 0.0
        %5503 = vmatpush2.msra.mxu0 0.0
        %5504 = vmatprep.subr.mxu0 0.0
        %5505 = vmatpush2.msra.mxu0 0.0
        %5506 = vmatprep.mubr.f32.mxu0 0.0
        %5507 = vmatmul.mubr.f32.gmra.mxu0 %v5345
        %v5508 = vpop.f32.mrf.mxu0
        %v5509 = vadd.f32 %v5440, %v5508
        %v5510 = vpop.f32.mrf.mxu0
        %5511 = vmatprep.mubr.f32.mxu0 0.0
        %5512 = vmatmul.mubr.f32.gmra.mxu0 %v5348
        %v5513 = vpop.f32.mrf.mxu0
        %v5514 = vadd.f32 %v5440, %v5513
        %v5515 = vpop.f32.mrf.mxu0
        %5516 = vdwg.mxu0
        %v5517 = vxor.u32 %v5509, 2147483648
        %v5518 = vxor.u32 %v5514, 2147483648
        %v5519 = vmul.f32 %v5517, 1.442695
        %v5520 = vpow.pop %v5519
        %v5521 = vmul.f32 %v5518, 1.442695
        %v5522 = vpow.pop %v5521
        %v5523 = vadd.f32 %v5520, 1.0
        %v5524 = vadd.f32 %v5522, 1.0
        %v5525 = vrcp.pop %v5523
        %v5526 = vmul.f32 1.0, %v5525
        %v5527 = vrcp.pop %v5524
        %v5528 = vmul.f32 1.0, %v5527
        %v5529 = vmul.f32 %v5526, %v5425
        %v5530 = vmul.f32 %v5528, %v5426
        %v5531 = vsub.f32 1.0, %v5526
        %v5532 = vsub.f32 1.0, %v5528
        %v5533 = vmul.f32 %v5531, %v5326
        %v5534 = vmul.f32 %v5532, %v5327
        %v5535 = vadd.f32 %v5529, %v5533
        %v5536 = vadd.f32 %v5530, %v5534
        %5537 = vst.msk [vmem:[%s378] sm:$0xff] %vm5343, %v5535
        %5538 = vst.msk [vmem:[%s378 + $0x8] sm:$0xff] %vm5343, %v5536
        %s5539 = sand.u32 %s187, 1
        %s5540 = scalar_lea.sflag [#allocation4], %s5539
        %s5541 = sand.u32 %s187, 1
        %s5542 = smul.addr %s5541, 16
        %s5543 = scalar_lea.vmem [#allocation14], %s5542
        // Predicated region
        $region77: #{tpu_custom_call.1} parent=47 // pred_check
          %p5544 = pneg %p197
        $region78: #{tpu_custom_call.1} parent=47 // pred_check_branch
          %5546 = sbr.rel (%p5544) target = $region80
        $region79: #{tpu_custom_call.1} parent=47 // pred_region
          %s5547 = smul.u32 2, %s27
          %s5549 = ssub.s32 256, 256
          %5550 = vsyncadd %s5540, %s5549
          %s5551 = smul.addr %s5547, 128
          %s5552 = scalar_lea.hbm %s7, %s5551
          %s5553 = sshll.u32 %s5543, 4
          %s5554 = int_to_ptr.vmem [resolvable:$true] %s5553
          %5559 = dma.vmem_to_hbm [thread:$0]  %s5554, 256, %s5552, %s5540, 128, 128, 8
        $region80: #{tpu_custom_call.1} parent=47 // pred_fallthru
          _
      $region48: #{tpu_custom_call.1} parent=5 // pred_fallthru
        _
      %p5560 = scmp.le.s32.totalorder 2, %s22
      // Predicated region
      $region81: #{tpu_custom_call.1} parent=5 // pred_check
        %p5561 = pneg %p5560
      $region82: #{tpu_custom_call.1} parent=5 // pred_check_branch
        %5563 = sbr.rel (%p5561) target = $region84
      $region83: #{tpu_custom_call.1} parent=5 // pred_region
        %s5564 = ssub.s32 %s22, 2
        // Predicated region
        $region85: #{tpu_custom_call.1} parent=83 // pred_check
          %p5565 = pneg %p203
        $region86: #{tpu_custom_call.1} parent=83 // pred_check_branch
          %5567 = sbr.rel (%p5565) target = $region88
        $region87: #{tpu_custom_call.1} parent=83 // pred_region
          %s5568 = sand.u32 %s188, 1
          %s5569 = scalar_lea.sflag [#allocation4], %s5568
          %s5570 = sand.u32 %s188, 1
          %s5571 = smul.addr %s5570, 16
          %s5572 = scalar_lea.vmem [#allocation14], %s5571
          %5573 = dma.done %s5569, 256
        $region88: #{tpu_custom_call.1} parent=83 // pred_fallthru
          _
      $region84: #{tpu_custom_call.1} parent=5 // pred_fallthru
        _
    $region6: #{tpu_custom_call.1} parent=1 // loop_footer
      %s26 = sadd.s32 1, %s22
    $region7: #{tpu_custom_call.1} parent=1 // loop_footer_branch
      %21 = sbr.rel target = $region3
    $region8: #{tpu_custom_call.1} parent=1 // loop_exit
      _
    %5574 = vsyncpa [#allocation3], 1
    %s5575 = scalar_lea.sflag [#allocation3], 1
    %5576 = vsyncpa %s5575, 1
    %5577 = vsyncpa [#allocation6], 1
    %5578 = vsyncpa [#allocation9], 1
    %5579 = vsyncpa [#allocation12], 1
    %5580 = vsyncpa [#allocation4], 1
    %s5581 = scalar_lea.sflag [#allocation4], 1
    %5582 = vsyncpa %s5581, 1

</llo_original>
